<compile_context>
chip_gen: v5e
topology: v5e:2x2
jax: 0.10.0
libtpu: 0.0.40
codegen_flags: <defaults>
</compile_context>

<pallas_src>
import functools
import math

import jax
import jax.numpy as jnp
from jax.experimental import pallas as pl
from jax.experimental.pallas import tpu as pltpu

# ----------------------- configuration (small shapes) -----------------------
B = 2          # batch
F = 8          # n_features
W = 16         # window_size
OUT_DIM = 4    # out_dim
K_SIZE = 7     # conv kernel size
PAD = (K_SIZE - 1) // 2
GRU_HID = 32   # gru_hid_dim
FC_HID = 32    # forecast_hid_dim
ALPHA = 0.2    # leaky relu negative slope
E_F = 2 * W    # feature-GAT embed dim (use_gatv2 -> 2*window_size)
E_T = 2 * F    # temporal-GAT embed dim (use_gatv2 -> 2*n_features)

LANES = 128    # slab lane width


# -------------------- packed weight slab layout (static) ---------------------
def _make_layout():
    layout = {}
    off = 0

    def add(name, rows, cols):
        nonlocal off
        assert cols <= LANES
        layout[name] = (off, rows, cols)
        off += rows
        off = (off + 7) // 8 * 8            # keep every param sublane-aligned

    add("conv_w", K_SIZE * F, F)            # (56, 8)  im2col conv weight
    add("conv_b", 1, F)
    add("fg_w", W, 2 * E_F)                 # (16, 64) [w1 | w2]
    add("fg_bl", 1, E_F)
    add("fg_a", 1, E_F)
    add("fg_bias", F, F)
    add("tg_w", F, 2 * E_T)                 # (8, 32)  [w1 | w2]
    add("tg_bl", 1, E_T)
    add("tg_a", 1, E_T)
    add("tg_bias", W, W)
    add("gru_wih", 3 * F, 3 * GRU_HID)      # (24, 96) columns [r | z | n]
    add("gru_whh", GRU_HID, 3 * GRU_HID)    # (32, 96) columns [r | z | n]
    add("gru_bih", 1, 3 * GRU_HID)
    add("gru_bhh", 1, 3 * GRU_HID)
    add("fc0_w", GRU_HID, FC_HID)
    add("fc0_b", 1, FC_HID)
    add("fc1_w", FC_HID, OUT_DIM)
    add("fc1_b", 1, OUT_DIM)
    return layout, (off + 7) // 8 * 8


LAYOUT, SLAB_ROWS = _make_layout()


# ------------------------------ fused kernel --------------------------------
def mtad_gat_kernel(x_ref, w_ref, o_ref, *, alpha):
    f32 = jnp.float32

    def get(name):
        r0, rows, cols = LAYOUT[name]
        return w_ref[r0:r0 + rows, 0:cols]          # static slice: zero cost

    conv_w, conv_b = get("conv_w"), get("conv_b")
    fg_w, fg_bl, fg_a, fg_bias = get("fg_w"), get("fg_bl"), get("fg_a"), get("fg_bias")
    tg_w, tg_bl, tg_a, tg_bias = get("tg_w"), get("tg_bl"), get("tg_a"), get("tg_bias")
    wih, whh = get("gru_wih"), get("gru_whh")
    bih, bhh = get("gru_bih"), get("gru_bhh")
    fc0_w, fc0_b = get("fc0_w"), get("fc0_b")
    fc1_w, fc1_b = get("fc1_w"), get("fc1_b")

    def sigmoid(v):                                  # exact (numerical parity)
        return 1.0 / (1.0 + jnp.exp(-v))

    def gat_attention(v, wcat, bl, a, bias, emb):
        # v: (K, D) nodes; wcat: (D, 2E) = [w1|w2]; bl/a: (1, E); bias: (K, K)
        proj = jnp.dot(v, wcat, preferred_element_type=f32)      # (K, 2E), 1 MXU push
        li = proj[:, 0:emb]
        lj = proj[:, emb:2 * emb]
        z = li[:, None, :] + lj[None, :, :] + bl                 # (K, K, E)
        z = jnp.where(z >= 0.0, z, alpha * z)                    # LeakyReLU
        e = jnp.sum(z * a, axis=-1) + bias                       # (K, K)
        e = e - jnp.max(e, axis=-1, keepdims=True)               # softmax (dim=2)
        p = jnp.exp(e)
        return p / jnp.sum(p, axis=-1, keepdims=True)

    # ---- per-batch conv + GAT stages (unrolled, B is tiny) ----
    zero_pad = jnp.zeros((PAD, F), f32)
    gi_list = []
    for b in range(B):
        xb = x_ref[b]                                            # (W, F)

        # 1) ConvLayer: "same" pad + Conv1d + ReLU, register-resident im2col.
        xp = jnp.concatenate([zero_pad, xb, zero_pad], axis=0)   # (W + 2*PAD, F)
        patches = jnp.concatenate(
            [xp[k:k + W, :] for k in range(K_SIZE)], axis=1)     # (W, K*F)
        xc = jnp.dot(patches, conv_w, preferred_element_type=f32) + conv_b
        xc = jnp.maximum(xc, 0.0)                                # (W, F)

        # 2) Feature GAT (nodes = features, v = xc.T)
        att_f = gat_attention(xc.T, fg_w, fg_bl, fg_a, fg_bias, E_F)   # (F, F)
        # torch: h = sigmoid(att @ v).permute(0,2,1) == sigmoid(xc @ att.T)
        h_feat = sigmoid(jnp.dot(xc, att_f.T, preferred_element_type=f32))  # (W, F)

        # 3) Temporal GAT (nodes = time steps, v = xc)
        att_t = gat_attention(xc, tg_w, tg_bl, tg_a, tg_bias, E_T)     # (W, W)
        h_temp = sigmoid(jnp.dot(att_t, xc, preferred_element_type=f32))    # (W, F)

        # 5a) GRU input projection (hoisted out of the serial recurrence).
        xin = jnp.concatenate([xc, h_feat, h_temp], axis=1)      # (W, 3F)
        gi_list.append(jnp.dot(xin, wih, preferred_element_type=f32) + bih)  # (W, 3H)

    # ---- 5b) GRU recurrence, batched over B (gate order [r, z, n]) ----
    hdim = GRU_HID
    h = jnp.zeros((B, hdim), f32)
    for t in range(W):
        gi_t = jnp.concatenate(
            [gi_list[b][t:t + 1, :] for b in range(B)], axis=0)  # (B, 3H)
        gh = jnp.dot(h, whh, preferred_element_type=f32) + bhh   # (B, 3H) 1 push/step
        rz = sigmoid(gi_t[:, 0:2 * hdim] + gh[:, 0:2 * hdim])
        r = rz[:, 0:hdim]
        z = rz[:, hdim:2 * hdim]
        n = jnp.tanh(gi_t[:, 2 * hdim:3 * hdim] + r * gh[:, 2 * hdim:3 * hdim])
        h = (1.0 - z) * n + z * h                                # (B, H)

    # ---- 6) Forecasting MLP (dropout = identity in eval) ----
    hh = jnp.maximum(jnp.dot(h, fc0_w, preferred_element_type=f32) + fc0_b, 0.0)
    o_ref[...] = jnp.dot(hh, fc1_w, preferred_element_type=f32) + fc1_b

    # TODO(synk): ReconstructionModel output is computed but discarded by the
    # PyTorch forward (only `predictions` is returned); omitted here.


# ------------------------------ wrapper --------------------------------------
def mtad_gat_forward(x, w_slab):
    """x: (B, W, F) f32, w_slab: (SLAB_ROWS, 128) f32 -> predictions (B, OUT_DIM)."""
    bsz = x.shape[0]
    kern = functools.partial(mtad_gat_kernel, alpha=ALPHA)
    return pl.pallas_call(
        kern,
        out_shape=jax.ShapeDtypeStruct((bsz, OUT_DIM), jnp.float32),
        cost_estimate=pl.CostEstimate(
            flops=650_000, transcendentals=6_000, bytes_accessed=170_000),
    )(x, w_slab)


# -------------------- one-time weight re-layout (host side) ------------------
def prepare_params(p):
    """Re-layout torch-style parameters into one lane-padded (ROWS, 128) slab."""
    parts = {}
    # Conv1d weight (F_out, F_in, K) -> (K*F_in, F_out) for the im2col matmul.
    parts["conv_w"] = jnp.transpose(p["conv_w"], (2, 1, 0)).reshape(K_SIZE * F, F)
    parts["conv_b"] = p["conv_b"].reshape(1, F)

    # Feature GAT: lin weight (E_F, 2W); split halves, transpose, concat -> (W, 2*E_F).
    parts["fg_w"] = jnp.concatenate(
        [p["fgat_lin_w"][:, :W].T, p["fgat_lin_w"][:, W:].T], axis=1)
    parts["fg_bl"] = p["fgat_lin_b"].reshape(1, E_F)
    parts["fg_a"] = p["fgat_a"].reshape(1, E_F)
    parts["fg_bias"] = p["fgat_bias"]                   # (F, F)

    # Temporal GAT: lin weight (E_T, 2F) -> (F, 2*E_T).
    parts["tg_w"] = jnp.concatenate(
        [p["tgat_lin_w"][:, :F].T, p["tgat_lin_w"][:, F:].T], axis=1)
    parts["tg_bl"] = p["tgat_lin_b"].reshape(1, E_T)
    parts["tg_a"] = p["tgat_a"].reshape(1, E_T)
    parts["tg_bias"] = p["tgat_bias"]                   # (W, W)

    # GRU: torch W_ih (3H, 3F), W_hh (3H, H); transposed so columns are [r|z|n].
    parts["gru_wih"] = p["gru_wih"].T                   # (3F, 3H)
    parts["gru_whh"] = p["gru_whh"].T                   # (H, 3H)
    parts["gru_bih"] = p["gru_bih"].reshape(1, 3 * GRU_HID)
    parts["gru_bhh"] = p["gru_bhh"].reshape(1, 3 * GRU_HID)

    # Forecasting MLP.
    parts["fc0_w"] = p["fc0_w"].T                       # (H, FC_HID)
    parts["fc0_b"] = p["fc0_b"].reshape(1, FC_HID)
    parts["fc1_w"] = p["fc1_w"].T                       # (FC_HID, OUT)
    parts["fc1_b"] = p["fc1_b"].reshape(1, OUT_DIM)

    slab = jnp.zeros((SLAB_ROWS, LANES), jnp.float32)
    for name, (r0, rows, cols) in LAYOUT.items():
        a = jnp.asarray(parts[name], jnp.float32)
        assert a.shape == (rows, cols), (name, a.shape, (rows, cols))
        slab = slab.at[r0:r0 + rows, 0:cols].set(a)
    return slab


# ------------------------------ parameter init -------------------------------
def init_params(key):
    ks = iter(jax.random.split(key, 32))

    def unif(shape, bound):
        return jax.random.uniform(next(ks), shape, jnp.float32, -bound, bound)

    p = {}
    # ConvLayer: Conv1d(F, F, K)
    b = 1.0 / math.sqrt(F * K_SIZE)
    p["conv_w"] = unif((F, F, K_SIZE), b)
    p["conv_b"] = unif((F,), b)

    # FeatureAttentionLayer (use_gatv2): lin: Linear(2W, 2W), a: (2W, 1), bias: (F, F)
    b = 1.0 / math.sqrt(E_F)
    p["fgat_lin_w"] = unif((E_F, E_F), b)
    p["fgat_lin_b"] = unif((E_F,), b)
    xav = 1.414 * math.sqrt(6.0 / (E_F + 1))
    p["fgat_a"] = unif((E_F, 1), xav)
    p["fgat_bias"] = unif((F, F), 0.1)   # torch.empty -> deterministic init here

    # TemporalAttentionLayer: lin: Linear(2F, 2F), a: (2F, 1), bias: (W, W)
    b = 1.0 / math.sqrt(E_T)
    p["tgat_lin_w"] = unif((E_T, E_T), b)
    p["tgat_lin_b"] = unif((E_T,), b)
    xav = 1.414 * math.sqrt(6.0 / (E_T + 1))
    p["tgat_a"] = unif((E_T, 1), xav)
    p["tgat_bias"] = unif((W, W), 0.1)

    # GRU: input 3F, hidden GRU_HID, 1 layer, gate order [r, z, n]
    b = 1.0 / math.sqrt(GRU_HID)
    p["gru_wih"] = unif((3 * GRU_HID, 3 * F), b)
    p["gru_whh"] = unif((3 * GRU_HID, GRU_HID), b)
    p["gru_bih"] = unif((3 * GRU_HID,), b)
    p["gru_bhh"] = unif((3 * GRU_HID,), b)

    # Forecasting model: Linear(GRU_HID, FC_HID) -> ReLU -> Linear(FC_HID, OUT_DIM)
    b = 1.0 / math.sqrt(GRU_HID)
    p["fc0_w"] = unif((FC_HID, GRU_HID), b)
    p["fc0_b"] = unif((FC_HID,), b)
    b = 1.0 / math.sqrt(FC_HID)
    p["fc1_w"] = unif((OUT_DIM, FC_HID), b)
    p["fc1_b"] = unif((OUT_DIM,), b)
    return p


# ----------------------------------- main ------------------------------------
if __name__ == "__main__":
    key = jax.random.PRNGKey(0)
    k_x, k_p = jax.random.split(key)
    x = jax.random.normal(k_x, (B, W, F), jnp.float32)   # (batch, window, features)
    params = init_params(k_p)
    w_slab = prepare_params(params)                       # one-time re-layout + pack

    preds = jax.jit(mtad_gat_forward)(x, w_slab)
    preds = jax.block_until_ready(preds)
    assert preds.shape == (B, OUT_DIM)
    assert bool(jnp.all(jnp.isfinite(preds)))
    print("KERNEL_OK")
</pallas_src>

<mosaic_0001>
module attributes {stable_mosaic.version = 11 : i64} {
  func.func @mtad_gat_kernel(%arg0: memref<2x16x8xf32, #tpu.memory_space<vmem>>, %arg1: memref<296x128xf32, #tpu.memory_space<vmem>>, %arg2: memref<2x4xf32, #tpu.memory_space<vmem>>) attributes {dimension_semantics = [], scalar_prefetch = 0 : i64, scratch_operands = 0 : i64, tpu.core_type = #tpu.core_type<tc>} {
    %c0 = arith.constant 0 : index
    %c0_0 = arith.constant 0 : index
    %0 = vector.load %arg1[%c0, %c0_0] : memref<296x128xf32, #tpu.memory_space<vmem>>, vector<56x8xf32>
    %c56 = arith.constant 56 : index
    %c0_1 = arith.constant 0 : index
    %1 = vector.load %arg1[%c56, %c0_1] : memref<296x128xf32, #tpu.memory_space<vmem>>, vector<1x8xf32>
    %c64 = arith.constant 64 : index
    %c0_2 = arith.constant 0 : index
    %2 = vector.load %arg1[%c64, %c0_2] : memref<296x128xf32, #tpu.memory_space<vmem>>, vector<16x64xf32>
    %c80 = arith.constant 80 : index
    %c0_3 = arith.constant 0 : index
    %3 = vector.load %arg1[%c80, %c0_3] : memref<296x128xf32, #tpu.memory_space<vmem>>, vector<1x32xf32>
    %c88 = arith.constant 88 : index
    %c0_4 = arith.constant 0 : index
    %4 = vector.load %arg1[%c88, %c0_4] : memref<296x128xf32, #tpu.memory_space<vmem>>, vector<1x32xf32>
    %c96 = arith.constant 96 : index
    %c0_5 = arith.constant 0 : index
    %5 = vector.load %arg1[%c96, %c0_5] : memref<296x128xf32, #tpu.memory_space<vmem>>, vector<8x8xf32>
    %c104 = arith.constant 104 : index
    %c0_6 = arith.constant 0 : index
    %6 = vector.load %arg1[%c104, %c0_6] : memref<296x128xf32, #tpu.memory_space<vmem>>, vector<8x32xf32>
    %c112 = arith.constant 112 : index
    %c0_7 = arith.constant 0 : index
    %7 = vector.load %arg1[%c112, %c0_7] : memref<296x128xf32, #tpu.memory_space<vmem>>, vector<1x16xf32>
    %c120 = arith.constant 120 : index
    %c0_8 = arith.constant 0 : index
    %8 = vector.load %arg1[%c120, %c0_8] : memref<296x128xf32, #tpu.memory_space<vmem>>, vector<1x16xf32>
    %c128 = arith.constant 128 : index
    %c0_9 = arith.constant 0 : index
    %9 = vector.load %arg1[%c128, %c0_9] : memref<296x128xf32, #tpu.memory_space<vmem>>, vector<16x16xf32>
    %c144 = arith.constant 144 : index
    %c0_10 = arith.constant 0 : index
    %10 = vector.load %arg1[%c144, %c0_10] : memref<296x128xf32, #tpu.memory_space<vmem>>, vector<24x96xf32>
    %c168 = arith.constant 168 : index
    %c0_11 = arith.constant 0 : index
    %11 = vector.load %arg1[%c168, %c0_11] : memref<296x128xf32, #tpu.memory_space<vmem>>, vector<32x96xf32>
    %c200 = arith.constant 200 : index
    %c0_12 = arith.constant 0 : index
    %12 = vector.load %arg1[%c200, %c0_12] : memref<296x128xf32, #tpu.memory_space<vmem>>, vector<1x96xf32>
    %c208 = arith.constant 208 : index
    %c0_13 = arith.constant 0 : index
    %13 = vector.load %arg1[%c208, %c0_13] : memref<296x128xf32, #tpu.memory_space<vmem>>, vector<1x96xf32>
    %c216 = arith.constant 216 : index
    %c0_14 = arith.constant 0 : index
    %14 = vector.load %arg1[%c216, %c0_14] : memref<296x128xf32, #tpu.memory_space<vmem>>, vector<32x32xf32>
    %c248 = arith.constant 248 : index
    %c0_15 = arith.constant 0 : index
    %15 = vector.load %arg1[%c248, %c0_15] : memref<296x128xf32, #tpu.memory_space<vmem>>, vector<1x32xf32>
    %c256 = arith.constant 256 : index
    %c0_16 = arith.constant 0 : index
    %16 = vector.load %arg1[%c256, %c0_16] : memref<296x128xf32, #tpu.memory_space<vmem>>, vector<32x4xf32>
    %c288 = arith.constant 288 : index
    %c0_17 = arith.constant 0 : index
    %17 = vector.load %arg1[%c288, %c0_17] : memref<296x128xf32, #tpu.memory_space<vmem>>, vector<1x4xf32>
    %cst = arith.constant 0.000000e+00 : f32
    %18 = vector.broadcast %cst : f32 to vector<3x8xf32>
    %c0_18 = arith.constant 0 : index
    %c0_19 = arith.constant 0 : index
    %c0_20 = arith.constant 0 : index
    %19 = vector.load %arg0[%c0_18, %c0_19, %c0_20] : memref<2x16x8xf32, #tpu.memory_space<vmem>>, vector<1x16x8xf32>
    %20 = vector.shape_cast %19 : vector<1x16x8xf32> to vector<16x8xf32>
    %21 = tpu.concatenate %18, %20, %18 in 0 : vector<3x8xf32>, vector<16x8xf32>, vector<3x8xf32> -> vector<22x8xf32>
    %22 = vector.extract_strided_slice %21 {offsets = [0, 0], sizes = [16, 8], strides = [1, 1]} : vector<22x8xf32> to vector<16x8xf32>
    %23 = vector.extract_strided_slice %21 {offsets = [1, 0], sizes = [16, 8], strides = [1, 1]} : vector<22x8xf32> to vector<16x8xf32>
    %24 = vector.extract_strided_slice %21 {offsets = [2, 0], sizes = [16, 8], strides = [1, 1]} : vector<22x8xf32> to vector<16x8xf32>
    %25 = vector.extract_strided_slice %21 {offsets = [3, 0], sizes = [16, 8], strides = [1, 1]} : vector<22x8xf32> to vector<16x8xf32>
    %26 = vector.extract_strided_slice %21 {offsets = [4, 0], sizes = [16, 8], strides = [1, 1]} : vector<22x8xf32> to vector<16x8xf32>
    %27 = vector.extract_strided_slice %21 {offsets = [5, 0], sizes = [16, 8], strides = [1, 1]} : vector<22x8xf32> to vector<16x8xf32>
    %28 = vector.extract_strided_slice %21 {offsets = [6, 0], sizes = [16, 8], strides = [1, 1]} : vector<22x8xf32> to vector<16x8xf32>
    %29 = tpu.concatenate %22, %23, %24, %25, %26, %27, %28 in 1 : vector<16x8xf32>, vector<16x8xf32>, vector<16x8xf32>, vector<16x8xf32>, vector<16x8xf32>, vector<16x8xf32>, vector<16x8xf32> -> vector<16x56xf32>
    %cst_21 = arith.constant dense<0.000000e+00> : vector<16x8xf32>
    %30 = tpu.matmul %29, %0, %cst_21 {dimension_numbers = #tpu.dot_dimension_numbers<[1], [0], [0], [1], [0, 0, 1, 1], [], []>} : vector<16x56xf32>, vector<56x8xf32>, vector<16x8xf32> -> vector<16x8xf32>
    %31 = vector.broadcast %1 : vector<1x8xf32> to vector<16x8xf32>
    %32 = arith.addf %30, %31 : vector<16x8xf32>
    %cst_22 = arith.constant 0.000000e+00 : f32
    %33 = vector.broadcast %cst_22 : f32 to vector<16x8xf32>
    %34 = arith.maximumf %32, %33 : vector<16x8xf32>
    %35 = tpu.transpose %34, [1, 0] : vector<16x8xf32> -> vector<8x16xf32>
    %cst_23 = arith.constant dense<0.000000e+00> : vector<8x64xf32>
    %36 = tpu.matmul %35, %2, %cst_23 {dimension_numbers = #tpu.dot_dimension_numbers<[1], [0], [0], [1], [0, 0, 1, 1], [], []>} : vector<8x16xf32>, vector<16x64xf32>, vector<8x64xf32> -> vector<8x64xf32>
    %37 = vector.extract_strided_slice %36 {offsets = [0, 0], sizes = [8, 32], strides = [1, 1]} : vector<8x64xf32> to vector<8x32xf32>
    %38 = vector.extract_strided_slice %36 {offsets = [0, 32], sizes = [8, 32], strides = [1, 1]} : vector<8x64xf32> to vector<8x32xf32>
    %39 = vector.shape_cast %37 : vector<8x32xf32> to vector<8x1x32xf32>
    %40 = vector.shape_cast %38 : vector<8x32xf32> to vector<1x8x32xf32>
    %41 = vector.broadcast %39 : vector<8x1x32xf32> to vector<8x8x32xf32>
    %42 = vector.broadcast %40 : vector<1x8x32xf32> to vector<8x8x32xf32>
    %43 = arith.addf %41, %42 : vector<8x8x32xf32>
    %44 = vector.shape_cast %3 : vector<1x32xf32> to vector<1x1x32xf32>
    %45 = vector.broadcast %44 : vector<1x1x32xf32> to vector<8x8x32xf32>
    %46 = arith.addf %43, %45 : vector<8x8x32xf32>
    %cst_24 = arith.constant 0.000000e+00 : f32
    %47 = vector.broadcast %cst_24 : f32 to vector<8x8x32xf32>
    %48 = arith.cmpf oge, %46, %47 : vector<8x8x32xf32>
    %cst_25 = arith.constant 2.000000e-01 : f32
    %49 = vector.broadcast %cst_25 : f32 to vector<8x8x32xf32>
    %50 = arith.mulf %49, %46 : vector<8x8x32xf32>
    %51 = arith.select %48, %46, %50 : vector<8x8x32xi1>, vector<8x8x32xf32>
    %52 = vector.shape_cast %4 : vector<1x32xf32> to vector<1x1x32xf32>
    %53 = vector.broadcast %52 : vector<1x1x32xf32> to vector<8x8x32xf32>
    %54 = arith.mulf %51, %53 : vector<8x8x32xf32>
    %cst_26 = arith.constant dense<0.000000e+00> : vector<8x8xf32>
    %55 = vector.multi_reduction <add>, %54, %cst_26 [2] : vector<8x8x32xf32> to vector<8x8xf32>
    %56 = arith.addf %55, %5 : vector<8x8xf32>
    %cst_27 = arith.constant dense<0xFF800000> : vector<8xf32>
    %57 = vector.multi_reduction <maximumf>, %56, %cst_27 [1] : vector<8x8xf32> to vector<8xf32>
    %58 = vector.shape_cast %57 : vector<8xf32> to vector<8x1xf32>
    %59 = vector.broadcast %58 : vector<8x1xf32> to vector<8x8xf32>
    %60 = arith.subf %56, %59 : vector<8x8xf32>
    %61 = math.exp %60 : vector<8x8xf32>
    %cst_28 = arith.constant dense<0.000000e+00> : vector<8xf32>
    %62 = vector.multi_reduction <add>, %61, %cst_28 [1] : vector<8x8xf32> to vector<8xf32>
    %63 = vector.shape_cast %62 : vector<8xf32> to vector<8x1xf32>
    %64 = vector.broadcast %63 : vector<8x1xf32> to vector<8x8xf32>
    %65 = arith.divf %61, %64 : vector<8x8xf32>
    %66 = tpu.transpose %65, [1, 0] : vector<8x8xf32> -> vector<8x8xf32>
    %cst_29 = arith.constant dense<0.000000e+00> : vector<16x8xf32>
    %67 = tpu.matmul %34, %66, %cst_29 {dimension_numbers = #tpu.dot_dimension_numbers<[1], [0], [0], [1], [0, 0, 1, 1], [], []>} : vector<16x8xf32>, vector<8x8xf32>, vector<16x8xf32> -> vector<16x8xf32>
    %cst_30 = arith.constant 0.000000e+00 : f32
    %68 = vector.broadcast %cst_30 : f32 to vector<16x8xf32>
    %69 = arith.subf %68, %67 : vector<16x8xf32>
    %70 = math.exp %69 : vector<16x8xf32>
    %cst_31 = arith.constant 1.000000e+00 : f32
    %71 = vector.broadcast %cst_31 : f32 to vector<16x8xf32>
    %72 = arith.addf %71, %70 : vector<16x8xf32>
    %cst_32 = arith.constant 1.000000e+00 : f32
    %73 = vector.broadcast %cst_32 : f32 to vector<16x8xf32>
    %74 = arith.divf %73, %72 : vector<16x8xf32>
    %cst_33 = arith.constant dense<0.000000e+00> : vector<16x32xf32>
    %75 = tpu.matmul %34, %6, %cst_33 {dimension_numbers = #tpu.dot_dimension_numbers<[1], [0], [0], [1], [0, 0, 1, 1], [], []>} : vector<16x8xf32>, vector<8x32xf32>, vector<16x32xf32> -> vector<16x32xf32>
    %76 = vector.extract_strided_slice %75 {offsets = [0, 0], sizes = [16, 16], strides = [1, 1]} : vector<16x32xf32> to vector<16x16xf32>
    %77 = vector.extract_strided_slice %75 {offsets = [0, 16], sizes = [16, 16], strides = [1, 1]} : vector<16x32xf32> to vector<16x16xf32>
    %78 = vector.shape_cast %76 : vector<16x16xf32> to vector<16x1x16xf32>
    %79 = vector.shape_cast %77 : vector<16x16xf32> to vector<1x16x16xf32>
    %80 = vector.broadcast %78 : vector<16x1x16xf32> to vector<16x16x16xf32>
    %81 = vector.broadcast %79 : vector<1x16x16xf32> to vector<16x16x16xf32>
    %82 = arith.addf %80, %81 : vector<16x16x16xf32>
    %83 = vector.shape_cast %7 : vector<1x16xf32> to vector<1x1x16xf32>
    %84 = vector.broadcast %83 : vector<1x1x16xf32> to vector<16x16x16xf32>
    %85 = arith.addf %82, %84 : vector<16x16x16xf32>
    %cst_34 = arith.constant 0.000000e+00 : f32
    %86 = vector.broadcast %cst_34 : f32 to vector<16x16x16xf32>
    %87 = arith.cmpf oge, %85, %86 : vector<16x16x16xf32>
    %cst_35 = arith.constant 2.000000e-01 : f32
    %88 = vector.broadcast %cst_35 : f32 to vector<16x16x16xf32>
    %89 = arith.mulf %88, %85 : vector<16x16x16xf32>
    %90 = arith.select %87, %85, %89 : vector<16x16x16xi1>, vector<16x16x16xf32>
    %91 = vector.shape_cast %8 : vector<1x16xf32> to vector<1x1x16xf32>
    %92 = vector.broadcast %91 : vector<1x1x16xf32> to vector<16x16x16xf32>
    %93 = arith.mulf %90, %92 : vector<16x16x16xf32>
    %cst_36 = arith.constant dense<0.000000e+00> : vector<16x16xf32>
    %94 = vector.multi_reduction <add>, %93, %cst_36 [2] : vector<16x16x16xf32> to vector<16x16xf32>
    %95 = arith.addf %94, %9 : vector<16x16xf32>
    %cst_37 = arith.constant dense<0xFF800000> : vector<16xf32>
    %96 = vector.multi_reduction <maximumf>, %95, %cst_37 [1] : vector<16x16xf32> to vector<16xf32>
    %97 = vector.shape_cast %96 : vector<16xf32> to vector<16x1xf32>
    %98 = vector.broadcast %97 : vector<16x1xf32> to vector<16x16xf32>
    %99 = arith.subf %95, %98 : vector<16x16xf32>
    %100 = math.exp %99 : vector<16x16xf32>
    %cst_38 = arith.constant dense<0.000000e+00> : vector<16xf32>
    %101 = vector.multi_reduction <add>, %100, %cst_38 [1] : vector<16x16xf32> to vector<16xf32>
    %102 = vector.shape_cast %101 : vector<16xf32> to vector<16x1xf32>
    %103 = vector.broadcast %102 : vector<16x1xf32> to vector<16x16xf32>
    %104 = arith.divf %100, %103 : vector<16x16xf32>
    %cst_39 = arith.constant dense<0.000000e+00> : vector<16x8xf32>
    %105 = tpu.matmul %104, %34, %cst_39 {dimension_numbers = #tpu.dot_dimension_numbers<[1], [0], [0], [1], [0, 0, 1, 1], [], []>} : vector<16x16xf32>, vector<16x8xf32>, vector<16x8xf32> -> vector<16x8xf32>
    %cst_40 = arith.constant 0.000000e+00 : f32
    %106 = vector.broadcast %cst_40 : f32 to vector<16x8xf32>
    %107 = arith.subf %106, %105 : vector<16x8xf32>
    %108 = math.exp %107 : vector<16x8xf32>
    %cst_41 = arith.constant 1.000000e+00 : f32
    %109 = vector.broadcast %cst_41 : f32 to vector<16x8xf32>
    %110 = arith.addf %109, %108 : vector<16x8xf32>
    %cst_42 = arith.constant 1.000000e+00 : f32
    %111 = vector.broadcast %cst_42 : f32 to vector<16x8xf32>
    %112 = arith.divf %111, %110 : vector<16x8xf32>
    %113 = tpu.concatenate %34, %74, %112 in 1 : vector<16x8xf32>, vector<16x8xf32>, vector<16x8xf32> -> vector<16x24xf32>
    %cst_43 = arith.constant dense<0.000000e+00> : vector<16x96xf32>
    %114 = tpu.matmul %113, %10, %cst_43 {dimension_numbers = #tpu.dot_dimension_numbers<[1], [0], [0], [1], [0, 0, 1, 1], [], []>} : vector<16x24xf32>, vector<24x96xf32>, vector<16x96xf32> -> vector<16x96xf32>
    %115 = vector.broadcast %12 : vector<1x96xf32> to vector<16x96xf32>
    %116 = arith.addf %114, %115 : vector<16x96xf32>
    %c1 = arith.constant 1 : index
    %c0_44 = arith.constant 0 : index
    %c0_45 = arith.constant 0 : index
    %117 = vector.load %arg0[%c1, %c0_44, %c0_45] : memref<2x16x8xf32, #tpu.memory_space<vmem>>, vector<1x16x8xf32>
    %118 = vector.shape_cast %117 : vector<1x16x8xf32> to vector<16x8xf32>
    %119 = tpu.concatenate %18, %118, %18 in 0 : vector<3x8xf32>, vector<16x8xf32>, vector<3x8xf32> -> vector<22x8xf32>
    %120 = vector.extract_strided_slice %119 {offsets = [0, 0], sizes = [16, 8], strides = [1, 1]} : vector<22x8xf32> to vector<16x8xf32>
    %121 = vector.extract_strided_slice %119 {offsets = [1, 0], sizes = [16, 8], strides = [1, 1]} : vector<22x8xf32> to vector<16x8xf32>
    %122 = vector.extract_strided_slice %119 {offsets = [2, 0], sizes = [16, 8], strides = [1, 1]} : vector<22x8xf32> to vector<16x8xf32>
    %123 = vector.extract_strided_slice %119 {offsets = [3, 0], sizes = [16, 8], strides = [1, 1]} : vector<22x8xf32> to vector<16x8xf32>
    %124 = vector.extract_strided_slice %119 {offsets = [4, 0], sizes = [16, 8], strides = [1, 1]} : vector<22x8xf32> to vector<16x8xf32>
    %125 = vector.extract_strided_slice %119 {offsets = [5, 0], sizes = [16, 8], strides = [1, 1]} : vector<22x8xf32> to vector<16x8xf32>
    %126 = vector.extract_strided_slice %119 {offsets = [6, 0], sizes = [16, 8], strides = [1, 1]} : vector<22x8xf32> to vector<16x8xf32>
    %127 = tpu.concatenate %120, %121, %122, %123, %124, %125, %126 in 1 : vector<16x8xf32>, vector<16x8xf32>, vector<16x8xf32>, vector<16x8xf32>, vector<16x8xf32>, vector<16x8xf32>, vector<16x8xf32> -> vector<16x56xf32>
    %cst_46 = arith.constant dense<0.000000e+00> : vector<16x8xf32>
    %128 = tpu.matmul %127, %0, %cst_46 {dimension_numbers = #tpu.dot_dimension_numbers<[1], [0], [0], [1], [0, 0, 1, 1], [], []>} : vector<16x56xf32>, vector<56x8xf32>, vector<16x8xf32> -> vector<16x8xf32>
    %129 = vector.broadcast %1 : vector<1x8xf32> to vector<16x8xf32>
    %130 = arith.addf %128, %129 : vector<16x8xf32>
    %cst_47 = arith.constant 0.000000e+00 : f32
    %131 = vector.broadcast %cst_47 : f32 to vector<16x8xf32>
    %132 = arith.maximumf %130, %131 : vector<16x8xf32>
    %133 = tpu.transpose %132, [1, 0] : vector<16x8xf32> -> vector<8x16xf32>
    %cst_48 = arith.constant dense<0.000000e+00> : vector<8x64xf32>
    %134 = tpu.matmul %133, %2, %cst_48 {dimension_numbers = #tpu.dot_dimension_numbers<[1], [0], [0], [1], [0, 0, 1, 1], [], []>} : vector<8x16xf32>, vector<16x64xf32>, vector<8x64xf32> -> vector<8x64xf32>
    %135 = vector.extract_strided_slice %134 {offsets = [0, 0], sizes = [8, 32], strides = [1, 1]} : vector<8x64xf32> to vector<8x32xf32>
    %136 = vector.extract_strided_slice %134 {offsets = [0, 32], sizes = [8, 32], strides = [1, 1]} : vector<8x64xf32> to vector<8x32xf32>
    %137 = vector.shape_cast %135 : vector<8x32xf32> to vector<8x1x32xf32>
    %138 = vector.shape_cast %136 : vector<8x32xf32> to vector<1x8x32xf32>
    %139 = vector.broadcast %137 : vector<8x1x32xf32> to vector<8x8x32xf32>
    %140 = vector.broadcast %138 : vector<1x8x32xf32> to vector<8x8x32xf32>
    %141 = arith.addf %139, %140 : vector<8x8x32xf32>
    %142 = vector.shape_cast %3 : vector<1x32xf32> to vector<1x1x32xf32>
    %143 = vector.broadcast %142 : vector<1x1x32xf32> to vector<8x8x32xf32>
    %144 = arith.addf %141, %143 : vector<8x8x32xf32>
    %cst_49 = arith.constant 0.000000e+00 : f32
    %145 = vector.broadcast %cst_49 : f32 to vector<8x8x32xf32>
    %146 = arith.cmpf oge, %144, %145 : vector<8x8x32xf32>
    %cst_50 = arith.constant 2.000000e-01 : f32
    %147 = vector.broadcast %cst_50 : f32 to vector<8x8x32xf32>
    %148 = arith.mulf %147, %144 : vector<8x8x32xf32>
    %149 = arith.select %146, %144, %148 : vector<8x8x32xi1>, vector<8x8x32xf32>
    %150 = vector.shape_cast %4 : vector<1x32xf32> to vector<1x1x32xf32>
    %151 = vector.broadcast %150 : vector<1x1x32xf32> to vector<8x8x32xf32>
    %152 = arith.mulf %149, %151 : vector<8x8x32xf32>
    %cst_51 = arith.constant dense<0.000000e+00> : vector<8x8xf32>
    %153 = vector.multi_reduction <add>, %152, %cst_51 [2] : vector<8x8x32xf32> to vector<8x8xf32>
    %154 = arith.addf %153, %5 : vector<8x8xf32>
    %cst_52 = arith.constant dense<0xFF800000> : vector<8xf32>
    %155 = vector.multi_reduction <maximumf>, %154, %cst_52 [1] : vector<8x8xf32> to vector<8xf32>
    %156 = vector.shape_cast %155 : vector<8xf32> to vector<8x1xf32>
    %157 = vector.broadcast %156 : vector<8x1xf32> to vector<8x8xf32>
    %158 = arith.subf %154, %157 : vector<8x8xf32>
    %159 = math.exp %158 : vector<8x8xf32>
    %cst_53 = arith.constant dense<0.000000e+00> : vector<8xf32>
    %160 = vector.multi_reduction <add>, %159, %cst_53 [1] : vector<8x8xf32> to vector<8xf32>
    %161 = vector.shape_cast %160 : vector<8xf32> to vector<8x1xf32>
    %162 = vector.broadcast %161 : vector<8x1xf32> to vector<8x8xf32>
    %163 = arith.divf %159, %162 : vector<8x8xf32>
    %164 = tpu.transpose %163, [1, 0] : vector<8x8xf32> -> vector<8x8xf32>
    %cst_54 = arith.constant dense<0.000000e+00> : vector<16x8xf32>
    %165 = tpu.matmul %132, %164, %cst_54 {dimension_numbers = #tpu.dot_dimension_numbers<[1], [0], [0], [1], [0, 0, 1, 1], [], []>} : vector<16x8xf32>, vector<8x8xf32>, vector<16x8xf32> -> vector<16x8xf32>
    %cst_55 = arith.constant 0.000000e+00 : f32
    %166 = vector.broadcast %cst_55 : f32 to vector<16x8xf32>
    %167 = arith.subf %166, %165 : vector<16x8xf32>
    %168 = math.exp %167 : vector<16x8xf32>
    %cst_56 = arith.constant 1.000000e+00 : f32
    %169 = vector.broadcast %cst_56 : f32 to vector<16x8xf32>
    %170 = arith.addf %169, %168 : vector<16x8xf32>
    %cst_57 = arith.constant 1.000000e+00 : f32
    %171 = vector.broadcast %cst_57 : f32 to vector<16x8xf32>
    %172 = arith.divf %171, %170 : vector<16x8xf32>
    %cst_58 = arith.constant dense<0.000000e+00> : vector<16x32xf32>
    %173 = tpu.matmul %132, %6, %cst_58 {dimension_numbers = #tpu.dot_dimension_numbers<[1], [0], [0], [1], [0, 0, 1, 1], [], []>} : vector<16x8xf32>, vector<8x32xf32>, vector<16x32xf32> -> vector<16x32xf32>
    %174 = vector.extract_strided_slice %173 {offsets = [0, 0], sizes = [16, 16], strides = [1, 1]} : vector<16x32xf32> to vector<16x16xf32>
    %175 = vector.extract_strided_slice %173 {offsets = [0, 16], sizes = [16, 16], strides = [1, 1]} : vector<16x32xf32> to vector<16x16xf32>
    %176 = vector.shape_cast %174 : vector<16x16xf32> to vector<16x1x16xf32>
    %177 = vector.shape_cast %175 : vector<16x16xf32> to vector<1x16x16xf32>
    %178 = vector.broadcast %176 : vector<16x1x16xf32> to vector<16x16x16xf32>
    %179 = vector.broadcast %177 : vector<1x16x16xf32> to vector<16x16x16xf32>
    %180 = arith.addf %178, %179 : vector<16x16x16xf32>
    %181 = vector.shape_cast %7 : vector<1x16xf32> to vector<1x1x16xf32>
    %182 = vector.broadcast %181 : vector<1x1x16xf32> to vector<16x16x16xf32>
    %183 = arith.addf %180, %182 : vector<16x16x16xf32>
    %cst_59 = arith.constant 0.000000e+00 : f32
    %184 = vector.broadcast %cst_59 : f32 to vector<16x16x16xf32>
    %185 = arith.cmpf oge, %183, %184 : vector<16x16x16xf32>
    %cst_60 = arith.constant 2.000000e-01 : f32
    %186 = vector.broadcast %cst_60 : f32 to vector<16x16x16xf32>
    %187 = arith.mulf %186, %183 : vector<16x16x16xf32>
    %188 = arith.select %185, %183, %187 : vector<16x16x16xi1>, vector<16x16x16xf32>
    %189 = vector.shape_cast %8 : vector<1x16xf32> to vector<1x1x16xf32>
    %190 = vector.broadcast %189 : vector<1x1x16xf32> to vector<16x16x16xf32>
    %191 = arith.mulf %188, %190 : vector<16x16x16xf32>
    %cst_61 = arith.constant dense<0.000000e+00> : vector<16x16xf32>
    %192 = vector.multi_reduction <add>, %191, %cst_61 [2] : vector<16x16x16xf32> to vector<16x16xf32>
    %193 = arith.addf %192, %9 : vector<16x16xf32>
    %cst_62 = arith.constant dense<0xFF800000> : vector<16xf32>
    %194 = vector.multi_reduction <maximumf>, %193, %cst_62 [1] : vector<16x16xf32> to vector<16xf32>
    %195 = vector.shape_cast %194 : vector<16xf32> to vector<16x1xf32>
    %196 = vector.broadcast %195 : vector<16x1xf32> to vector<16x16xf32>
    %197 = arith.subf %193, %196 : vector<16x16xf32>
    %198 = math.exp %197 : vector<16x16xf32>
    %cst_63 = arith.constant dense<0.000000e+00> : vector<16xf32>
    %199 = vector.multi_reduction <add>, %198, %cst_63 [1] : vector<16x16xf32> to vector<16xf32>
    %200 = vector.shape_cast %199 : vector<16xf32> to vector<16x1xf32>
    %201 = vector.broadcast %200 : vector<16x1xf32> to vector<16x16xf32>
    %202 = arith.divf %198, %201 : vector<16x16xf32>
    %cst_64 = arith.constant dense<0.000000e+00> : vector<16x8xf32>
    %203 = tpu.matmul %202, %132, %cst_64 {dimension_numbers = #tpu.dot_dimension_numbers<[1], [0], [0], [1], [0, 0, 1, 1], [], []>} : vector<16x16xf32>, vector<16x8xf32>, vector<16x8xf32> -> vector<16x8xf32>
    %cst_65 = arith.constant 0.000000e+00 : f32
    %204 = vector.broadcast %cst_65 : f32 to vector<16x8xf32>
    %205 = arith.subf %204, %203 : vector<16x8xf32>
    %206 = math.exp %205 : vector<16x8xf32>
    %cst_66 = arith.constant 1.000000e+00 : f32
    %207 = vector.broadcast %cst_66 : f32 to vector<16x8xf32>
    %208 = arith.addf %207, %206 : vector<16x8xf32>
    %cst_67 = arith.constant 1.000000e+00 : f32
    %209 = vector.broadcast %cst_67 : f32 to vector<16x8xf32>
    %210 = arith.divf %209, %208 : vector<16x8xf32>
    %211 = tpu.concatenate %132, %172, %210 in 1 : vector<16x8xf32>, vector<16x8xf32>, vector<16x8xf32> -> vector<16x24xf32>
    %cst_68 = arith.constant dense<0.000000e+00> : vector<16x96xf32>
    %212 = tpu.matmul %211, %10, %cst_68 {dimension_numbers = #tpu.dot_dimension_numbers<[1], [0], [0], [1], [0, 0, 1, 1], [], []>} : vector<16x24xf32>, vector<24x96xf32>, vector<16x96xf32> -> vector<16x96xf32>
    %213 = vector.broadcast %12 : vector<1x96xf32> to vector<16x96xf32>
    %214 = arith.addf %212, %213 : vector<16x96xf32>
    %cst_69 = arith.constant 0.000000e+00 : f32
    %215 = vector.broadcast %cst_69 : f32 to vector<2x32xf32>
    %216 = vector.extract_strided_slice %116 {offsets = [0, 0], sizes = [1, 96], strides = [1, 1]} : vector<16x96xf32> to vector<1x96xf32>
    %217 = vector.extract_strided_slice %214 {offsets = [0, 0], sizes = [1, 96], strides = [1, 1]} : vector<16x96xf32> to vector<1x96xf32>
    %218 = tpu.concatenate %216, %217 in 0 : vector<1x96xf32>, vector<1x96xf32> -> vector<2x96xf32>
    %cst_70 = arith.constant dense<0.000000e+00> : vector<2x96xf32>
    %219 = tpu.matmul %215, %11, %cst_70 {dimension_numbers = #tpu.dot_dimension_numbers<[1], [0], [0], [1], [0, 0, 1, 1], [], []>} : vector<2x32xf32>, vector<32x96xf32>, vector<2x96xf32> -> vector<2x96xf32>
    %220 = vector.broadcast %13 : vector<1x96xf32> to vector<2x96xf32>
    %221 = arith.addf %219, %220 : vector<2x96xf32>
    %222 = vector.extract_strided_slice %218 {offsets = [0, 0], sizes = [2, 64], strides = [1, 1]} : vector<2x96xf32> to vector<2x64xf32>
    %223 = vector.extract_strided_slice %221 {offsets = [0, 0], sizes = [2, 64], strides = [1, 1]} : vector<2x96xf32> to vector<2x64xf32>
    %224 = arith.addf %222, %223 : vector<2x64xf32>
    %cst_71 = arith.constant 0.000000e+00 : f32
    %225 = vector.broadcast %cst_71 : f32 to vector<2x64xf32>
    %226 = arith.subf %225, %224 : vector<2x64xf32>
    %227 = math.exp %226 : vector<2x64xf32>
    %cst_72 = arith.constant 1.000000e+00 : f32
    %228 = vector.broadcast %cst_72 : f32 to vector<2x64xf32>
    %229 = arith.addf %228, %227 : vector<2x64xf32>
    %cst_73 = arith.constant 1.000000e+00 : f32
    %230 = vector.broadcast %cst_73 : f32 to vector<2x64xf32>
    %231 = arith.divf %230, %229 : vector<2x64xf32>
    %232 = vector.extract_strided_slice %231 {offsets = [0, 0], sizes = [2, 32], strides = [1, 1]} : vector<2x64xf32> to vector<2x32xf32>
    %233 = vector.extract_strided_slice %231 {offsets = [0, 32], sizes = [2, 32], strides = [1, 1]} : vector<2x64xf32> to vector<2x32xf32>
    %234 = vector.extract_strided_slice %218 {offsets = [0, 64], sizes = [2, 32], strides = [1, 1]} : vector<2x96xf32> to vector<2x32xf32>
    %235 = vector.extract_strided_slice %221 {offsets = [0, 64], sizes = [2, 32], strides = [1, 1]} : vector<2x96xf32> to vector<2x32xf32>
    %236 = arith.mulf %232, %235 : vector<2x32xf32>
    %237 = arith.addf %234, %236 : vector<2x32xf32>
    %238 = math.tanh %237 : vector<2x32xf32>
    %cst_74 = arith.constant 1.000000e+00 : f32
    %239 = vector.broadcast %cst_74 : f32 to vector<2x32xf32>
    %240 = arith.subf %239, %233 : vector<2x32xf32>
    %241 = arith.mulf %240, %238 : vector<2x32xf32>
    %242 = arith.mulf %233, %215 : vector<2x32xf32>
    %243 = arith.addf %241, %242 : vector<2x32xf32>
    %244 = vector.extract_strided_slice %116 {offsets = [1, 0], sizes = [1, 96], strides = [1, 1]} : vector<16x96xf32> to vector<1x96xf32>
    %245 = vector.extract_strided_slice %214 {offsets = [1, 0], sizes = [1, 96], strides = [1, 1]} : vector<16x96xf32> to vector<1x96xf32>
    %246 = tpu.concatenate %244, %245 in 0 : vector<1x96xf32>, vector<1x96xf32> -> vector<2x96xf32>
    %cst_75 = arith.constant dense<0.000000e+00> : vector<2x96xf32>
    %247 = tpu.matmul %243, %11, %cst_75 {dimension_numbers = #tpu.dot_dimension_numbers<[1], [0], [0], [1], [0, 0, 1, 1], [], []>} : vector<2x32xf32>, vector<32x96xf32>, vector<2x96xf32> -> vector<2x96xf32>
    %248 = vector.broadcast %13 : vector<1x96xf32> to vector<2x96xf32>
    %249 = arith.addf %247, %248 : vector<2x96xf32>
    %250 = vector.extract_strided_slice %246 {offsets = [0, 0], sizes = [2, 64], strides = [1, 1]} : vector<2x96xf32> to vector<2x64xf32>
    %251 = vector.extract_strided_slice %249 {offsets = [0, 0], sizes = [2, 64], strides = [1, 1]} : vector<2x96xf32> to vector<2x64xf32>
    %252 = arith.addf %250, %251 : vector<2x64xf32>
    %cst_76 = arith.constant 0.000000e+00 : f32
    %253 = vector.broadcast %cst_76 : f32 to vector<2x64xf32>
    %254 = arith.subf %253, %252 : vector<2x64xf32>
    %255 = math.exp %254 : vector<2x64xf32>
    %cst_77 = arith.constant 1.000000e+00 : f32
    %256 = vector.broadcast %cst_77 : f32 to vector<2x64xf32>
    %257 = arith.addf %256, %255 : vector<2x64xf32>
    %cst_78 = arith.constant 1.000000e+00 : f32
    %258 = vector.broadcast %cst_78 : f32 to vector<2x64xf32>
    %259 = arith.divf %258, %257 : vector<2x64xf32>
    %260 = vector.extract_strided_slice %259 {offsets = [0, 0], sizes = [2, 32], strides = [1, 1]} : vector<2x64xf32> to vector<2x32xf32>
    %261 = vector.extract_strided_slice %259 {offsets = [0, 32], sizes = [2, 32], strides = [1, 1]} : vector<2x64xf32> to vector<2x32xf32>
    %262 = vector.extract_strided_slice %246 {offsets = [0, 64], sizes = [2, 32], strides = [1, 1]} : vector<2x96xf32> to vector<2x32xf32>
    %263 = vector.extract_strided_slice %249 {offsets = [0, 64], sizes = [2, 32], strides = [1, 1]} : vector<2x96xf32> to vector<2x32xf32>
    %264 = arith.mulf %260, %263 : vector<2x32xf32>
    %265 = arith.addf %262, %264 : vector<2x32xf32>
    %266 = math.tanh %265 : vector<2x32xf32>
    %cst_79 = arith.constant 1.000000e+00 : f32
    %267 = vector.broadcast %cst_79 : f32 to vector<2x32xf32>
    %268 = arith.subf %267, %261 : vector<2x32xf32>
    %269 = arith.mulf %268, %266 : vector<2x32xf32>
    %270 = arith.mulf %261, %243 : vector<2x32xf32>
    %271 = arith.addf %269, %270 : vector<2x32xf32>
    %272 = vector.extract_strided_slice %116 {offsets = [2, 0], sizes = [1, 96], strides = [1, 1]} : vector<16x96xf32> to vector<1x96xf32>
    %273 = vector.extract_strided_slice %214 {offsets = [2, 0], sizes = [1, 96], strides = [1, 1]} : vector<16x96xf32> to vector<1x96xf32>
    %274 = tpu.concatenate %272, %273 in 0 : vector<1x96xf32>, vector<1x96xf32> -> vector<2x96xf32>
    %cst_80 = arith.constant dense<0.000000e+00> : vector<2x96xf32>
    %275 = tpu.matmul %271, %11, %cst_80 {dimension_numbers = #tpu.dot_dimension_numbers<[1], [0], [0], [1], [0, 0, 1, 1], [], []>} : vector<2x32xf32>, vector<32x96xf32>, vector<2x96xf32> -> vector<2x96xf32>
    %276 = vector.broadcast %13 : vector<1x96xf32> to vector<2x96xf32>
    %277 = arith.addf %275, %276 : vector<2x96xf32>
    %278 = vector.extract_strided_slice %274 {offsets = [0, 0], sizes = [2, 64], strides = [1, 1]} : vector<2x96xf32> to vector<2x64xf32>
    %279 = vector.extract_strided_slice %277 {offsets = [0, 0], sizes = [2, 64], strides = [1, 1]} : vector<2x96xf32> to vector<2x64xf32>
    %280 = arith.addf %278, %279 : vector<2x64xf32>
    %cst_81 = arith.constant 0.000000e+00 : f32
    %281 = vector.broadcast %cst_81 : f32 to vector<2x64xf32>
    %282 = arith.subf %281, %280 : vector<2x64xf32>
    %283 = math.exp %282 : vector<2x64xf32>
    %cst_82 = arith.constant 1.000000e+00 : f32
    %284 = vector.broadcast %cst_82 : f32 to vector<2x64xf32>
    %285 = arith.addf %284, %283 : vector<2x64xf32>
    %cst_83 = arith.constant 1.000000e+00 : f32
    %286 = vector.broadcast %cst_83 : f32 to vector<2x64xf32>
    %287 = arith.divf %286, %285 : vector<2x64xf32>
    %288 = vector.extract_strided_slice %287 {offsets = [0, 0], sizes = [2, 32], strides = [1, 1]} : vector<2x64xf32> to vector<2x32xf32>
    %289 = vector.extract_strided_slice %287 {offsets = [0, 32], sizes = [2, 32], strides = [1, 1]} : vector<2x64xf32> to vector<2x32xf32>
    %290 = vector.extract_strided_slice %274 {offsets = [0, 64], sizes = [2, 32], strides = [1, 1]} : vector<2x96xf32> to vector<2x32xf32>
    %291 = vector.extract_strided_slice %277 {offsets = [0, 64], sizes = [2, 32], strides = [1, 1]} : vector<2x96xf32> to vector<2x32xf32>
    %292 = arith.mulf %288, %291 : vector<2x32xf32>
    %293 = arith.addf %290, %292 : vector<2x32xf32>
    %294 = math.tanh %293 : vector<2x32xf32>
    %cst_84 = arith.constant 1.000000e+00 : f32
    %295 = vector.broadcast %cst_84 : f32 to vector<2x32xf32>
    %296 = arith.subf %295, %289 : vector<2x32xf32>
    %297 = arith.mulf %296, %294 : vector<2x32xf32>
    %298 = arith.mulf %289, %271 : vector<2x32xf32>
    %299 = arith.addf %297, %298 : vector<2x32xf32>
    %300 = vector.extract_strided_slice %116 {offsets = [3, 0], sizes = [1, 96], strides = [1, 1]} : vector<16x96xf32> to vector<1x96xf32>
    %301 = vector.extract_strided_slice %214 {offsets = [3, 0], sizes = [1, 96], strides = [1, 1]} : vector<16x96xf32> to vector<1x96xf32>
    %302 = tpu.concatenate %300, %301 in 0 : vector<1x96xf32>, vector<1x96xf32> -> vector<2x96xf32>
    %cst_85 = arith.constant dense<0.000000e+00> : vector<2x96xf32>
    %303 = tpu.matmul %299, %11, %cst_85 {dimension_numbers = #tpu.dot_dimension_numbers<[1], [0], [0], [1], [0, 0, 1, 1], [], []>} : vector<2x32xf32>, vector<32x96xf32>, vector<2x96xf32> -> vector<2x96xf32>
    %304 = vector.broadcast %13 : vector<1x96xf32> to vector<2x96xf32>
    %305 = arith.addf %303, %304 : vector<2x96xf32>
    %306 = vector.extract_strided_slice %302 {offsets = [0, 0], sizes = [2, 64], strides = [1, 1]} : vector<2x96xf32> to vector<2x64xf32>
    %307 = vector.extract_strided_slice %305 {offsets = [0, 0], sizes = [2, 64], strides = [1, 1]} : vector<2x96xf32> to vector<2x64xf32>
    %308 = arith.addf %306, %307 : vector<2x64xf32>
    %cst_86 = arith.constant 0.000000e+00 : f32
    %309 = vector.broadcast %cst_86 : f32 to vector<2x64xf32>
    %310 = arith.subf %309, %308 : vector<2x64xf32>
    %311 = math.exp %310 : vector<2x64xf32>
    %cst_87 = arith.constant 1.000000e+00 : f32
    %312 = vector.broadcast %cst_87 : f32 to vector<2x64xf32>
    %313 = arith.addf %312, %311 : vector<2x64xf32>
    %cst_88 = arith.constant 1.000000e+00 : f32
    %314 = vector.broadcast %cst_88 : f32 to vector<2x64xf32>
    %315 = arith.divf %314, %313 : vector<2x64xf32>
    %316 = vector.extract_strided_slice %315 {offsets = [0, 0], sizes = [2, 32], strides = [1, 1]} : vector<2x64xf32> to vector<2x32xf32>
    %317 = vector.extract_strided_slice %315 {offsets = [0, 32], sizes = [2, 32], strides = [1, 1]} : vector<2x64xf32> to vector<2x32xf32>
    %318 = vector.extract_strided_slice %302 {offsets = [0, 64], sizes = [2, 32], strides = [1, 1]} : vector<2x96xf32> to vector<2x32xf32>
    %319 = vector.extract_strided_slice %305 {offsets = [0, 64], sizes = [2, 32], strides = [1, 1]} : vector<2x96xf32> to vector<2x32xf32>
    %320 = arith.mulf %316, %319 : vector<2x32xf32>
    %321 = arith.addf %318, %320 : vector<2x32xf32>
    %322 = math.tanh %321 : vector<2x32xf32>
    %cst_89 = arith.constant 1.000000e+00 : f32
    %323 = vector.broadcast %cst_89 : f32 to vector<2x32xf32>
    %324 = arith.subf %323, %317 : vector<2x32xf32>
    %325 = arith.mulf %324, %322 : vector<2x32xf32>
    %326 = arith.mulf %317, %299 : vector<2x32xf32>
    %327 = arith.addf %325, %326 : vector<2x32xf32>
    %328 = vector.extract_strided_slice %116 {offsets = [4, 0], sizes = [1, 96], strides = [1, 1]} : vector<16x96xf32> to vector<1x96xf32>
    %329 = vector.extract_strided_slice %214 {offsets = [4, 0], sizes = [1, 96], strides = [1, 1]} : vector<16x96xf32> to vector<1x96xf32>
    %330 = tpu.concatenate %328, %329 in 0 : vector<1x96xf32>, vector<1x96xf32> -> vector<2x96xf32>
    %cst_90 = arith.constant dense<0.000000e+00> : vector<2x96xf32>
    %331 = tpu.matmul %327, %11, %cst_90 {dimension_numbers = #tpu.dot_dimension_numbers<[1], [0], [0], [1], [0, 0, 1, 1], [], []>} : vector<2x32xf32>, vector<32x96xf32>, vector<2x96xf32> -> vector<2x96xf32>
    %332 = vector.broadcast %13 : vector<1x96xf32> to vector<2x96xf32>
    %333 = arith.addf %331, %332 : vector<2x96xf32>
    %334 = vector.extract_strided_slice %330 {offsets = [0, 0], sizes = [2, 64], strides = [1, 1]} : vector<2x96xf32> to vector<2x64xf32>
    %335 = vector.extract_strided_slice %333 {offsets = [0, 0], sizes = [2, 64], strides = [1, 1]} : vector<2x96xf32> to vector<2x64xf32>
    %336 = arith.addf %334, %335 : vector<2x64xf32>
    %cst_91 = arith.constant 0.000000e+00 : f32
    %337 = vector.broadcast %cst_91 : f32 to vector<2x64xf32>
    %338 = arith.subf %337, %336 : vector<2x64xf32>
    %339 = math.exp %338 : vector<2x64xf32>
    %cst_92 = arith.constant 1.000000e+00 : f32
    %340 = vector.broadcast %cst_92 : f32 to vector<2x64xf32>
    %341 = arith.addf %340, %339 : vector<2x64xf32>
    %cst_93 = arith.constant 1.000000e+00 : f32
    %342 = vector.broadcast %cst_93 : f32 to vector<2x64xf32>
    %343 = arith.divf %342, %341 : vector<2x64xf32>
    %344 = vector.extract_strided_slice %343 {offsets = [0, 0], sizes = [2, 32], strides = [1, 1]} : vector<2x64xf32> to vector<2x32xf32>
    %345 = vector.extract_strided_slice %343 {offsets = [0, 32], sizes = [2, 32], strides = [1, 1]} : vector<2x64xf32> to vector<2x32xf32>
    %346 = vector.extract_strided_slice %330 {offsets = [0, 64], sizes = [2, 32], strides = [1, 1]} : vector<2x96xf32> to vector<2x32xf32>
    %347 = vector.extract_strided_slice %333 {offsets = [0, 64], sizes = [2, 32], strides = [1, 1]} : vector<2x96xf32> to vector<2x32xf32>
    %348 = arith.mulf %344, %347 : vector<2x32xf32>
    %349 = arith.addf %346, %348 : vector<2x32xf32>
    %350 = math.tanh %349 : vector<2x32xf32>
    %cst_94 = arith.constant 1.000000e+00 : f32
    %351 = vector.broadcast %cst_94 : f32 to vector<2x32xf32>
    %352 = arith.subf %351, %345 : vector<2x32xf32>
    %353 = arith.mulf %352, %350 : vector<2x32xf32>
    %354 = arith.mulf %345, %327 : vector<2x32xf32>
    %355 = arith.addf %353, %354 : vector<2x32xf32>
    %356 = vector.extract_strided_slice %116 {offsets = [5, 0], sizes = [1, 96], strides = [1, 1]} : vector<16x96xf32> to vector<1x96xf32>
    %357 = vector.extract_strided_slice %214 {offsets = [5, 0], sizes = [1, 96], strides = [1, 1]} : vector<16x96xf32> to vector<1x96xf32>
    %358 = tpu.concatenate %356, %357 in 0 : vector<1x96xf32>, vector<1x96xf32> -> vector<2x96xf32>
    %cst_95 = arith.constant dense<0.000000e+00> : vector<2x96xf32>
    %359 = tpu.matmul %355, %11, %cst_95 {dimension_numbers = #tpu.dot_dimension_numbers<[1], [0], [0], [1], [0, 0, 1, 1], [], []>} : vector<2x32xf32>, vector<32x96xf32>, vector<2x96xf32> -> vector<2x96xf32>
    %360 = vector.broadcast %13 : vector<1x96xf32> to vector<2x96xf32>
    %361 = arith.addf %359, %360 : vector<2x96xf32>
    %362 = vector.extract_strided_slice %358 {offsets = [0, 0], sizes = [2, 64], strides = [1, 1]} : vector<2x96xf32> to vector<2x64xf32>
    %363 = vector.extract_strided_slice %361 {offsets = [0, 0], sizes = [2, 64], strides = [1, 1]} : vector<2x96xf32> to vector<2x64xf32>
    %364 = arith.addf %362, %363 : vector<2x64xf32>
    %cst_96 = arith.constant 0.000000e+00 : f32
    %365 = vector.broadcast %cst_96 : f32 to vector<2x64xf32>
    %366 = arith.subf %365, %364 : vector<2x64xf32>
    %367 = math.exp %366 : vector<2x64xf32>
    %cst_97 = arith.constant 1.000000e+00 : f32
    %368 = vector.broadcast %cst_97 : f32 to vector<2x64xf32>
    %369 = arith.addf %368, %367 : vector<2x64xf32>
    %cst_98 = arith.constant 1.000000e+00 : f32
    %370 = vector.broadcast %cst_98 : f32 to vector<2x64xf32>
    %371 = arith.divf %370, %369 : vector<2x64xf32>
    %372 = vector.extract_strided_slice %371 {offsets = [0, 0], sizes = [2, 32], strides = [1, 1]} : vector<2x64xf32> to vector<2x32xf32>
    %373 = vector.extract_strided_slice %371 {offsets = [0, 32], sizes = [2, 32], strides = [1, 1]} : vector<2x64xf32> to vector<2x32xf32>
    %374 = vector.extract_strided_slice %358 {offsets = [0, 64], sizes = [2, 32], strides = [1, 1]} : vector<2x96xf32> to vector<2x32xf32>
    %375 = vector.extract_strided_slice %361 {offsets = [0, 64], sizes = [2, 32], strides = [1, 1]} : vector<2x96xf32> to vector<2x32xf32>
    %376 = arith.mulf %372, %375 : vector<2x32xf32>
    %377 = arith.addf %374, %376 : vector<2x32xf32>
    %378 = math.tanh %377 : vector<2x32xf32>
    %cst_99 = arith.constant 1.000000e+00 : f32
    %379 = vector.broadcast %cst_99 : f32 to vector<2x32xf32>
    %380 = arith.subf %379, %373 : vector<2x32xf32>
    %381 = arith.mulf %380, %378 : vector<2x32xf32>
    %382 = arith.mulf %373, %355 : vector<2x32xf32>
    %383 = arith.addf %381, %382 : vector<2x32xf32>
    %384 = vector.extract_strided_slice %116 {offsets = [6, 0], sizes = [1, 96], strides = [1, 1]} : vector<16x96xf32> to vector<1x96xf32>
    %385 = vector.extract_strided_slice %214 {offsets = [6, 0], sizes = [1, 96], strides = [1, 1]} : vector<16x96xf32> to vector<1x96xf32>
    %386 = tpu.concatenate %384, %385 in 0 : vector<1x96xf32>, vector<1x96xf32> -> vector<2x96xf32>
    %cst_100 = arith.constant dense<0.000000e+00> : vector<2x96xf32>
    %387 = tpu.matmul %383, %11, %cst_100 {dimension_numbers = #tpu.dot_dimension_numbers<[1], [0], [0], [1], [0, 0, 1, 1], [], []>} : vector<2x32xf32>, vector<32x96xf32>, vector<2x96xf32> -> vector<2x96xf32>
    %388 = vector.broadcast %13 : vector<1x96xf32> to vector<2x96xf32>
    %389 = arith.addf %387, %388 : vector<2x96xf32>
    %390 = vector.extract_strided_slice %386 {offsets = [0, 0], sizes = [2, 64], strides = [1, 1]} : vector<2x96xf32> to vector<2x64xf32>
    %391 = vector.extract_strided_slice %389 {offsets = [0, 0], sizes = [2, 64], strides = [1, 1]} : vector<2x96xf32> to vector<2x64xf32>
    %392 = arith.addf %390, %391 : vector<2x64xf32>
    %cst_101 = arith.constant 0.000000e+00 : f32
    %393 = vector.broadcast %cst_101 : f32 to vector<2x64xf32>
    %394 = arith.subf %393, %392 : vector<2x64xf32>
    %395 = math.exp %394 : vector<2x64xf32>
    %cst_102 = arith.constant 1.000000e+00 : f32
    %396 = vector.broadcast %cst_102 : f32 to vector<2x64xf32>
    %397 = arith.addf %396, %395 : vector<2x64xf32>
    %cst_103 = arith.constant 1.000000e+00 : f32
    %398 = vector.broadcast %cst_103 : f32 to vector<2x64xf32>
    %399 = arith.divf %398, %397 : vector<2x64xf32>
    %400 = vector.extract_strided_slice %399 {offsets = [0, 0], sizes = [2, 32], strides = [1, 1]} : vector<2x64xf32> to vector<2x32xf32>
    %401 = vector.extract_strided_slice %399 {offsets = [0, 32], sizes = [2, 32], strides = [1, 1]} : vector<2x64xf32> to vector<2x32xf32>
    %402 = vector.extract_strided_slice %386 {offsets = [0, 64], sizes = [2, 32], strides = [1, 1]} : vector<2x96xf32> to vector<2x32xf32>
    %403 = vector.extract_strided_slice %389 {offsets = [0, 64], sizes = [2, 32], strides = [1, 1]} : vector<2x96xf32> to vector<2x32xf32>
    %404 = arith.mulf %400, %403 : vector<2x32xf32>
    %405 = arith.addf %402, %404 : vector<2x32xf32>
    %406 = math.tanh %405 : vector<2x32xf32>
    %cst_104 = arith.constant 1.000000e+00 : f32
    %407 = vector.broadcast %cst_104 : f32 to vector<2x32xf32>
    %408 = arith.subf %407, %401 : vector<2x32xf32>
    %409 = arith.mulf %408, %406 : vector<2x32xf32>
    %410 = arith.mulf %401, %383 : vector<2x32xf32>
    %411 = arith.addf %409, %410 : vector<2x32xf32>
    %412 = vector.extract_strided_slice %116 {offsets = [7, 0], sizes = [1, 96], strides = [1, 1]} : vector<16x96xf32> to vector<1x96xf32>
    %413 = vector.extract_strided_slice %214 {offsets = [7, 0], sizes = [1, 96], strides = [1, 1]} : vector<16x96xf32> to vector<1x96xf32>
    %414 = tpu.concatenate %412, %413 in 0 : vector<1x96xf32>, vector<1x96xf32> -> vector<2x96xf32>
    %cst_105 = arith.constant dense<0.000000e+00> : vector<2x96xf32>
    %415 = tpu.matmul %411, %11, %cst_105 {dimension_numbers = #tpu.dot_dimension_numbers<[1], [0], [0], [1], [0, 0, 1, 1], [], []>} : vector<2x32xf32>, vector<32x96xf32>, vector<2x96xf32> -> vector<2x96xf32>
    %416 = vector.broadcast %13 : vector<1x96xf32> to vector<2x96xf32>
    %417 = arith.addf %415, %416 : vector<2x96xf32>
    %418 = vector.extract_strided_slice %414 {offsets = [0, 0], sizes = [2, 64], strides = [1, 1]} : vector<2x96xf32> to vector<2x64xf32>
    %419 = vector.extract_strided_slice %417 {offsets = [0, 0], sizes = [2, 64], strides = [1, 1]} : vector<2x96xf32> to vector<2x64xf32>
    %420 = arith.addf %418, %419 : vector<2x64xf32>
    %cst_106 = arith.constant 0.000000e+00 : f32
    %421 = vector.broadcast %cst_106 : f32 to vector<2x64xf32>
    %422 = arith.subf %421, %420 : vector<2x64xf32>
    %423 = math.exp %422 : vector<2x64xf32>
    %cst_107 = arith.constant 1.000000e+00 : f32
    %424 = vector.broadcast %cst_107 : f32 to vector<2x64xf32>
    %425 = arith.addf %424, %423 : vector<2x64xf32>
    %cst_108 = arith.constant 1.000000e+00 : f32
    %426 = vector.broadcast %cst_108 : f32 to vector<2x64xf32>
    %427 = arith.divf %426, %425 : vector<2x64xf32>
    %428 = vector.extract_strided_slice %427 {offsets = [0, 0], sizes = [2, 32], strides = [1, 1]} : vector<2x64xf32> to vector<2x32xf32>
    %429 = vector.extract_strided_slice %427 {offsets = [0, 32], sizes = [2, 32], strides = [1, 1]} : vector<2x64xf32> to vector<2x32xf32>
    %430 = vector.extract_strided_slice %414 {offsets = [0, 64], sizes = [2, 32], strides = [1, 1]} : vector<2x96xf32> to vector<2x32xf32>
    %431 = vector.extract_strided_slice %417 {offsets = [0, 64], sizes = [2, 32], strides = [1, 1]} : vector<2x96xf32> to vector<2x32xf32>
    %432 = arith.mulf %428, %431 : vector<2x32xf32>
    %433 = arith.addf %430, %432 : vector<2x32xf32>
    %434 = math.tanh %433 : vector<2x32xf32>
    %cst_109 = arith.constant 1.000000e+00 : f32
    %435 = vector.broadcast %cst_109 : f32 to vector<2x32xf32>
    %436 = arith.subf %435, %429 : vector<2x32xf32>
    %437 = arith.mulf %436, %434 : vector<2x32xf32>
    %438 = arith.mulf %429, %411 : vector<2x32xf32>
    %439 = arith.addf %437, %438 : vector<2x32xf32>
    %440 = vector.extract_strided_slice %116 {offsets = [8, 0], sizes = [1, 96], strides = [1, 1]} : vector<16x96xf32> to vector<1x96xf32>
    %441 = vector.extract_strided_slice %214 {offsets = [8, 0], sizes = [1, 96], strides = [1, 1]} : vector<16x96xf32> to vector<1x96xf32>
    %442 = tpu.concatenate %440, %441 in 0 : vector<1x96xf32>, vector<1x96xf32> -> vector<2x96xf32>
    %cst_110 = arith.constant dense<0.000000e+00> : vector<2x96xf32>
    %443 = tpu.matmul %439, %11, %cst_110 {dimension_numbers = #tpu.dot_dimension_numbers<[1], [0], [0], [1], [0, 0, 1, 1], [], []>} : vector<2x32xf32>, vector<32x96xf32>, vector<2x96xf32> -> vector<2x96xf32>
    %444 = vector.broadcast %13 : vector<1x96xf32> to vector<2x96xf32>
    %445 = arith.addf %443, %444 : vector<2x96xf32>
    %446 = vector.extract_strided_slice %442 {offsets = [0, 0], sizes = [2, 64], strides = [1, 1]} : vector<2x96xf32> to vector<2x64xf32>
    %447 = vector.extract_strided_slice %445 {offsets = [0, 0], sizes = [2, 64], strides = [1, 1]} : vector<2x96xf32> to vector<2x64xf32>
    %448 = arith.addf %446, %447 : vector<2x64xf32>
    %cst_111 = arith.constant 0.000000e+00 : f32
    %449 = vector.broadcast %cst_111 : f32 to vector<2x64xf32>
    %450 = arith.subf %449, %448 : vector<2x64xf32>
    %451 = math.exp %450 : vector<2x64xf32>
    %cst_112 = arith.constant 1.000000e+00 : f32
    %452 = vector.broadcast %cst_112 : f32 to vector<2x64xf32>
    %453 = arith.addf %452, %451 : vector<2x64xf32>
    %cst_113 = arith.constant 1.000000e+00 : f32
    %454 = vector.broadcast %cst_113 : f32 to vector<2x64xf32>
    %455 = arith.divf %454, %453 : vector<2x64xf32>
    %456 = vector.extract_strided_slice %455 {offsets = [0, 0], sizes = [2, 32], strides = [1, 1]} : vector<2x64xf32> to vector<2x32xf32>
    %457 = vector.extract_strided_slice %455 {offsets = [0, 32], sizes = [2, 32], strides = [1, 1]} : vector<2x64xf32> to vector<2x32xf32>
    %458 = vector.extract_strided_slice %442 {offsets = [0, 64], sizes = [2, 32], strides = [1, 1]} : vector<2x96xf32> to vector<2x32xf32>
    %459 = vector.extract_strided_slice %445 {offsets = [0, 64], sizes = [2, 32], strides = [1, 1]} : vector<2x96xf32> to vector<2x32xf32>
    %460 = arith.mulf %456, %459 : vector<2x32xf32>
    %461 = arith.addf %458, %460 : vector<2x32xf32>
    %462 = math.tanh %461 : vector<2x32xf32>
    %cst_114 = arith.constant 1.000000e+00 : f32
    %463 = vector.broadcast %cst_114 : f32 to vector<2x32xf32>
    %464 = arith.subf %463, %457 : vector<2x32xf32>
    %465 = arith.mulf %464, %462 : vector<2x32xf32>
    %466 = arith.mulf %457, %439 : vector<2x32xf32>
    %467 = arith.addf %465, %466 : vector<2x32xf32>
    %468 = vector.extract_strided_slice %116 {offsets = [9, 0], sizes = [1, 96], strides = [1, 1]} : vector<16x96xf32> to vector<1x96xf32>
    %469 = vector.extract_strided_slice %214 {offsets = [9, 0], sizes = [1, 96], strides = [1, 1]} : vector<16x96xf32> to vector<1x96xf32>
    %470 = tpu.concatenate %468, %469 in 0 : vector<1x96xf32>, vector<1x96xf32> -> vector<2x96xf32>
    %cst_115 = arith.constant dense<0.000000e+00> : vector<2x96xf32>
    %471 = tpu.matmul %467, %11, %cst_115 {dimension_numbers = #tpu.dot_dimension_numbers<[1], [0], [0], [1], [0, 0, 1, 1], [], []>} : vector<2x32xf32>, vector<32x96xf32>, vector<2x96xf32> -> vector<2x96xf32>
    %472 = vector.broadcast %13 : vector<1x96xf32> to vector<2x96xf32>
    %473 = arith.addf %471, %472 : vector<2x96xf32>
    %474 = vector.extract_strided_slice %470 {offsets = [0, 0], sizes = [2, 64], strides = [1, 1]} : vector<2x96xf32> to vector<2x64xf32>
    %475 = vector.extract_strided_slice %473 {offsets = [0, 0], sizes = [2, 64], strides = [1, 1]} : vector<2x96xf32> to vector<2x64xf32>
    %476 = arith.addf %474, %475 : vector<2x64xf32>
    %cst_116 = arith.constant 0.000000e+00 : f32
    %477 = vector.broadcast %cst_116 : f32 to vector<2x64xf32>
    %478 = arith.subf %477, %476 : vector<2x64xf32>
    %479 = math.exp %478 : vector<2x64xf32>
    %cst_117 = arith.constant 1.000000e+00 : f32
    %480 = vector.broadcast %cst_117 : f32 to vector<2x64xf32>
    %481 = arith.addf %480, %479 : vector<2x64xf32>
    %cst_118 = arith.constant 1.000000e+00 : f32
    %482 = vector.broadcast %cst_118 : f32 to vector<2x64xf32>
    %483 = arith.divf %482, %481 : vector<2x64xf32>
    %484 = vector.extract_strided_slice %483 {offsets = [0, 0], sizes = [2, 32], strides = [1, 1]} : vector<2x64xf32> to vector<2x32xf32>
    %485 = vector.extract_strided_slice %483 {offsets = [0, 32], sizes = [2, 32], strides = [1, 1]} : vector<2x64xf32> to vector<2x32xf32>
    %486 = vector.extract_strided_slice %470 {offsets = [0, 64], sizes = [2, 32], strides = [1, 1]} : vector<2x96xf32> to vector<2x32xf32>
    %487 = vector.extract_strided_slice %473 {offsets = [0, 64], sizes = [2, 32], strides = [1, 1]} : vector<2x96xf32> to vector<2x32xf32>
    %488 = arith.mulf %484, %487 : vector<2x32xf32>
    %489 = arith.addf %486, %488 : vector<2x32xf32>
    %490 = math.tanh %489 : vector<2x32xf32>
    %cst_119 = arith.constant 1.000000e+00 : f32
    %491 = vector.broadcast %cst_119 : f32 to vector<2x32xf32>
    %492 = arith.subf %491, %485 : vector<2x32xf32>
    %493 = arith.mulf %492, %490 : vector<2x32xf32>
    %494 = arith.mulf %485, %467 : vector<2x32xf32>
    %495 = arith.addf %493, %494 : vector<2x32xf32>
    %496 = vector.extract_strided_slice %116 {offsets = [10, 0], sizes = [1, 96], strides = [1, 1]} : vector<16x96xf32> to vector<1x96xf32>
    %497 = vector.extract_strided_slice %214 {offsets = [10, 0], sizes = [1, 96], strides = [1, 1]} : vector<16x96xf32> to vector<1x96xf32>
    %498 = tpu.concatenate %496, %497 in 0 : vector<1x96xf32>, vector<1x96xf32> -> vector<2x96xf32>
    %cst_120 = arith.constant dense<0.000000e+00> : vector<2x96xf32>
    %499 = tpu.matmul %495, %11, %cst_120 {dimension_numbers = #tpu.dot_dimension_numbers<[1], [0], [0], [1], [0, 0, 1, 1], [], []>} : vector<2x32xf32>, vector<32x96xf32>, vector<2x96xf32> -> vector<2x96xf32>
    %500 = vector.broadcast %13 : vector<1x96xf32> to vector<2x96xf32>
    %501 = arith.addf %499, %500 : vector<2x96xf32>
    %502 = vector.extract_strided_slice %498 {offsets = [0, 0], sizes = [2, 64], strides = [1, 1]} : vector<2x96xf32> to vector<2x64xf32>
    %503 = vector.extract_strided_slice %501 {offsets = [0, 0], sizes = [2, 64], strides = [1, 1]} : vector<2x96xf32> to vector<2x64xf32>
    %504 = arith.addf %502, %503 : vector<2x64xf32>
    %cst_121 = arith.constant 0.000000e+00 : f32
    %505 = vector.broadcast %cst_121 : f32 to vector<2x64xf32>
    %506 = arith.subf %505, %504 : vector<2x64xf32>
    %507 = math.exp %506 : vector<2x64xf32>
    %cst_122 = arith.constant 1.000000e+00 : f32
    %508 = vector.broadcast %cst_122 : f32 to vector<2x64xf32>
    %509 = arith.addf %508, %507 : vector<2x64xf32>
    %cst_123 = arith.constant 1.000000e+00 : f32
    %510 = vector.broadcast %cst_123 : f32 to vector<2x64xf32>
    %511 = arith.divf %510, %509 : vector<2x64xf32>
    %512 = vector.extract_strided_slice %511 {offsets = [0, 0], sizes = [2, 32], strides = [1, 1]} : vector<2x64xf32> to vector<2x32xf32>
    %513 = vector.extract_strided_slice %511 {offsets = [0, 32], sizes = [2, 32], strides = [1, 1]} : vector<2x64xf32> to vector<2x32xf32>
    %514 = vector.extract_strided_slice %498 {offsets = [0, 64], sizes = [2, 32], strides = [1, 1]} : vector<2x96xf32> to vector<2x32xf32>
    %515 = vector.extract_strided_slice %501 {offsets = [0, 64], sizes = [2, 32], strides = [1, 1]} : vector<2x96xf32> to vector<2x32xf32>
    %516 = arith.mulf %512, %515 : vector<2x32xf32>
    %517 = arith.addf %514, %516 : vector<2x32xf32>
    %518 = math.tanh %517 : vector<2x32xf32>
    %cst_124 = arith.constant 1.000000e+00 : f32
    %519 = vector.broadcast %cst_124 : f32 to vector<2x32xf32>
    %520 = arith.subf %519, %513 : vector<2x32xf32>
    %521 = arith.mulf %520, %518 : vector<2x32xf32>
    %522 = arith.mulf %513, %495 : vector<2x32xf32>
    %523 = arith.addf %521, %522 : vector<2x32xf32>
    %524 = vector.extract_strided_slice %116 {offsets = [11, 0], sizes = [1, 96], strides = [1, 1]} : vector<16x96xf32> to vector<1x96xf32>
    %525 = vector.extract_strided_slice %214 {offsets = [11, 0], sizes = [1, 96], strides = [1, 1]} : vector<16x96xf32> to vector<1x96xf32>
    %526 = tpu.concatenate %524, %525 in 0 : vector<1x96xf32>, vector<1x96xf32> -> vector<2x96xf32>
    %cst_125 = arith.constant dense<0.000000e+00> : vector<2x96xf32>
    %527 = tpu.matmul %523, %11, %cst_125 {dimension_numbers = #tpu.dot_dimension_numbers<[1], [0], [0], [1], [0, 0, 1, 1], [], []>} : vector<2x32xf32>, vector<32x96xf32>, vector<2x96xf32> -> vector<2x96xf32>
    %528 = vector.broadcast %13 : vector<1x96xf32> to vector<2x96xf32>
    %529 = arith.addf %527, %528 : vector<2x96xf32>
    %530 = vector.extract_strided_slice %526 {offsets = [0, 0], sizes = [2, 64], strides = [1, 1]} : vector<2x96xf32> to vector<2x64xf32>
    %531 = vector.extract_strided_slice %529 {offsets = [0, 0], sizes = [2, 64], strides = [1, 1]} : vector<2x96xf32> to vector<2x64xf32>
    %532 = arith.addf %530, %531 : vector<2x64xf32>
    %cst_126 = arith.constant 0.000000e+00 : f32
    %533 = vector.broadcast %cst_126 : f32 to vector<2x64xf32>
    %534 = arith.subf %533, %532 : vector<2x64xf32>
    %535 = math.exp %534 : vector<2x64xf32>
    %cst_127 = arith.constant 1.000000e+00 : f32
    %536 = vector.broadcast %cst_127 : f32 to vector<2x64xf32>
    %537 = arith.addf %536, %535 : vector<2x64xf32>
    %cst_128 = arith.constant 1.000000e+00 : f32
    %538 = vector.broadcast %cst_128 : f32 to vector<2x64xf32>
    %539 = arith.divf %538, %537 : vector<2x64xf32>
    %540 = vector.extract_strided_slice %539 {offsets = [0, 0], sizes = [2, 32], strides = [1, 1]} : vector<2x64xf32> to vector<2x32xf32>
    %541 = vector.extract_strided_slice %539 {offsets = [0, 32], sizes = [2, 32], strides = [1, 1]} : vector<2x64xf32> to vector<2x32xf32>
    %542 = vector.extract_strided_slice %526 {offsets = [0, 64], sizes = [2, 32], strides = [1, 1]} : vector<2x96xf32> to vector<2x32xf32>
    %543 = vector.extract_strided_slice %529 {offsets = [0, 64], sizes = [2, 32], strides = [1, 1]} : vector<2x96xf32> to vector<2x32xf32>
    %544 = arith.mulf %540, %543 : vector<2x32xf32>
    %545 = arith.addf %542, %544 : vector<2x32xf32>
    %546 = math.tanh %545 : vector<2x32xf32>
    %cst_129 = arith.constant 1.000000e+00 : f32
    %547 = vector.broadcast %cst_129 : f32 to vector<2x32xf32>
    %548 = arith.subf %547, %541 : vector<2x32xf32>
    %549 = arith.mulf %548, %546 : vector<2x32xf32>
    %550 = arith.mulf %541, %523 : vector<2x32xf32>
    %551 = arith.addf %549, %550 : vector<2x32xf32>
    %552 = vector.extract_strided_slice %116 {offsets = [12, 0], sizes = [1, 96], strides = [1, 1]} : vector<16x96xf32> to vector<1x96xf32>
    %553 = vector.extract_strided_slice %214 {offsets = [12, 0], sizes = [1, 96], strides = [1, 1]} : vector<16x96xf32> to vector<1x96xf32>
    %554 = tpu.concatenate %552, %553 in 0 : vector<1x96xf32>, vector<1x96xf32> -> vector<2x96xf32>
    %cst_130 = arith.constant dense<0.000000e+00> : vector<2x96xf32>
    %555 = tpu.matmul %551, %11, %cst_130 {dimension_numbers = #tpu.dot_dimension_numbers<[1], [0], [0], [1], [0, 0, 1, 1], [], []>} : vector<2x32xf32>, vector<32x96xf32>, vector<2x96xf32> -> vector<2x96xf32>
    %556 = vector.broadcast %13 : vector<1x96xf32> to vector<2x96xf32>
    %557 = arith.addf %555, %556 : vector<2x96xf32>
    %558 = vector.extract_strided_slice %554 {offsets = [0, 0], sizes = [2, 64], strides = [1, 1]} : vector<2x96xf32> to vector<2x64xf32>
    %559 = vector.extract_strided_slice %557 {offsets = [0, 0], sizes = [2, 64], strides = [1, 1]} : vector<2x96xf32> to vector<2x64xf32>
    %560 = arith.addf %558, %559 : vector<2x64xf32>
    %cst_131 = arith.constant 0.000000e+00 : f32
    %561 = vector.broadcast %cst_131 : f32 to vector<2x64xf32>
    %562 = arith.subf %561, %560 : vector<2x64xf32>
    %563 = math.exp %562 : vector<2x64xf32>
    %cst_132 = arith.constant 1.000000e+00 : f32
    %564 = vector.broadcast %cst_132 : f32 to vector<2x64xf32>
    %565 = arith.addf %564, %563 : vector<2x64xf32>
    %cst_133 = arith.constant 1.000000e+00 : f32
    %566 = vector.broadcast %cst_133 : f32 to vector<2x64xf32>
    %567 = arith.divf %566, %565 : vector<2x64xf32>
    %568 = vector.extract_strided_slice %567 {offsets = [0, 0], sizes = [2, 32], strides = [1, 1]} : vector<2x64xf32> to vector<2x32xf32>
    %569 = vector.extract_strided_slice %567 {offsets = [0, 32], sizes = [2, 32], strides = [1, 1]} : vector<2x64xf32> to vector<2x32xf32>
    %570 = vector.extract_strided_slice %554 {offsets = [0, 64], sizes = [2, 32], strides = [1, 1]} : vector<2x96xf32> to vector<2x32xf32>
    %571 = vector.extract_strided_slice %557 {offsets = [0, 64], sizes = [2, 32], strides = [1, 1]} : vector<2x96xf32> to vector<2x32xf32>
    %572 = arith.mulf %568, %571 : vector<2x32xf32>
    %573 = arith.addf %570, %572 : vector<2x32xf32>
    %574 = math.tanh %573 : vector<2x32xf32>
    %cst_134 = arith.constant 1.000000e+00 : f32
    %575 = vector.broadcast %cst_134 : f32 to vector<2x32xf32>
    %576 = arith.subf %575, %569 : vector<2x32xf32>
    %577 = arith.mulf %576, %574 : vector<2x32xf32>
    %578 = arith.mulf %569, %551 : vector<2x32xf32>
    %579 = arith.addf %577, %578 : vector<2x32xf32>
    %580 = vector.extract_strided_slice %116 {offsets = [13, 0], sizes = [1, 96], strides = [1, 1]} : vector<16x96xf32> to vector<1x96xf32>
    %581 = vector.extract_strided_slice %214 {offsets = [13, 0], sizes = [1, 96], strides = [1, 1]} : vector<16x96xf32> to vector<1x96xf32>
    %582 = tpu.concatenate %580, %581 in 0 : vector<1x96xf32>, vector<1x96xf32> -> vector<2x96xf32>
    %cst_135 = arith.constant dense<0.000000e+00> : vector<2x96xf32>
    %583 = tpu.matmul %579, %11, %cst_135 {dimension_numbers = #tpu.dot_dimension_numbers<[1], [0], [0], [1], [0, 0, 1, 1], [], []>} : vector<2x32xf32>, vector<32x96xf32>, vector<2x96xf32> -> vector<2x96xf32>
    %584 = vector.broadcast %13 : vector<1x96xf32> to vector<2x96xf32>
    %585 = arith.addf %583, %584 : vector<2x96xf32>
    %586 = vector.extract_strided_slice %582 {offsets = [0, 0], sizes = [2, 64], strides = [1, 1]} : vector<2x96xf32> to vector<2x64xf32>
    %587 = vector.extract_strided_slice %585 {offsets = [0, 0], sizes = [2, 64], strides = [1, 1]} : vector<2x96xf32> to vector<2x64xf32>
    %588 = arith.addf %586, %587 : vector<2x64xf32>
    %cst_136 = arith.constant 0.000000e+00 : f32
    %589 = vector.broadcast %cst_136 : f32 to vector<2x64xf32>
    %590 = arith.subf %589, %588 : vector<2x64xf32>
    %591 = math.exp %590 : vector<2x64xf32>
    %cst_137 = arith.constant 1.000000e+00 : f32
    %592 = vector.broadcast %cst_137 : f32 to vector<2x64xf32>
    %593 = arith.addf %592, %591 : vector<2x64xf32>
    %cst_138 = arith.constant 1.000000e+00 : f32
    %594 = vector.broadcast %cst_138 : f32 to vector<2x64xf32>
    %595 = arith.divf %594, %593 : vector<2x64xf32>
    %596 = vector.extract_strided_slice %595 {offsets = [0, 0], sizes = [2, 32], strides = [1, 1]} : vector<2x64xf32> to vector<2x32xf32>
    %597 = vector.extract_strided_slice %595 {offsets = [0, 32], sizes = [2, 32], strides = [1, 1]} : vector<2x64xf32> to vector<2x32xf32>
    %598 = vector.extract_strided_slice %582 {offsets = [0, 64], sizes = [2, 32], strides = [1, 1]} : vector<2x96xf32> to vector<2x32xf32>
    %599 = vector.extract_strided_slice %585 {offsets = [0, 64], sizes = [2, 32], strides = [1, 1]} : vector<2x96xf32> to vector<2x32xf32>
    %600 = arith.mulf %596, %599 : vector<2x32xf32>
    %601 = arith.addf %598, %600 : vector<2x32xf32>
    %602 = math.tanh %601 : vector<2x32xf32>
    %cst_139 = arith.constant 1.000000e+00 : f32
    %603 = vector.broadcast %cst_139 : f32 to vector<2x32xf32>
    %604 = arith.subf %603, %597 : vector<2x32xf32>
    %605 = arith.mulf %604, %602 : vector<2x32xf32>
    %606 = arith.mulf %597, %579 : vector<2x32xf32>
    %607 = arith.addf %605, %606 : vector<2x32xf32>
    %608 = vector.extract_strided_slice %116 {offsets = [14, 0], sizes = [1, 96], strides = [1, 1]} : vector<16x96xf32> to vector<1x96xf32>
    %609 = vector.extract_strided_slice %214 {offsets = [14, 0], sizes = [1, 96], strides = [1, 1]} : vector<16x96xf32> to vector<1x96xf32>
    %610 = tpu.concatenate %608, %609 in 0 : vector<1x96xf32>, vector<1x96xf32> -> vector<2x96xf32>
    %cst_140 = arith.constant dense<0.000000e+00> : vector<2x96xf32>
    %611 = tpu.matmul %607, %11, %cst_140 {dimension_numbers = #tpu.dot_dimension_numbers<[1], [0], [0], [1], [0, 0, 1, 1], [], []>} : vector<2x32xf32>, vector<32x96xf32>, vector<2x96xf32> -> vector<2x96xf32>
    %612 = vector.broadcast %13 : vector<1x96xf32> to vector<2x96xf32>
    %613 = arith.addf %611, %612 : vector<2x96xf32>
    %614 = vector.extract_strided_slice %610 {offsets = [0, 0], sizes = [2, 64], strides = [1, 1]} : vector<2x96xf32> to vector<2x64xf32>
    %615 = vector.extract_strided_slice %613 {offsets = [0, 0], sizes = [2, 64], strides = [1, 1]} : vector<2x96xf32> to vector<2x64xf32>
    %616 = arith.addf %614, %615 : vector<2x64xf32>
    %cst_141 = arith.constant 0.000000e+00 : f32
    %617 = vector.broadcast %cst_141 : f32 to vector<2x64xf32>
    %618 = arith.subf %617, %616 : vector<2x64xf32>
    %619 = math.exp %618 : vector<2x64xf32>
    %cst_142 = arith.constant 1.000000e+00 : f32
    %620 = vector.broadcast %cst_142 : f32 to vector<2x64xf32>
    %621 = arith.addf %620, %619 : vector<2x64xf32>
    %cst_143 = arith.constant 1.000000e+00 : f32
    %622 = vector.broadcast %cst_143 : f32 to vector<2x64xf32>
    %623 = arith.divf %622, %621 : vector<2x64xf32>
    %624 = vector.extract_strided_slice %623 {offsets = [0, 0], sizes = [2, 32], strides = [1, 1]} : vector<2x64xf32> to vector<2x32xf32>
    %625 = vector.extract_strided_slice %623 {offsets = [0, 32], sizes = [2, 32], strides = [1, 1]} : vector<2x64xf32> to vector<2x32xf32>
    %626 = vector.extract_strided_slice %610 {offsets = [0, 64], sizes = [2, 32], strides = [1, 1]} : vector<2x96xf32> to vector<2x32xf32>
    %627 = vector.extract_strided_slice %613 {offsets = [0, 64], sizes = [2, 32], strides = [1, 1]} : vector<2x96xf32> to vector<2x32xf32>
    %628 = arith.mulf %624, %627 : vector<2x32xf32>
    %629 = arith.addf %626, %628 : vector<2x32xf32>
    %630 = math.tanh %629 : vector<2x32xf32>
    %cst_144 = arith.constant 1.000000e+00 : f32
    %631 = vector.broadcast %cst_144 : f32 to vector<2x32xf32>
    %632 = arith.subf %631, %625 : vector<2x32xf32>
    %633 = arith.mulf %632, %630 : vector<2x32xf32>
    %634 = arith.mulf %625, %607 : vector<2x32xf32>
    %635 = arith.addf %633, %634 : vector<2x32xf32>
    %636 = vector.extract_strided_slice %116 {offsets = [15, 0], sizes = [1, 96], strides = [1, 1]} : vector<16x96xf32> to vector<1x96xf32>
    %637 = vector.extract_strided_slice %214 {offsets = [15, 0], sizes = [1, 96], strides = [1, 1]} : vector<16x96xf32> to vector<1x96xf32>
    %638 = tpu.concatenate %636, %637 in 0 : vector<1x96xf32>, vector<1x96xf32> -> vector<2x96xf32>
    %cst_145 = arith.constant dense<0.000000e+00> : vector<2x96xf32>
    %639 = tpu.matmul %635, %11, %cst_145 {dimension_numbers = #tpu.dot_dimension_numbers<[1], [0], [0], [1], [0, 0, 1, 1], [], []>} : vector<2x32xf32>, vector<32x96xf32>, vector<2x96xf32> -> vector<2x96xf32>
    %640 = vector.broadcast %13 : vector<1x96xf32> to vector<2x96xf32>
    %641 = arith.addf %639, %640 : vector<2x96xf32>
    %642 = vector.extract_strided_slice %638 {offsets = [0, 0], sizes = [2, 64], strides = [1, 1]} : vector<2x96xf32> to vector<2x64xf32>
    %643 = vector.extract_strided_slice %641 {offsets = [0, 0], sizes = [2, 64], strides = [1, 1]} : vector<2x96xf32> to vector<2x64xf32>
    %644 = arith.addf %642, %643 : vector<2x64xf32>
    %cst_146 = arith.constant 0.000000e+00 : f32
    %645 = vector.broadcast %cst_146 : f32 to vector<2x64xf32>
    %646 = arith.subf %645, %644 : vector<2x64xf32>
    %647 = math.exp %646 : vector<2x64xf32>
    %cst_147 = arith.constant 1.000000e+00 : f32
    %648 = vector.broadcast %cst_147 : f32 to vector<2x64xf32>
    %649 = arith.addf %648, %647 : vector<2x64xf32>
    %cst_148 = arith.constant 1.000000e+00 : f32
    %650 = vector.broadcast %cst_148 : f32 to vector<2x64xf32>
    %651 = arith.divf %650, %649 : vector<2x64xf32>
    %652 = vector.extract_strided_slice %651 {offsets = [0, 0], sizes = [2, 32], strides = [1, 1]} : vector<2x64xf32> to vector<2x32xf32>
    %653 = vector.extract_strided_slice %651 {offsets = [0, 32], sizes = [2, 32], strides = [1, 1]} : vector<2x64xf32> to vector<2x32xf32>
    %654 = vector.extract_strided_slice %638 {offsets = [0, 64], sizes = [2, 32], strides = [1, 1]} : vector<2x96xf32> to vector<2x32xf32>
    %655 = vector.extract_strided_slice %641 {offsets = [0, 64], sizes = [2, 32], strides = [1, 1]} : vector<2x96xf32> to vector<2x32xf32>
    %656 = arith.mulf %652, %655 : vector<2x32xf32>
    %657 = arith.addf %654, %656 : vector<2x32xf32>
    %658 = math.tanh %657 : vector<2x32xf32>
    %cst_149 = arith.constant 1.000000e+00 : f32
    %659 = vector.broadcast %cst_149 : f32 to vector<2x32xf32>
    %660 = arith.subf %659, %653 : vector<2x32xf32>
    %661 = arith.mulf %660, %658 : vector<2x32xf32>
    %662 = arith.mulf %653, %635 : vector<2x32xf32>
    %663 = arith.addf %661, %662 : vector<2x32xf32>
    %cst_150 = arith.constant dense<0.000000e+00> : vector<2x32xf32>
    %664 = tpu.matmul %663, %14, %cst_150 {dimension_numbers = #tpu.dot_dimension_numbers<[1], [0], [0], [1], [0, 0, 1, 1], [], []>} : vector<2x32xf32>, vector<32x32xf32>, vector<2x32xf32> -> vector<2x32xf32>
    %665 = vector.broadcast %15 : vector<1x32xf32> to vector<2x32xf32>
    %666 = arith.addf %664, %665 : vector<2x32xf32>
    %cst_151 = arith.constant 0.000000e+00 : f32
    %667 = vector.broadcast %cst_151 : f32 to vector<2x32xf32>
    %668 = arith.maximumf %666, %667 : vector<2x32xf32>
    %cst_152 = arith.constant dense<0.000000e+00> : vector<2x4xf32>
    %669 = tpu.matmul %668, %16, %cst_152 {dimension_numbers = #tpu.dot_dimension_numbers<[1], [0], [0], [1], [0, 0, 1, 1], [], []>} : vector<2x32xf32>, vector<32x4xf32>, vector<2x4xf32> -> vector<2x4xf32>
    %670 = vector.broadcast %17 : vector<1x4xf32> to vector<2x4xf32>
    %671 = arith.addf %669, %670 : vector<2x4xf32>
    %c0_153 = arith.constant 0 : index
    %c0_154 = arith.constant 0 : index
    %672 = vector.load %arg2[%c0_153, %c0_154] : memref<2x4xf32, #tpu.memory_space<vmem>>, vector<2x4xf32>
    tpu.vector_store %arg2[%c0_153, %c0_154], %671 {strides = array<i32>} : memref<2x4xf32, #tpu.memory_space<vmem>>, vector<2x4xf32>,
    return
  }
}

</mosaic_0001>

<llo_original>
// kernel: mtad_gat_forward.1
$region0: #{mtad_gat_forward.1}
  #allocation0 [shape = 'u32[]', space=smem, size = 0x4, offset = 0x4, fixed_abs, tag = 'smem constant byte address 0x4 - core index']
  #allocation1 [shape = 'u32[72,128]{1,0:T(1,128)}', space=vmem, size = 0x9000, scoped, tag = 'internal scratch']
  %s0 = inlined_call_operand.vmem [shape: f32[2,16,8], index: 0, kind: input, shape index: {}]
  %s1 = inlined_call_operand.hbm [shape: f32[296,128], index: 1, kind: input, shape index: {}]
  %s2 = inlined_call_operand.hbm [shape: f32[2,4], index: 2, kind: output, shape index: {}]
  %s3 = sld [smem:[#allocation0]]
  $region22: #{mtad_gat_forward.1} parent=0
    _
  %s5 = ssub.s32 1, %s3
  %s6 = scalar_select 0, %s5, %s3
  $region1: #{mtad_gat_forward.1} parent=0
    #allocation2 [shape = 'u8[151552]{0}', space=vmem, size = 0x25000, scoped, tag = 'input window, operand 1, single buffered']
    #allocation3 [shape = 's32[1]{0}', space=sflag, size = 0x4, scoped, tag = 'scoped memory for mtad_gat_forward.1']
    #allocation4 [shape = 's32[1]{0}', space=sflag, size = 0x4, scoped, tag = 'scoped memory for mtad_gat_forward.1']
    #allocation5 [shape = 'u8[1024]{0}', space=vmem, size = 0x400, scoped, tag = 'output window, operand 0, single buffered']
    %7 = vsyncpa [#allocation3], 0
    %8 = vsyncpa [#allocation4], 0
    // Predicated region
    $region2: #{mtad_gat_forward.1} parent=1 // pred_check
      _
    $region3: #{mtad_gat_forward.1} parent=1 // pred_check_branch
      %10 = sbr.rel (0) target = $region5
    $region4: #{mtad_gat_forward.1} parent=1 // pred_region
      _
    $region5: #{mtad_gat_forward.1} parent=1 // pred_fallthru
      _
    // Predicated region
    $region6: #{mtad_gat_forward.1} parent=1 // pred_check
      _
    $region7: #{mtad_gat_forward.1} parent=1 // pred_check_branch
      %12 = sbr.rel (0) target = $region9
    $region8: #{mtad_gat_forward.1} parent=1 // pred_region
      %14 = vsyncadd [#allocation3], 0
      %s15 = sshll.u32 %s1, 4
      %s16 = int_to_ptr.hbm [resolvable:$true] %s15
      %s17 = sshll.u32 [#allocation2], 4
      %s18 = int_to_ptr.vmem [resolvable:$true] %s17
      %23 = dma.hbm_to_vmem [thread:$0]  %s16, 4736, %s18, [#allocation3], 128, 128, 8
    $region9: #{mtad_gat_forward.1} parent=1 // pred_fallthru
      _
    // Predicated region
    $region10: #{mtad_gat_forward.1} parent=1 // pred_check
      _
    $region11: #{mtad_gat_forward.1} parent=1 // pred_check_branch
      %25 = sbr.rel (0) target = $region13
    $region12: #{mtad_gat_forward.1} parent=1 // pred_region
      %27 = dma.done [#allocation3], 4736
    $region13: #{mtad_gat_forward.1} parent=1 // pred_fallthru
      _
    %v28 = vld [vmem:[#allocation2] sm:$0xff]
    %v29 = vld [vmem:[#allocation2 + $0x8] sm:$0xff]
    %v30 = vld [vmem:[#allocation2 + $0x10] sm:$0xff]
    %v31 = vld [vmem:[#allocation2 + $0x18] sm:$0xff]
    %v32 = vld [vmem:[#allocation2 + $0x20] sm:$0xff]
    %v33 = vld [vmem:[#allocation2 + $0x28] sm:$0xff]
    %v34 = vld [vmem:[#allocation2 + $0x30] sm:$0xff]
    %v35 = vld [vmem:[#allocation2 + $0x38] sm:$0x1]
    %v36 = vld [vmem:[#allocation2 + $0x40] sm:$0xff]
    %v37 = vld [vmem:[#allocation2 + $0x48] sm:$0xff]
    %v38 = vld [vmem:[#allocation2 + $0x50] sm:$0x1]
    %v39 = vld [vmem:[#allocation2 + $0x58] sm:$0x1]
    %v40 = vld [vmem:[#allocation2 + $0x60] sm:$0xff]
    %v41 = vld [vmem:[#allocation2 + $0x68] sm:$0xff]
    %v42 = vld [vmem:[#allocation2 + $0x70] sm:$0x1]
    %v43 = vld [vmem:[#allocation2 + $0x78] sm:$0x1]
    %v44 = vld [vmem:[#allocation2 + $0x80] sm:$0xff]
    %v45 = vld [vmem:[#allocation2 + $0x88] sm:$0xff]
    %v46 = vld [vmem:[#allocation2 + $0x90] sm:$0xff]
    %v47 = vld [vmem:[#allocation2 + $0x98] sm:$0xff]
    %v48 = vld [vmem:[#allocation2 + $0xa0] sm:$0xff]
    %v49 = vld [vmem:[#allocation2 + $0xa8] sm:$0xff]
    %v50 = vld [vmem:[#allocation2 + $0xb0] sm:$0xff]
    %v51 = vld [vmem:[#allocation2 + $0xb8] sm:$0xff]
    %v52 = vld [vmem:[#allocation2 + $0xc0] sm:$0xff]
    %v53 = vld [vmem:[#allocation2 + $0xc8] sm:$0x1]
    %v54 = vld [vmem:[#allocation2 + $0xd0] sm:$0x1]
    %v55 = vld [vmem:[#allocation2 + $0xd8] sm:$0xff]
    %v56 = vld [vmem:[#allocation2 + $0xe0] sm:$0xff]
    %v57 = vld [vmem:[#allocation2 + $0xe8] sm:$0xff]
    %v58 = vld [vmem:[#allocation2 + $0xf0] sm:$0xff]
    %v59 = vld [vmem:[#allocation2 + $0xf8] sm:$0x1]
    %v60 = vld [vmem:[#allocation2 + $0x100] sm:$0xff]
    %v61 = vld [vmem:[#allocation2 + $0x108] sm:$0xff]
    %v62 = vld [vmem:[#allocation2 + $0x110] sm:$0xff]
    %v63 = vld [vmem:[#allocation2 + $0x118] sm:$0xff]
    %v64 = vld [vmem:[#allocation2 + $0x120] sm:$0x1]
    %v65 = vld [vmem:[%s0] sm:$0xff]
    %v66 = vld [vmem:[%s0 + $0x8] sm:$0xff]
    %vm69 = vcmask 1042432
    %v70 = vrot.slane %v65, 5
    %v71 = vrot.slane %v66, 5
    %v72 = vsel %vm69, %v70, %v71
    %v76 = vsel %vm69, 0.0, %v70
    %v77 = vsel %vm69, %v71, 0.0
    %vm80 = vcmask 1046528
    %v81 = vrot.slane %v76, 1
    %v82 = vrot.slane %v72, 1
    %v83 = vsel %vm80, %v81, %v82
    %v84 = vrot.slane %v77, 1
    %v85 = vsel %vm80, %v82, %v84
    %86 = vrot.lane.b32.xlu0 %v83, 8
    %v87 = vpop.permute.xlu0 %86
    %88 = vrot.lane.b32.xlu0 %v85, 8
    %v89 = vpop.permute.xlu0 %88
    %vm92 = vcmask 1045504
    %v93 = vrot.slane %v76, 2
    %v94 = vrot.slane %v72, 2
    %v95 = vsel %vm92, %v93, %v94
    %v96 = vrot.slane %v77, 2
    %v97 = vsel %vm92, %v94, %v96
    %98 = vrot.lane.b32.xlu0 %v95, 16
    %v99 = vpop.permute.xlu0 %98
    %100 = vrot.lane.b32.xlu0 %v97, 16
    %v101 = vpop.permute.xlu0 %100
    %vm104 = vcmask 1044480
    %v105 = vrot.slane %v76, 3
    %v106 = vrot.slane %v72, 3
    %v107 = vsel %vm104, %v105, %v106
    %v108 = vrot.slane %v77, 3
    %v109 = vsel %vm104, %v106, %v108
    %110 = vrot.lane.b32.xlu0 %v107, 24
    %v111 = vpop.permute.xlu0 %110
    %112 = vrot.lane.b32.xlu0 %v109, 24
    %v113 = vpop.permute.xlu0 %112
    %vm116 = vcmask 1043456
    %v117 = vrot.slane %v76, 4
    %v118 = vrot.slane %v72, 4
    %v119 = vsel %vm116, %v117, %v118
    %v120 = vrot.slane %v77, 4
    %v121 = vsel %vm116, %v118, %v120
    %122 = vrot.lane.b32.xlu0 %v119, 32
    %v123 = vpop.permute.xlu0 %122
    %124 = vrot.lane.b32.xlu0 %v121, 32
    %v125 = vpop.permute.xlu0 %124
    %v128 = vrot.slane %v76, 5
    %v129 = vrot.slane %v72, 5
    %v130 = vsel %vm69, %v128, %v129
    %v131 = vrot.slane %v77, 5
    %v132 = vsel %vm69, %v129, %v131
    %133 = vrot.lane.b32.xlu0 %v130, 40
    %v134 = vpop.permute.xlu0 %133
    %135 = vrot.lane.b32.xlu0 %v132, 40
    %v136 = vpop.permute.xlu0 %135
    %vm139 = vcmask 1041408
    %v140 = vrot.slane %v76, 6
    %v141 = vrot.slane %v72, 6
    %v142 = vsel %vm139, %v140, %v141
    %v143 = vrot.slane %v77, 6
    %v144 = vsel %vm139, %v141, %v143
    %145 = vrot.lane.b32.xlu0 %v142, 48
    %v146 = vpop.permute.xlu0 %145
    %147 = vrot.lane.b32.xlu0 %v144, 48
    %v148 = vpop.permute.xlu0 %147
    %vm151 = vcmask 64512
    %v152 = vsel %vm151, %v76, %v87
    %v153 = vsel %vm151, %v72, %v89
    %vm154 = vcmask 130048
    %v155 = vsel %vm154, %v152, %v99
    %v156 = vsel %vm154, %v153, %v101
    %vm157 = vcmask 195584
    %v158 = vsel %vm157, %v155, %v111
    %v159 = vsel %vm157, %v156, %v113
    %vm160 = vcmask 261120
    %v161 = vsel %vm160, %v158, %v123
    %v162 = vsel %vm160, %v159, %v125
    %vm163 = vcmask 326656
    %v164 = vsel %vm163, %v161, %v134
    %v165 = vsel %vm163, %v162, %v136
    %vm166 = vcmask 392192
    %v167 = vsel %vm166, %v164, %v146
    %v168 = vsel %vm166, %v165, %v148
    %v169 = vperm.slane %v35, 0
    %vm170 = vcmask 457728
    %v172 = vsel %vm170, %v167, 0
    %v175 = vsel %vm170, %v168, 0
    %177 = vmatpush.msra.mxu0 0.0
    %178 = vmatpush.msra.mxu0 0.0
    %179 = vmatpush.msra.mxu0 0.0
    %180 = vmatpush.msra.mxu0 0.0
    %181 = vmatpush.msra.mxu0 0.0
    %182 = vmatpush.msra.mxu0 0.0
    %183 = vmatpush.msra.mxu0 0.0
    %184 = vmatpush.msra.mxu0 0.0
    %185 = vmatpush.msra.mxu0 0.0
    %186 = vmatpush.msra.mxu0 %v34
    %187 = vmatpush.msra.mxu0 %v33
    %188 = vmatpush.msra.mxu0 %v32
    %189 = vmatpush.msra.mxu0 %v31
    %190 = vmatpush.msra.mxu0 %v30
    %191 = vmatpush.msra.mxu0 %v29
    %192 = vmatpush.msra.mxu0 %v28
    %193 = vmatmul.f32.gmra.mxu0 %v172
    %v194 = vpop.f32.mrf.mxu0
    %v195 = vadd.f32 %v169, %v194
    %196 = vmatmul.f32.gmra.mxu0 %v175
    %v197 = vpop.f32.mrf.mxu0
    %v198 = vadd.f32 %v169, %v197
    %199 = vdwg.mxu0
    %v200 = vmax.f32 %v195, 0.0
    %v201 = vmax.f32 %v198, 0.0
    %202 = vxpose.xlu0.b32.start [1/16] %v200, 128
    %203 = vxpose.xlu0.b32.cont [2/16] %v201, 128
    %204 = vxpose.xlu0.b32.cont [3/16] 0.0, 128
    %205 = vxpose.xlu0.b32.cont [4/16] 0.0, 128
    %206 = vxpose.xlu0.b32.cont [5/16] 0.0, 128
    %207 = vxpose.xlu0.b32.cont [6/16] 0.0, 128
    %208 = vxpose.xlu0.b32.cont [7/16] 0.0, 128
    %209 = vxpose.xlu0.b32.cont [8/16] 0.0, 128
    %210 = vxpose.xlu0.b32.cont [9/16] 0.0, 128
    %211 = vxpose.xlu0.b32.cont [10/16] 0.0, 128
    %212 = vxpose.xlu0.b32.cont [11/16] 0.0, 128
    %213 = vxpose.xlu0.b32.cont [12/16] 0.0, 128
    %214 = vxpose.xlu0.b32.cont [13/16] 0.0, 128
    %215 = vxpose.xlu0.b32.cont [14/16] 0.0, 128
    %216 = vxpose.xlu0.b32.cont [15/16] 0.0, 128
    %217 = vxpose.xlu0.b32.end [16/16] 0.0, 128
    %v218 = vpop.trf.xlu0
    %v219 = vpop.trf.xlu0
    %v220 = vpop.trf.xlu0
    %v221 = vpop.trf.xlu0
    %v222 = vpop.trf.xlu0
    %v223 = vpop.trf.xlu0
    %v224 = vpop.trf.xlu0
    %v225 = vpop.trf.xlu0
    %v226 = vpop.trf.xlu0
    %v227 = vpop.trf.xlu0
    %v228 = vpop.trf.xlu0
    %v229 = vpop.trf.xlu0
    %v230 = vpop.trf.xlu0
    %v231 = vpop.trf.xlu0
    %v232 = vpop.trf.xlu0
    %v233 = vpop.trf.xlu0
    %v235 = vsel %vm154, %v218, 0
    %237 = vmatpush.msra.mxu0 0.0
    %238 = vmatpush.msra.mxu0 0.0
    %239 = vmatpush.msra.mxu0 0.0
    %240 = vmatpush.msra.mxu0 0.0
    %241 = vmatpush.msra.mxu0 0.0
    %242 = vmatpush.msra.mxu0 0.0
    %243 = vmatpush.msra.mxu0 0.0
    %244 = vmatpush.msra.mxu0 0.0
    %245 = vmatpush.msra.mxu0 0.0
    %246 = vmatpush.msra.mxu0 0.0
    %247 = vmatpush.msra.mxu0 0.0
    %248 = vmatpush.msra.mxu0 0.0
    %249 = vmatpush.msra.mxu0 0.0
    %250 = vmatpush.msra.mxu0 0.0
    %251 = vmatpush.msra.mxu0 %v37
    %252 = vmatpush.msra.mxu0 %v36
    %253 = vmatmul.f32.gmra.mxu0 %v235
    %v254 = vpop.f32.mrf.mxu0
    %v255 = vadd.f32 0.0, %v254
    %256 = vdwg.mxu0
    %v258 = vrot.slane %v255, 1
    %v259 = vrot.slane %v255, 2
    %v260 = vrot.slane %v255, 3
    %v261 = vrot.slane %v255, 4
    %v262 = vrot.slane %v255, 5
    %v263 = vrot.slane %v255, 6
    %v264 = vrot.slane %v255, 7
    %v265 = vperm.slane %v255, 0
    %v266 = vperm.slane %v258, 0
    %v267 = vperm.slane %v259, 0
    %v268 = vperm.slane %v260, 0
    %v269 = vperm.slane %v261, 0
    %v270 = vperm.slane %v262, 0
    %v271 = vperm.slane %v263, 0
    %v272 = vperm.slane %v264, 0
    %281 = vrot.lane.b32.xlu0 %v255, 96
    %v282 = vpop.permute.xlu0 %281
    %v284 = vadd.f32 %v265, %v282
    %v285 = vadd.f32 %v266, %v282
    %v286 = vadd.f32 %v267, %v282
    %v287 = vadd.f32 %v268, %v282
    %v288 = vadd.f32 %v269, %v282
    %v289 = vadd.f32 %v270, %v282
    %v290 = vadd.f32 %v271, %v282
    %v291 = vadd.f32 %v272, %v282
    %v292 = vperm.slane %v38, 0
    %v293 = vadd.f32 %v284, %v292
    %v294 = vadd.f32 %v285, %v292
    %v295 = vadd.f32 %v286, %v292
    %v296 = vadd.f32 %v287, %v292
    %v297 = vadd.f32 %v288, %v292
    %v298 = vadd.f32 %v289, %v292
    %v299 = vadd.f32 %v290, %v292
    %v300 = vadd.f32 %v291, %v292
    %vm301 = vcmp.ge.f32.partialorder %v293, 0.0
    %vm302 = vcmp.ge.f32.partialorder %v294, 0.0
    %vm303 = vcmp.ge.f32.partialorder %v295, 0.0
    %vm304 = vcmp.ge.f32.partialorder %v296, 0.0
    %vm305 = vcmp.ge.f32.partialorder %v297, 0.0
    %vm306 = vcmp.ge.f32.partialorder %v298, 0.0
    %vm307 = vcmp.ge.f32.partialorder %v299, 0.0
    %vm308 = vcmp.ge.f32.partialorder %v300, 0.0
    %v309 = vmul.f32 %v293, 0.2
    %v310 = vmul.f32 %v294, 0.2
    %v311 = vmul.f32 %v295, 0.2
    %v312 = vmul.f32 %v296, 0.2
    %v313 = vmul.f32 %v297, 0.2
    %v314 = vmul.f32 %v298, 0.2
    %v315 = vmul.f32 %v299, 0.2
    %v316 = vmul.f32 %v300, 0.2
    %v317 = vsel %vm301, %v293, %v309
    %v318 = vsel %vm302, %v294, %v310
    %v319 = vsel %vm303, %v295, %v311
    %v320 = vsel %vm304, %v296, %v312
    %v321 = vsel %vm305, %v297, %v313
    %v322 = vsel %vm306, %v298, %v314
    %v323 = vsel %vm307, %v299, %v315
    %v324 = vsel %vm308, %v300, %v316
    %v325 = vperm.slane %v39, 0
    %v326 = vmul.f32 %v317, %v325
    %v327 = vmul.f32 %v318, %v325
    %v328 = vmul.f32 %v319, %v325
    %v329 = vmul.f32 %v320, %v325
    %v330 = vmul.f32 %v321, %v325
    %v331 = vmul.f32 %v322, %v325
    %v332 = vmul.f32 %v323, %v325
    %v333 = vmul.f32 %v324, %v325
    %v334 = vsel %vm160, %v326, 0.0
    %335 = vadd.xlane.f32.xlu0 %v334
    %v336 = vpop.xlane.xlu0 %335
    %v337 = vsel %vm160, %v327, 0.0
    %338 = vadd.xlane.f32.xlu0 %v337
    %v339 = vpop.xlane.xlu0 %338
    %v340 = vsel %vm160, %v328, 0.0
    %341 = vadd.xlane.f32.xlu0 %v340
    %v342 = vpop.xlane.xlu0 %341
    %v343 = vsel %vm160, %v329, 0.0
    %344 = vadd.xlane.f32.xlu0 %v343
    %v345 = vpop.xlane.xlu0 %344
    %v346 = vsel %vm160, %v330, 0.0
    %347 = vadd.xlane.f32.xlu0 %v346
    %v348 = vpop.xlane.xlu0 %347
    %v349 = vsel %vm160, %v331, 0.0
    %350 = vadd.xlane.f32.xlu0 %v349
    %v351 = vpop.xlane.xlu0 %350
    %v352 = vsel %vm160, %v332, 0.0
    %353 = vadd.xlane.f32.xlu0 %v352
    %v354 = vpop.xlane.xlu0 %353
    %v355 = vsel %vm160, %v333, 0.0
    %356 = vadd.xlane.f32.xlu0 %v355
    %v357 = vpop.xlane.xlu0 %356
    %v359 = vperm.slane %v40, 0
    %v360 = vlaneseq
    %v361 = vshrl.u32 %v360, 7
    %363 = vset.pattern.permute.xlu0 %v361
    %364 = vperm.xlu0 %363, %v359
    %v365 = vpop.permute.xlu0 %364
    %v366 = vperm.slane %v40, 1
    %v367 = vlaneseq
    %v368 = vshrl.u32 %v367, 7
    %370 = vset.pattern.permute.xlu0 %v368
    %371 = vperm.xlu0 %370, %v366
    %v372 = vpop.permute.xlu0 %371
    %v373 = vperm.slane %v40, 2
    %v374 = vlaneseq
    %v375 = vshrl.u32 %v374, 7
    %377 = vset.pattern.permute.xlu0 %v375
    %378 = vperm.xlu0 %377, %v373
    %v379 = vpop.permute.xlu0 %378
    %v380 = vperm.slane %v40, 3
    %v381 = vlaneseq
    %v382 = vshrl.u32 %v381, 7
    %384 = vset.pattern.permute.xlu0 %v382
    %385 = vperm.xlu0 %384, %v380
    %v386 = vpop.permute.xlu0 %385
    %v387 = vperm.slane %v40, 4
    %v388 = vlaneseq
    %v389 = vshrl.u32 %v388, 7
    %391 = vset.pattern.permute.xlu0 %v389
    %392 = vperm.xlu0 %391, %v387
    %v393 = vpop.permute.xlu0 %392
    %v394 = vperm.slane %v40, 5
    %v395 = vlaneseq
    %v396 = vshrl.u32 %v395, 7
    %398 = vset.pattern.permute.xlu0 %v396
    %399 = vperm.xlu0 %398, %v394
    %v400 = vpop.permute.xlu0 %399
    %v401 = vperm.slane %v40, 6
    %v402 = vlaneseq
    %v403 = vshrl.u32 %v402, 7
    %405 = vset.pattern.permute.xlu0 %v403
    %406 = vperm.xlu0 %405, %v401
    %v407 = vpop.permute.xlu0 %406
    %v408 = vperm.slane %v40, 7
    %v409 = vlaneseq
    %v410 = vshrl.u32 %v409, 7
    %412 = vset.pattern.permute.xlu0 %v410
    %413 = vperm.xlu0 %412, %v408
    %v414 = vpop.permute.xlu0 %413
    %v423 = vadd.f32 %v336, %v365
    %v424 = vadd.f32 %v339, %v372
    %v425 = vadd.f32 %v342, %v379
    %v426 = vadd.f32 %v345, %v386
    %v427 = vadd.f32 %v348, %v393
    %v428 = vadd.f32 %v351, %v400
    %v429 = vadd.f32 %v354, %v407
    %v430 = vadd.f32 %v357, %v414
    %439 = vset.pattern.permute.xlu0 0
    %440 = vperm.xlu0 %439, %v423
    %v441 = vpop.permute.xlu0 %440
    %442 = vset.pattern.permute.xlu0 0
    %443 = vperm.xlu0 %442, %v424
    %v444 = vpop.permute.xlu0 %443
    %445 = vset.pattern.permute.xlu0 0
    %446 = vperm.xlu0 %445, %v425
    %v447 = vpop.permute.xlu0 %446
    %448 = vset.pattern.permute.xlu0 0
    %449 = vperm.xlu0 %448, %v426
    %v450 = vpop.permute.xlu0 %449
    %451 = vset.pattern.permute.xlu0 0
    %452 = vperm.xlu0 %451, %v427
    %v453 = vpop.permute.xlu0 %452
    %454 = vset.pattern.permute.xlu0 0
    %455 = vperm.xlu0 %454, %v428
    %v456 = vpop.permute.xlu0 %455
    %457 = vset.pattern.permute.xlu0 0
    %458 = vperm.xlu0 %457, %v429
    %v459 = vpop.permute.xlu0 %458
    %460 = vset.pattern.permute.xlu0 0
    %461 = vperm.xlu0 %460, %v430
    %v462 = vpop.permute.xlu0 %461
    %v463 = vlaneseq
    %v464 = vand.u32 %v463, 127
    %v465 = vperm.slane %v441, %v464
    %v466 = vperm.slane %v444, %v464
    %v467 = vperm.slane %v447, %v464
    %v468 = vperm.slane %v450, %v464
    %v469 = vperm.slane %v453, %v464
    %v470 = vperm.slane %v456, %v464
    %v471 = vperm.slane %v459, %v464
    %v472 = vperm.slane %v462, %v464
    %vm473 = vcmask 1041409
    %v474 = vsel %vm473, %v466, %v465
    %vm475 = vcmask 1042434
    %v476 = vsel %vm475, %v467, %v474
    %vm477 = vcmask 1043459
    %v478 = vsel %vm477, %v468, %v476
    %vm479 = vcmask 1044484
    %v480 = vsel %vm479, %v469, %v478
    %vm481 = vcmask 1045509
    %v482 = vsel %vm481, %v470, %v480
    %vm483 = vcmask 1046534
    %v484 = vsel %vm483, %v471, %v482
    %vm485 = vcmask 1047559
    %v486 = vsel %vm485, %v472, %v484
    %v488 = vsel %vm151, %v486, -inf
    %489 = vmax.xlane.f32.xlu0 %v488
    %v490 = vpop.xlane.xlu0 %489
    %v492 = vperm.slane %v490, 0
    %v493 = vperm.slane %v490, 1
    %v494 = vperm.slane %v490, 2
    %v495 = vperm.slane %v490, 3
    %v496 = vperm.slane %v490, 4
    %v497 = vperm.slane %v490, 5
    %v498 = vperm.slane %v490, 6
    %v499 = vperm.slane %v490, 7
    %v508 = vsub.f32 %v423, %v492
    %v509 = vsub.f32 %v424, %v493
    %v510 = vsub.f32 %v425, %v494
    %v511 = vsub.f32 %v426, %v495
    %v512 = vsub.f32 %v427, %v496
    %v513 = vsub.f32 %v428, %v497
    %v514 = vsub.f32 %v429, %v498
    %v515 = vsub.f32 %v430, %v499
    %v516 = vmul.f32 %v508, 1.442695
    %v517 = vpow.pop %v516
    %v518 = vmul.f32 %v509, 1.442695
    %v519 = vpow.pop %v518
    %v520 = vmul.f32 %v510, 1.442695
    %v521 = vpow.pop %v520
    %v522 = vmul.f32 %v511, 1.442695
    %v523 = vpow.pop %v522
    %v524 = vmul.f32 %v512, 1.442695
    %v525 = vpow.pop %v524
    %v526 = vmul.f32 %v513, 1.442695
    %v527 = vpow.pop %v526
    %v528 = vmul.f32 %v514, 1.442695
    %v529 = vpow.pop %v528
    %v530 = vmul.f32 %v515, 1.442695
    %v531 = vpow.pop %v530
    %540 = vset.pattern.permute.xlu0 0
    %541 = vperm.xlu0 %540, %v517
    %v542 = vpop.permute.xlu0 %541
    %543 = vset.pattern.permute.xlu0 0
    %544 = vperm.xlu0 %543, %v519
    %v545 = vpop.permute.xlu0 %544
    %546 = vset.pattern.permute.xlu0 0
    %547 = vperm.xlu0 %546, %v521
    %v548 = vpop.permute.xlu0 %547
    %549 = vset.pattern.permute.xlu0 0
    %550 = vperm.xlu0 %549, %v523
    %v551 = vpop.permute.xlu0 %550
    %552 = vset.pattern.permute.xlu0 0
    %553 = vperm.xlu0 %552, %v525
    %v554 = vpop.permute.xlu0 %553
    %555 = vset.pattern.permute.xlu0 0
    %556 = vperm.xlu0 %555, %v527
    %v557 = vpop.permute.xlu0 %556
    %558 = vset.pattern.permute.xlu0 0
    %559 = vperm.xlu0 %558, %v529
    %v560 = vpop.permute.xlu0 %559
    %561 = vset.pattern.permute.xlu0 0
    %562 = vperm.xlu0 %561, %v531
    %v563 = vpop.permute.xlu0 %562
    %v564 = vperm.slane %v542, %v464
    %v565 = vperm.slane %v545, %v464
    %v566 = vperm.slane %v548, %v464
    %v567 = vperm.slane %v551, %v464
    %v568 = vperm.slane %v554, %v464
    %v569 = vperm.slane %v557, %v464
    %v570 = vperm.slane %v560, %v464
    %v571 = vperm.slane %v563, %v464
    %v572 = vsel %vm473, %v565, %v564
    %v573 = vsel %vm475, %v566, %v572
    %v574 = vsel %vm477, %v567, %v573
    %v575 = vsel %vm479, %v568, %v574
    %v576 = vsel %vm481, %v569, %v575
    %v577 = vsel %vm483, %v570, %v576
    %v578 = vsel %vm485, %v571, %v577
    %v580 = vsel %vm151, %v578, 0.0
    %581 = vadd.xlane.f32.xlu0 %v580
    %v582 = vpop.xlane.xlu0 %581
    %v584 = vperm.slane %v582, 0
    %v585 = vperm.slane %v582, 1
    %v586 = vperm.slane %v582, 2
    %v587 = vperm.slane %v582, 3
    %v588 = vperm.slane %v582, 4
    %v589 = vperm.slane %v582, 5
    %v590 = vperm.slane %v582, 6
    %v591 = vperm.slane %v582, 7
    %v600 = vrcp.pop %v584
    %v601 = vmul.f32 %v584, %v600
    %v602 = vsub.f32 1.0, %v601
    %v603 = vmul.f32 %v600, %v602
    %v604 = vadd.f32 %v600, %v603
    %vm605 = vweird.f32 %v584
    %vm606 = vweird.f32 %v600
    %vm607 = vmor %vm605, %vm606
    %v608 = vsel %vm607, %v600, %v604
    %v609 = vand.u32 2147483647, %v584
    %vm610 = vcmp.eq.f32.partialorder %v609, 8.507059e+37
    %v611 = vand.u32 %v584, 2147483648
    %v612 = vor.u32 1.1754944e-38, %v611
    %v613 = vsel %vm610, %v612, %v608
    %v614 = vmul.f32 %v517, %v613
    %v615 = vrcp.pop %v585
    %v616 = vmul.f32 %v585, %v615
    %v617 = vsub.f32 1.0, %v616
    %v618 = vmul.f32 %v615, %v617
    %v619 = vadd.f32 %v615, %v618
    %vm620 = vweird.f32 %v585
    %vm621 = vweird.f32 %v615
    %vm622 = vmor %vm620, %vm621
    %v623 = vsel %vm622, %v615, %v619
    %v624 = vand.u32 2147483647, %v585
    %vm625 = vcmp.eq.f32.partialorder %v624, 8.507059e+37
    %v626 = vand.u32 %v585, 2147483648
    %v627 = vor.u32 1.1754944e-38, %v626
    %v628 = vsel %vm625, %v627, %v623
    %v629 = vmul.f32 %v519, %v628
    %v630 = vrcp.pop %v586
    %v631 = vmul.f32 %v586, %v630
    %v632 = vsub.f32 1.0, %v631
    %v633 = vmul.f32 %v630, %v632
    %v634 = vadd.f32 %v630, %v633
    %vm635 = vweird.f32 %v586
    %vm636 = vweird.f32 %v630
    %vm637 = vmor %vm635, %vm636
    %v638 = vsel %vm637, %v630, %v634
    %v639 = vand.u32 2147483647, %v586
    %vm640 = vcmp.eq.f32.partialorder %v639, 8.507059e+37
    %v641 = vand.u32 %v586, 2147483648
    %v642 = vor.u32 1.1754944e-38, %v641
    %v643 = vsel %vm640, %v642, %v638
    %v644 = vmul.f32 %v521, %v643
    %v645 = vrcp.pop %v587
    %v646 = vmul.f32 %v587, %v645
    %v647 = vsub.f32 1.0, %v646
    %v648 = vmul.f32 %v645, %v647
    %v649 = vadd.f32 %v645, %v648
    %vm650 = vweird.f32 %v587
    %vm651 = vweird.f32 %v645
    %vm652 = vmor %vm650, %vm651
    %v653 = vsel %vm652, %v645, %v649
    %v654 = vand.u32 2147483647, %v587
    %vm655 = vcmp.eq.f32.partialorder %v654, 8.507059e+37
    %v656 = vand.u32 %v587, 2147483648
    %v657 = vor.u32 1.1754944e-38, %v656
    %v658 = vsel %vm655, %v657, %v653
    %v659 = vmul.f32 %v523, %v658
    %v660 = vrcp.pop %v588
    %v661 = vmul.f32 %v588, %v660
    %v662 = vsub.f32 1.0, %v661
    %v663 = vmul.f32 %v660, %v662
    %v664 = vadd.f32 %v660, %v663
    %vm665 = vweird.f32 %v588
    %vm666 = vweird.f32 %v660
    %vm667 = vmor %vm665, %vm666
    %v668 = vsel %vm667, %v660, %v664
    %v669 = vand.u32 2147483647, %v588
    %vm670 = vcmp.eq.f32.partialorder %v669, 8.507059e+37
    %v671 = vand.u32 %v588, 2147483648
    %v672 = vor.u32 1.1754944e-38, %v671
    %v673 = vsel %vm670, %v672, %v668
    %v674 = vmul.f32 %v525, %v673
    %v675 = vrcp.pop %v589
    %v676 = vmul.f32 %v589, %v675
    %v677 = vsub.f32 1.0, %v676
    %v678 = vmul.f32 %v675, %v677
    %v679 = vadd.f32 %v675, %v678
    %vm680 = vweird.f32 %v589
    %vm681 = vweird.f32 %v675
    %vm682 = vmor %vm680, %vm681
    %v683 = vsel %vm682, %v675, %v679
    %v684 = vand.u32 2147483647, %v589
    %vm685 = vcmp.eq.f32.partialorder %v684, 8.507059e+37
    %v686 = vand.u32 %v589, 2147483648
    %v687 = vor.u32 1.1754944e-38, %v686
    %v688 = vsel %vm685, %v687, %v683
    %v689 = vmul.f32 %v527, %v688
    %v690 = vrcp.pop %v590
    %v691 = vmul.f32 %v590, %v690
    %v692 = vsub.f32 1.0, %v691
    %v693 = vmul.f32 %v690, %v692
    %v694 = vadd.f32 %v690, %v693
    %vm695 = vweird.f32 %v590
    %vm696 = vweird.f32 %v690
    %vm697 = vmor %vm695, %vm696
    %v698 = vsel %vm697, %v690, %v694
    %v699 = vand.u32 2147483647, %v590
    %vm700 = vcmp.eq.f32.partialorder %v699, 8.507059e+37
    %v701 = vand.u32 %v590, 2147483648
    %v702 = vor.u32 1.1754944e-38, %v701
    %v703 = vsel %vm700, %v702, %v698
    %v704 = vmul.f32 %v529, %v703
    %v705 = vrcp.pop %v591
    %v706 = vmul.f32 %v591, %v705
    %v707 = vsub.f32 1.0, %v706
    %v708 = vmul.f32 %v705, %v707
    %v709 = vadd.f32 %v705, %v708
    %vm710 = vweird.f32 %v591
    %vm711 = vweird.f32 %v705
    %vm712 = vmor %vm710, %vm711
    %v713 = vsel %vm712, %v705, %v709
    %v714 = vand.u32 2147483647, %v591
    %vm715 = vcmp.eq.f32.partialorder %v714, 8.507059e+37
    %v716 = vand.u32 %v591, 2147483648
    %v717 = vor.u32 1.1754944e-38, %v716
    %v718 = vsel %vm715, %v717, %v713
    %v719 = vmul.f32 %v531, %v718
    %728 = vset.pattern.permute.xlu0 0
    %729 = vperm.xlu0 %728, %v614
    %v730 = vpop.permute.xlu0 %729
    %731 = vset.pattern.permute.xlu0 0
    %732 = vperm.xlu0 %731, %v629
    %v733 = vpop.permute.xlu0 %732
    %734 = vset.pattern.permute.xlu0 0
    %735 = vperm.xlu0 %734, %v644
    %v736 = vpop.permute.xlu0 %735
    %737 = vset.pattern.permute.xlu0 0
    %738 = vperm.xlu0 %737, %v659
    %v739 = vpop.permute.xlu0 %738
    %740 = vset.pattern.permute.xlu0 0
    %741 = vperm.xlu0 %740, %v674
    %v742 = vpop.permute.xlu0 %741
    %743 = vset.pattern.permute.xlu0 0
    %744 = vperm.xlu0 %743, %v689
    %v745 = vpop.permute.xlu0 %744
    %746 = vset.pattern.permute.xlu0 0
    %747 = vperm.xlu0 %746, %v704
    %v748 = vpop.permute.xlu0 %747
    %749 = vset.pattern.permute.xlu0 0
    %750 = vperm.xlu0 %749, %v719
    %v751 = vpop.permute.xlu0 %750
    %v752 = vperm.slane %v730, %v464
    %v753 = vperm.slane %v733, %v464
    %v754 = vperm.slane %v736, %v464
    %v755 = vperm.slane %v739, %v464
    %v756 = vperm.slane %v742, %v464
    %v757 = vperm.slane %v745, %v464
    %v758 = vperm.slane %v748, %v464
    %v759 = vperm.slane %v751, %v464
    %v760 = vsel %vm473, %v753, %v752
    %v761 = vsel %vm475, %v754, %v760
    %v762 = vsel %vm477, %v755, %v761
    %v763 = vsel %vm479, %v756, %v762
    %v764 = vsel %vm481, %v757, %v763
    %v765 = vsel %vm483, %v758, %v764
    %v766 = vsel %vm485, %v759, %v765
    %v768 = vsel %vm151, %v200, 0
    %v771 = vsel %vm151, %v201, 0
    %v773 = vsel %vm151, %v766, 0
    %775 = vmatpush.xpose.msra.mxu0 0.0
    %776 = vmatpush.xpose.msra.mxu0 0.0
    %777 = vmatpush.xpose.msra.mxu0 0.0
    %778 = vmatpush.xpose.msra.mxu0 0.0
    %779 = vmatpush.xpose.msra.mxu0 0.0
    %780 = vmatpush.xpose.msra.mxu0 0.0
    %781 = vmatpush.xpose.msra.mxu0 0.0
    %782 = vmatpush.xpose.msra.mxu0 0.0
    %783 = vmatpush.xpose.msra.mxu0 0.0
    %784 = vmatpush.xpose.msra.mxu0 0.0
    %785 = vmatpush.xpose.msra.mxu0 0.0
    %786 = vmatpush.xpose.msra.mxu0 0.0
    %787 = vmatpush.xpose.msra.mxu0 0.0
    %788 = vmatpush.xpose.msra.mxu0 0.0
    %789 = vmatpush.xpose.msra.mxu0 0.0
    %790 = vmatpush.xpose.msra.mxu0 %v773
    %791 = vmatmul.f32.gmra.mxu0 %v768
    %v792 = vpop.f32.mrf.mxu0
    %v793 = vadd.f32 0.0, %v792
    %794 = vmatmul.f32.gmra.mxu0 %v771
    %v795 = vpop.f32.mrf.mxu0
    %v796 = vadd.f32 0.0, %v795
    %797 = vdwg.mxu0
    %v798 = vsub.f32 0.0, %v793
    %v799 = vsub.f32 0.0, %v796
    %v800 = vmul.f32 %v798, 1.442695
    %v801 = vpow.pop %v800
    %v802 = vmul.f32 %v799, 1.442695
    %v803 = vpow.pop %v802
    %v804 = vadd.f32 %v801, 1.0
    %v805 = vadd.f32 %v803, 1.0
    %v806 = vrcp.pop %v804
    %v807 = vmul.f32 %v804, %v806
    %v808 = vsub.f32 1.0, %v807
    %v809 = vmul.f32 %v806, %v808
    %v810 = vadd.f32 %v806, %v809
    %vm811 = vweird.f32 %v804
    %vm812 = vweird.f32 %v806
    %vm813 = vmor %vm811, %vm812
    %v814 = vsel %vm813, %v806, %v810
    %v815 = vand.u32 2147483647, %v804
    %vm816 = vcmp.eq.f32.partialorder %v815, 8.507059e+37
    %v817 = vand.u32 %v804, 2147483648
    %v818 = vor.u32 1.1754944e-38, %v817
    %v819 = vsel %vm816, %v818, %v814
    %v820 = vmul.f32 1.0, %v819
    %v821 = vrcp.pop %v805
    %v822 = vmul.f32 %v805, %v821
    %v823 = vsub.f32 1.0, %v822
    %v824 = vmul.f32 %v821, %v823
    %v825 = vadd.f32 %v821, %v824
    %vm826 = vweird.f32 %v805
    %vm827 = vweird.f32 %v821
    %vm828 = vmor %vm826, %vm827
    %v829 = vsel %vm828, %v821, %v825
    %v830 = vand.u32 2147483647, %v805
    %vm831 = vcmp.eq.f32.partialorder %v830, 8.507059e+37
    %v832 = vand.u32 %v805, 2147483648
    %v833 = vor.u32 1.1754944e-38, %v832
    %v834 = vsel %vm831, %v833, %v829
    %v835 = vmul.f32 1.0, %v834
    %836 = vmatpush.msra.mxu0 0.0
    %837 = vmatpush.msra.mxu0 0.0
    %838 = vmatpush.msra.mxu0 0.0
    %839 = vmatpush.msra.mxu0 0.0
    %840 = vmatpush.msra.mxu0 0.0
    %841 = vmatpush.msra.mxu0 0.0
    %842 = vmatpush.msra.mxu0 0.0
    %843 = vmatpush.msra.mxu0 0.0
    %844 = vmatpush.msra.mxu0 0.0
    %845 = vmatpush.msra.mxu0 0.0
    %846 = vmatpush.msra.mxu0 0.0
    %847 = vmatpush.msra.mxu0 0.0
    %848 = vmatpush.msra.mxu0 0.0
    %849 = vmatpush.msra.mxu0 0.0
    %850 = vmatpush.msra.mxu0 0.0
    %851 = vmatpush.msra.mxu0 %v41
    %852 = vmatmul.f32.gmra.mxu0 %v768
    %v853 = vpop.f32.mrf.mxu0
    %v854 = vadd.f32 0.0, %v853
    %855 = vmatmul.f32.gmra.mxu0 %v771
    %v856 = vpop.f32.mrf.mxu0
    %v857 = vadd.f32 0.0, %v856
    %858 = vdwg.mxu0
    %v861 = vrot.slane %v854, 1
    %v862 = vrot.slane %v854, 2
    %v863 = vrot.slane %v854, 3
    %v864 = vrot.slane %v854, 4
    %v865 = vrot.slane %v854, 5
    %v866 = vrot.slane %v854, 6
    %v867 = vrot.slane %v854, 7
    %v868 = vrot.slane %v857, 1
    %v869 = vrot.slane %v857, 2
    %v870 = vrot.slane %v857, 3
    %v871 = vrot.slane %v857, 4
    %v872 = vrot.slane %v857, 5
    %v873 = vrot.slane %v857, 6
    %v874 = vrot.slane %v857, 7
    %v875 = vperm.slane %v854, 0
    %v876 = vperm.slane %v861, 0
    %v877 = vperm.slane %v862, 0
    %v878 = vperm.slane %v863, 0
    %v879 = vperm.slane %v864, 0
    %v880 = vperm.slane %v865, 0
    %v881 = vperm.slane %v866, 0
    %v882 = vperm.slane %v867, 0
    %v883 = vperm.slane %v857, 0
    %v884 = vperm.slane %v868, 0
    %v885 = vperm.slane %v869, 0
    %v886 = vperm.slane %v870, 0
    %v887 = vperm.slane %v871, 0
    %v888 = vperm.slane %v872, 0
    %v889 = vperm.slane %v873, 0
    %v890 = vperm.slane %v874, 0
    %907 = vrot.lane.b32.xlu0 %v854, 112
    %v908 = vpop.permute.xlu0 %907
    %909 = vrot.lane.b32.xlu0 %v857, 112
    %v910 = vpop.permute.xlu0 %909
    %v913 = vadd.f32 %v875, %v908
    %v914 = vadd.f32 %v875, %v910
    %v915 = vadd.f32 %v876, %v908
    %v916 = vadd.f32 %v876, %v910
    %v917 = vadd.f32 %v877, %v908
    %v918 = vadd.f32 %v877, %v910
    %v919 = vadd.f32 %v878, %v908
    %v920 = vadd.f32 %v878, %v910
    %v921 = vadd.f32 %v879, %v908
    %v922 = vadd.f32 %v879, %v910
    %v923 = vadd.f32 %v880, %v908
    %v924 = vadd.f32 %v880, %v910
    %v925 = vadd.f32 %v881, %v908
    %v926 = vadd.f32 %v881, %v910
    %v927 = vadd.f32 %v882, %v908
    %v928 = vadd.f32 %v882, %v910
    %v929 = vadd.f32 %v883, %v908
    %v930 = vadd.f32 %v883, %v910
    %v931 = vadd.f32 %v884, %v908
    %v932 = vadd.f32 %v884, %v910
    %v933 = vadd.f32 %v885, %v908
    %v934 = vadd.f32 %v885, %v910
    %v935 = vadd.f32 %v886, %v908
    %v936 = vadd.f32 %v886, %v910
    %v937 = vadd.f32 %v887, %v908
    %v938 = vadd.f32 %v887, %v910
    %v939 = vadd.f32 %v888, %v908
    %v940 = vadd.f32 %v888, %v910
    %v941 = vadd.f32 %v889, %v908
    %v942 = vadd.f32 %v889, %v910
    %v943 = vadd.f32 %v890, %v908
    %v944 = vadd.f32 %v890, %v910
    %v945 = vperm.slane %v42, 0
    %v946 = vadd.f32 %v913, %v945
    %v947 = vadd.f32 %v914, %v945
    %v948 = vadd.f32 %v915, %v945
    %v949 = vadd.f32 %v916, %v945
    %v950 = vadd.f32 %v917, %v945
    %v951 = vadd.f32 %v918, %v945
    %v952 = vadd.f32 %v919, %v945
    %v953 = vadd.f32 %v920, %v945
    %v954 = vadd.f32 %v921, %v945
    %v955 = vadd.f32 %v922, %v945
    %v956 = vadd.f32 %v923, %v945
    %v957 = vadd.f32 %v924, %v945
    %v958 = vadd.f32 %v925, %v945
    %v959 = vadd.f32 %v926, %v945
    %v960 = vadd.f32 %v927, %v945
    %v961 = vadd.f32 %v928, %v945
    %v962 = vadd.f32 %v929, %v945
    %v963 = vadd.f32 %v930, %v945
    %v964 = vadd.f32 %v931, %v945
    %v965 = vadd.f32 %v932, %v945
    %v966 = vadd.f32 %v933, %v945
    %v967 = vadd.f32 %v934, %v945
    %v968 = vadd.f32 %v935, %v945
    %v969 = vadd.f32 %v936, %v945
    %v970 = vadd.f32 %v937, %v945
    %v971 = vadd.f32 %v938, %v945
    %v972 = vadd.f32 %v939, %v945
    %v973 = vadd.f32 %v940, %v945
    %v974 = vadd.f32 %v941, %v945
    %v975 = vadd.f32 %v942, %v945
    %v976 = vadd.f32 %v943, %v945
    %v977 = vadd.f32 %v944, %v945
    %vm978 = vcmp.ge.f32.partialorder %v946, 0.0
    %vm979 = vcmp.ge.f32.partialorder %v947, 0.0
    %vm980 = vcmp.ge.f32.partialorder %v948, 0.0
    %vm981 = vcmp.ge.f32.partialorder %v949, 0.0
    %vm982 = vcmp.ge.f32.partialorder %v950, 0.0
    %vm983 = vcmp.ge.f32.partialorder %v951, 0.0
    %vm984 = vcmp.ge.f32.partialorder %v952, 0.0
    %vm985 = vcmp.ge.f32.partialorder %v953, 0.0
    %vm986 = vcmp.ge.f32.partialorder %v954, 0.0
    %vm987 = vcmp.ge.f32.partialorder %v955, 0.0
    %vm988 = vcmp.ge.f32.partialorder %v956, 0.0
    %vm989 = vcmp.ge.f32.partialorder %v957, 0.0
    %vm990 = vcmp.ge.f32.partialorder %v958, 0.0
    %vm991 = vcmp.ge.f32.partialorder %v959, 0.0
    %vm992 = vcmp.ge.f32.partialorder %v960, 0.0
    %vm993 = vcmp.ge.f32.partialorder %v961, 0.0
    %vm994 = vcmp.ge.f32.partialorder %v962, 0.0
    %vm995 = vcmp.ge.f32.partialorder %v963, 0.0
    %vm996 = vcmp.ge.f32.partialorder %v964, 0.0
    %vm997 = vcmp.ge.f32.partialorder %v965, 0.0
    %vm998 = vcmp.ge.f32.partialorder %v966, 0.0
    %vm999 = vcmp.ge.f32.partialorder %v967, 0.0
    %vm1000 = vcmp.ge.f32.partialorder %v968, 0.0
    %vm1001 = vcmp.ge.f32.partialorder %v969, 0.0
    %vm1002 = vcmp.ge.f32.partialorder %v970, 0.0
    %vm1003 = vcmp.ge.f32.partialorder %v971, 0.0
    %vm1004 = vcmp.ge.f32.partialorder %v972, 0.0
    %vm1005 = vcmp.ge.f32.partialorder %v973, 0.0
    %vm1006 = vcmp.ge.f32.partialorder %v974, 0.0
    %vm1007 = vcmp.ge.f32.partialorder %v975, 0.0
    %vm1008 = vcmp.ge.f32.partialorder %v976, 0.0
    %vm1009 = vcmp.ge.f32.partialorder %v977, 0.0
    %v1010 = vmul.f32 %v946, 0.2
    %v1011 = vmul.f32 %v947, 0.2
    %v1012 = vmul.f32 %v948, 0.2
    %v1013 = vmul.f32 %v949, 0.2
    %v1014 = vmul.f32 %v950, 0.2
    %v1015 = vmul.f32 %v951, 0.2
    %v1016 = vmul.f32 %v952, 0.2
    %v1017 = vmul.f32 %v953, 0.2
    %v1018 = vmul.f32 %v954, 0.2
    %v1019 = vmul.f32 %v955, 0.2
    %v1020 = vmul.f32 %v956, 0.2
    %v1021 = vmul.f32 %v957, 0.2
    %v1022 = vmul.f32 %v958, 0.2
    %v1023 = vmul.f32 %v959, 0.2
    %v1024 = vmul.f32 %v960, 0.2
    %v1025 = vmul.f32 %v961, 0.2
    %v1026 = vmul.f32 %v962, 0.2
    %v1027 = vmul.f32 %v963, 0.2
    %v1028 = vmul.f32 %v964, 0.2
    %v1029 = vmul.f32 %v965, 0.2
    %v1030 = vmul.f32 %v966, 0.2
    %v1031 = vmul.f32 %v967, 0.2
    %v1032 = vmul.f32 %v968, 0.2
    %v1033 = vmul.f32 %v969, 0.2
    %v1034 = vmul.f32 %v970, 0.2
    %v1035 = vmul.f32 %v971, 0.2
    %v1036 = vmul.f32 %v972, 0.2
    %v1037 = vmul.f32 %v973, 0.2
    %v1038 = vmul.f32 %v974, 0.2
    %v1039 = vmul.f32 %v975, 0.2
    %v1040 = vmul.f32 %v976, 0.2
    %v1041 = vmul.f32 %v977, 0.2
    %v1042 = vsel %vm978, %v946, %v1010
    %v1043 = vsel %vm979, %v947, %v1011
    %v1044 = vsel %vm980, %v948, %v1012
    %v1045 = vsel %vm981, %v949, %v1013
    %v1046 = vsel %vm982, %v950, %v1014
    %v1047 = vsel %vm983, %v951, %v1015
    %v1048 = vsel %vm984, %v952, %v1016
    %v1049 = vsel %vm985, %v953, %v1017
    %v1050 = vsel %vm986, %v954, %v1018
    %v1051 = vsel %vm987, %v955, %v1019
    %v1052 = vsel %vm988, %v956, %v1020
    %v1053 = vsel %vm989, %v957, %v1021
    %v1054 = vsel %vm990, %v958, %v1022
    %v1055 = vsel %vm991, %v959, %v1023
    %v1056 = vsel %vm992, %v960, %v1024
    %v1057 = vsel %vm993, %v961, %v1025
    %v1058 = vsel %vm994, %v962, %v1026
    %v1059 = vsel %vm995, %v963, %v1027
    %v1060 = vsel %vm996, %v964, %v1028
    %v1061 = vsel %vm997, %v965, %v1029
    %v1062 = vsel %vm998, %v966, %v1030
    %v1063 = vsel %vm999, %v967, %v1031
    %v1064 = vsel %vm1000, %v968, %v1032
    %v1065 = vsel %vm1001, %v969, %v1033
    %v1066 = vsel %vm1002, %v970, %v1034
    %v1067 = vsel %vm1003, %v971, %v1035
    %v1068 = vsel %vm1004, %v972, %v1036
    %v1069 = vsel %vm1005, %v973, %v1037
    %v1070 = vsel %vm1006, %v974, %v1038
    %v1071 = vsel %vm1007, %v975, %v1039
    %v1072 = vsel %vm1008, %v976, %v1040
    %v1073 = vsel %vm1009, %v977, %v1041
    %v1074 = vperm.slane %v43, 0
    %v1075 = vmul.f32 %v1042, %v1074
    %v1076 = vmul.f32 %v1043, %v1074
    %v1077 = vmul.f32 %v1044, %v1074
    %v1078 = vmul.f32 %v1045, %v1074
    %v1079 = vmul.f32 %v1046, %v1074
    %v1080 = vmul.f32 %v1047, %v1074
    %v1081 = vmul.f32 %v1048, %v1074
    %v1082 = vmul.f32 %v1049, %v1074
    %v1083 = vmul.f32 %v1050, %v1074
    %v1084 = vmul.f32 %v1051, %v1074
    %v1085 = vmul.f32 %v1052, %v1074
    %v1086 = vmul.f32 %v1053, %v1074
    %v1087 = vmul.f32 %v1054, %v1074
    %v1088 = vmul.f32 %v1055, %v1074
    %v1089 = vmul.f32 %v1056, %v1074
    %v1090 = vmul.f32 %v1057, %v1074
    %v1091 = vmul.f32 %v1058, %v1074
    %v1092 = vmul.f32 %v1059, %v1074
    %v1093 = vmul.f32 %v1060, %v1074
    %v1094 = vmul.f32 %v1061, %v1074
    %v1095 = vmul.f32 %v1062, %v1074
    %v1096 = vmul.f32 %v1063, %v1074
    %v1097 = vmul.f32 %v1064, %v1074
    %v1098 = vmul.f32 %v1065, %v1074
    %v1099 = vmul.f32 %v1066, %v1074
    %v1100 = vmul.f32 %v1067, %v1074
    %v1101 = vmul.f32 %v1068, %v1074
    %v1102 = vmul.f32 %v1069, %v1074
    %v1103 = vmul.f32 %v1070, %v1074
    %v1104 = vmul.f32 %v1071, %v1074
    %v1105 = vmul.f32 %v1072, %v1074
    %v1106 = vmul.f32 %v1073, %v1074
    %v1107 = vsel %vm154, %v1075, 0.0
    %1108 = vadd.xlane.f32.xlu0 %v1107
    %v1109 = vpop.xlane.xlu0 %1108
    %v1110 = vsel %vm154, %v1076, 0.0
    %1111 = vadd.xlane.f32.xlu0 %v1110
    %v1112 = vpop.xlane.xlu0 %1111
    %v1113 = vsel %vm154, %v1077, 0.0
    %1114 = vadd.xlane.f32.xlu0 %v1113
    %v1115 = vpop.xlane.xlu0 %1114
    %v1116 = vsel %vm154, %v1078, 0.0
    %1117 = vadd.xlane.f32.xlu0 %v1116
    %v1118 = vpop.xlane.xlu0 %1117
    %v1119 = vsel %vm154, %v1079, 0.0
    %1120 = vadd.xlane.f32.xlu0 %v1119
    %v1121 = vpop.xlane.xlu0 %1120
    %v1122 = vsel %vm154, %v1080, 0.0
    %1123 = vadd.xlane.f32.xlu0 %v1122
    %v1124 = vpop.xlane.xlu0 %1123
    %v1125 = vsel %vm154, %v1081, 0.0
    %1126 = vadd.xlane.f32.xlu0 %v1125
    %v1127 = vpop.xlane.xlu0 %1126
    %v1128 = vsel %vm154, %v1082, 0.0
    %1129 = vadd.xlane.f32.xlu0 %v1128
    %v1130 = vpop.xlane.xlu0 %1129
    %v1131 = vsel %vm154, %v1083, 0.0
    %1132 = vadd.xlane.f32.xlu0 %v1131
    %v1133 = vpop.xlane.xlu0 %1132
    %v1134 = vsel %vm154, %v1084, 0.0
    %1135 = vadd.xlane.f32.xlu0 %v1134
    %v1136 = vpop.xlane.xlu0 %1135
    %v1137 = vsel %vm154, %v1085, 0.0
    %1138 = vadd.xlane.f32.xlu0 %v1137
    %v1139 = vpop.xlane.xlu0 %1138
    %v1140 = vsel %vm154, %v1086, 0.0
    %1141 = vadd.xlane.f32.xlu0 %v1140
    %v1142 = vpop.xlane.xlu0 %1141
    %v1143 = vsel %vm154, %v1087, 0.0
    %1144 = vadd.xlane.f32.xlu0 %v1143
    %v1145 = vpop.xlane.xlu0 %1144
    %v1146 = vsel %vm154, %v1088, 0.0
    %1147 = vadd.xlane.f32.xlu0 %v1146
    %v1148 = vpop.xlane.xlu0 %1147
    %v1149 = vsel %vm154, %v1089, 0.0
    %1150 = vadd.xlane.f32.xlu0 %v1149
    %v1151 = vpop.xlane.xlu0 %1150
    %v1152 = vsel %vm154, %v1090, 0.0
    %1153 = vadd.xlane.f32.xlu0 %v1152
    %v1154 = vpop.xlane.xlu0 %1153
    %v1155 = vsel %vm154, %v1091, 0.0
    %1156 = vadd.xlane.f32.xlu0 %v1155
    %v1157 = vpop.xlane.xlu0 %1156
    %v1158 = vsel %vm154, %v1092, 0.0
    %1159 = vadd.xlane.f32.xlu0 %v1158
    %v1160 = vpop.xlane.xlu0 %1159
    %v1161 = vsel %vm154, %v1093, 0.0
    %1162 = vadd.xlane.f32.xlu0 %v1161
    %v1163 = vpop.xlane.xlu0 %1162
    %v1164 = vsel %vm154, %v1094, 0.0
    %1165 = vadd.xlane.f32.xlu0 %v1164
    %v1166 = vpop.xlane.xlu0 %1165
    %v1167 = vsel %vm154, %v1095, 0.0
    %1168 = vadd.xlane.f32.xlu0 %v1167
    %v1169 = vpop.xlane.xlu0 %1168
    %v1170 = vsel %vm154, %v1096, 0.0
    %1171 = vadd.xlane.f32.xlu0 %v1170
    %v1172 = vpop.xlane.xlu0 %1171
    %v1173 = vsel %vm154, %v1097, 0.0
    %1174 = vadd.xlane.f32.xlu0 %v1173
    %v1175 = vpop.xlane.xlu0 %1174
    %v1176 = vsel %vm154, %v1098, 0.0
    %1177 = vadd.xlane.f32.xlu0 %v1176
    %v1178 = vpop.xlane.xlu0 %1177
    %v1179 = vsel %vm154, %v1099, 0.0
    %1180 = vadd.xlane.f32.xlu0 %v1179
    %v1181 = vpop.xlane.xlu0 %1180
    %v1182 = vsel %vm154, %v1100, 0.0
    %1183 = vadd.xlane.f32.xlu0 %v1182
    %v1184 = vpop.xlane.xlu0 %1183
    %v1185 = vsel %vm154, %v1101, 0.0
    %1186 = vadd.xlane.f32.xlu0 %v1185
    %v1187 = vpop.xlane.xlu0 %1186
    %v1188 = vsel %vm154, %v1102, 0.0
    %1189 = vadd.xlane.f32.xlu0 %v1188
    %v1190 = vpop.xlane.xlu0 %1189
    %v1191 = vsel %vm154, %v1103, 0.0
    %1192 = vadd.xlane.f32.xlu0 %v1191
    %v1193 = vpop.xlane.xlu0 %1192
    %v1194 = vsel %vm154, %v1104, 0.0
    %1195 = vadd.xlane.f32.xlu0 %v1194
    %v1196 = vpop.xlane.xlu0 %1195
    %v1197 = vsel %vm154, %v1105, 0.0
    %1198 = vadd.xlane.f32.xlu0 %v1197
    %v1199 = vpop.xlane.xlu0 %1198
    %v1200 = vsel %vm154, %v1106, 0.0
    %1201 = vadd.xlane.f32.xlu0 %v1200
    %v1202 = vpop.xlane.xlu0 %1201
    %v1205 = vperm.slane %v44, 0
    %v1206 = vlaneseq
    %v1207 = vshrl.u32 %v1206, 7
    %1209 = vset.pattern.permute.xlu0 %v1207
    %1210 = vperm.xlu0 %1209, %v1205
    %v1211 = vpop.permute.xlu0 %1210
    %v1212 = vlaneseq
    %v1213 = vshrl.u32 %v1212, 7
    %v1214 = vadd.s32 %v1213, 8
    %1215 = vset.pattern.permute.xlu0 %v1214
    %1216 = vperm.xlu0 %1215, %v1205
    %v1217 = vpop.permute.xlu0 %1216
    %v1218 = vperm.slane %v44, 1
    %v1219 = vlaneseq
    %v1220 = vshrl.u32 %v1219, 7
    %1222 = vset.pattern.permute.xlu0 %v1220
    %1223 = vperm.xlu0 %1222, %v1218
    %v1224 = vpop.permute.xlu0 %1223
    %v1225 = vlaneseq
    %v1226 = vshrl.u32 %v1225, 7
    %v1227 = vadd.s32 %v1226, 8
    %1228 = vset.pattern.permute.xlu0 %v1227
    %1229 = vperm.xlu0 %1228, %v1218
    %v1230 = vpop.permute.xlu0 %1229
    %v1231 = vperm.slane %v44, 2
    %v1232 = vlaneseq
    %v1233 = vshrl.u32 %v1232, 7
    %1235 = vset.pattern.permute.xlu0 %v1233
    %1236 = vperm.xlu0 %1235, %v1231
    %v1237 = vpop.permute.xlu0 %1236
    %v1238 = vlaneseq
    %v1239 = vshrl.u32 %v1238, 7
    %v1240 = vadd.s32 %v1239, 8
    %1241 = vset.pattern.permute.xlu0 %v1240
    %1242 = vperm.xlu0 %1241, %v1231
    %v1243 = vpop.permute.xlu0 %1242
    %v1244 = vperm.slane %v44, 3
    %v1245 = vlaneseq
    %v1246 = vshrl.u32 %v1245, 7
    %1248 = vset.pattern.permute.xlu0 %v1246
    %1249 = vperm.xlu0 %1248, %v1244
    %v1250 = vpop.permute.xlu0 %1249
    %v1251 = vlaneseq
    %v1252 = vshrl.u32 %v1251, 7
    %v1253 = vadd.s32 %v1252, 8
    %1254 = vset.pattern.permute.xlu0 %v1253
    %1255 = vperm.xlu0 %1254, %v1244
    %v1256 = vpop.permute.xlu0 %1255
    %v1257 = vperm.slane %v44, 4
    %v1258 = vlaneseq
    %v1259 = vshrl.u32 %v1258, 7
    %1261 = vset.pattern.permute.xlu0 %v1259
    %1262 = vperm.xlu0 %1261, %v1257
    %v1263 = vpop.permute.xlu0 %1262
    %v1264 = vlaneseq
    %v1265 = vshrl.u32 %v1264, 7
    %v1266 = vadd.s32 %v1265, 8
    %1267 = vset.pattern.permute.xlu0 %v1266
    %1268 = vperm.xlu0 %1267, %v1257
    %v1269 = vpop.permute.xlu0 %1268
    %v1270 = vperm.slane %v44, 5
    %v1271 = vlaneseq
    %v1272 = vshrl.u32 %v1271, 7
    %1274 = vset.pattern.permute.xlu0 %v1272
    %1275 = vperm.xlu0 %1274, %v1270
    %v1276 = vpop.permute.xlu0 %1275
    %v1277 = vlaneseq
    %v1278 = vshrl.u32 %v1277, 7
    %v1279 = vadd.s32 %v1278, 8
    %1280 = vset.pattern.permute.xlu0 %v1279
    %1281 = vperm.xlu0 %1280, %v1270
    %v1282 = vpop.permute.xlu0 %1281
    %v1283 = vperm.slane %v44, 6
    %v1284 = vlaneseq
    %v1285 = vshrl.u32 %v1284, 7
    %1287 = vset.pattern.permute.xlu0 %v1285
    %1288 = vperm.xlu0 %1287, %v1283
    %v1289 = vpop.permute.xlu0 %1288
    %v1290 = vlaneseq
    %v1291 = vshrl.u32 %v1290, 7
    %v1292 = vadd.s32 %v1291, 8
    %1293 = vset.pattern.permute.xlu0 %v1292
    %1294 = vperm.xlu0 %1293, %v1283
    %v1295 = vpop.permute.xlu0 %1294
    %v1296 = vperm.slane %v44, 7
    %v1297 = vlaneseq
    %v1298 = vshrl.u32 %v1297, 7
    %1300 = vset.pattern.permute.xlu0 %v1298
    %1301 = vperm.xlu0 %1300, %v1296
    %v1302 = vpop.permute.xlu0 %1301
    %v1303 = vlaneseq
    %v1304 = vshrl.u32 %v1303, 7
    %v1305 = vadd.s32 %v1304, 8
    %1306 = vset.pattern.permute.xlu0 %v1305
    %1307 = vperm.xlu0 %1306, %v1296
    %v1308 = vpop.permute.xlu0 %1307
    %v1309 = vperm.slane %v45, 0
    %v1310 = vlaneseq
    %v1311 = vshrl.u32 %v1310, 7
    %1313 = vset.pattern.permute.xlu0 %v1311
    %1314 = vperm.xlu0 %1313, %v1309
    %v1315 = vpop.permute.xlu0 %1314
    %v1316 = vlaneseq
    %v1317 = vshrl.u32 %v1316, 7
    %v1318 = vadd.s32 %v1317, 8
    %1319 = vset.pattern.permute.xlu0 %v1318
    %1320 = vperm.xlu0 %1319, %v1309
    %v1321 = vpop.permute.xlu0 %1320
    %v1322 = vperm.slane %v45, 1
    %v1323 = vlaneseq
    %v1324 = vshrl.u32 %v1323, 7
    %1326 = vset.pattern.permute.xlu0 %v1324
    %1327 = vperm.xlu0 %1326, %v1322
    %v1328 = vpop.permute.xlu0 %1327
    %v1329 = vlaneseq
    %v1330 = vshrl.u32 %v1329, 7
    %v1331 = vadd.s32 %v1330, 8
    %1332 = vset.pattern.permute.xlu0 %v1331
    %1333 = vperm.xlu0 %1332, %v1322
    %v1334 = vpop.permute.xlu0 %1333
    %v1335 = vperm.slane %v45, 2
    %v1336 = vlaneseq
    %v1337 = vshrl.u32 %v1336, 7
    %1339 = vset.pattern.permute.xlu0 %v1337
    %1340 = vperm.xlu0 %1339, %v1335
    %v1341 = vpop.permute.xlu0 %1340
    %v1342 = vlaneseq
    %v1343 = vshrl.u32 %v1342, 7
    %v1344 = vadd.s32 %v1343, 8
    %1345 = vset.pattern.permute.xlu0 %v1344
    %1346 = vperm.xlu0 %1345, %v1335
    %v1347 = vpop.permute.xlu0 %1346
    %v1348 = vperm.slane %v45, 3
    %v1349 = vlaneseq
    %v1350 = vshrl.u32 %v1349, 7
    %1352 = vset.pattern.permute.xlu0 %v1350
    %1353 = vperm.xlu0 %1352, %v1348
    %v1354 = vpop.permute.xlu0 %1353
    %v1355 = vlaneseq
    %v1356 = vshrl.u32 %v1355, 7
    %v1357 = vadd.s32 %v1356, 8
    %1358 = vset.pattern.permute.xlu0 %v1357
    %1359 = vperm.xlu0 %1358, %v1348
    %v1360 = vpop.permute.xlu0 %1359
    %v1361 = vperm.slane %v45, 4
    %v1362 = vlaneseq
    %v1363 = vshrl.u32 %v1362, 7
    %1365 = vset.pattern.permute.xlu0 %v1363
    %1366 = vperm.xlu0 %1365, %v1361
    %v1367 = vpop.permute.xlu0 %1366
    %v1368 = vlaneseq
    %v1369 = vshrl.u32 %v1368, 7
    %v1370 = vadd.s32 %v1369, 8
    %1371 = vset.pattern.permute.xlu0 %v1370
    %1372 = vperm.xlu0 %1371, %v1361
    %v1373 = vpop.permute.xlu0 %1372
    %v1374 = vperm.slane %v45, 5
    %v1375 = vlaneseq
    %v1376 = vshrl.u32 %v1375, 7
    %1378 = vset.pattern.permute.xlu0 %v1376
    %1379 = vperm.xlu0 %1378, %v1374
    %v1380 = vpop.permute.xlu0 %1379
    %v1381 = vlaneseq
    %v1382 = vshrl.u32 %v1381, 7
    %v1383 = vadd.s32 %v1382, 8
    %1384 = vset.pattern.permute.xlu0 %v1383
    %1385 = vperm.xlu0 %1384, %v1374
    %v1386 = vpop.permute.xlu0 %1385
    %v1387 = vperm.slane %v45, 6
    %v1388 = vlaneseq
    %v1389 = vshrl.u32 %v1388, 7
    %1391 = vset.pattern.permute.xlu0 %v1389
    %1392 = vperm.xlu0 %1391, %v1387
    %v1393 = vpop.permute.xlu0 %1392
    %v1394 = vlaneseq
    %v1395 = vshrl.u32 %v1394, 7
    %v1396 = vadd.s32 %v1395, 8
    %1397 = vset.pattern.permute.xlu0 %v1396
    %1398 = vperm.xlu0 %1397, %v1387
    %v1399 = vpop.permute.xlu0 %1398
    %v1400 = vperm.slane %v45, 7
    %v1401 = vlaneseq
    %v1402 = vshrl.u32 %v1401, 7
    %1404 = vset.pattern.permute.xlu0 %v1402
    %1405 = vperm.xlu0 %1404, %v1400
    %v1406 = vpop.permute.xlu0 %1405
    %v1407 = vlaneseq
    %v1408 = vshrl.u32 %v1407, 7
    %v1409 = vadd.s32 %v1408, 8
    %1410 = vset.pattern.permute.xlu0 %v1409
    %1411 = vperm.xlu0 %1410, %v1400
    %v1412 = vpop.permute.xlu0 %1411
    %v1445 = vadd.f32 %v1109, %v1211
    %v1446 = vadd.f32 %v1112, %v1217
    %v1447 = vadd.f32 %v1115, %v1224
    %v1448 = vadd.f32 %v1118, %v1230
    %v1449 = vadd.f32 %v1121, %v1237
    %v1450 = vadd.f32 %v1124, %v1243
    %v1451 = vadd.f32 %v1127, %v1250
    %v1452 = vadd.f32 %v1130, %v1256
    %v1453 = vadd.f32 %v1133, %v1263
    %v1454 = vadd.f32 %v1136, %v1269
    %v1455 = vadd.f32 %v1139, %v1276
    %v1456 = vadd.f32 %v1142, %v1282
    %v1457 = vadd.f32 %v1145, %v1289
    %v1458 = vadd.f32 %v1148, %v1295
    %v1459 = vadd.f32 %v1151, %v1302
    %v1460 = vadd.f32 %v1154, %v1308
    %v1461 = vadd.f32 %v1157, %v1315
    %v1462 = vadd.f32 %v1160, %v1321
    %v1463 = vadd.f32 %v1163, %v1328
    %v1464 = vadd.f32 %v1166, %v1334
    %v1465 = vadd.f32 %v1169, %v1341
    %v1466 = vadd.f32 %v1172, %v1347
    %v1467 = vadd.f32 %v1175, %v1354
    %v1468 = vadd.f32 %v1178, %v1360
    %v1469 = vadd.f32 %v1181, %v1367
    %v1470 = vadd.f32 %v1184, %v1373
    %v1471 = vadd.f32 %v1187, %v1380
    %v1472 = vadd.f32 %v1190, %v1386
    %v1473 = vadd.f32 %v1193, %v1393
    %v1474 = vadd.f32 %v1196, %v1399
    %v1475 = vadd.f32 %v1199, %v1406
    %v1476 = vadd.f32 %v1202, %v1412
    %1509 = vset.pattern.permute.xlu0 0
    %1510 = vperm.xlu0 %1509, %v1445
    %v1511 = vpop.permute.xlu0 %1510
    %1512 = vset.pattern.permute.xlu0 0
    %1513 = vperm.xlu0 %1512, %v1446
    %v1514 = vpop.permute.xlu0 %1513
    %1515 = vset.pattern.permute.xlu0 0
    %1516 = vperm.xlu0 %1515, %v1447
    %v1517 = vpop.permute.xlu0 %1516
    %1518 = vset.pattern.permute.xlu0 0
    %1519 = vperm.xlu0 %1518, %v1448
    %v1520 = vpop.permute.xlu0 %1519
    %1521 = vset.pattern.permute.xlu0 0
    %1522 = vperm.xlu0 %1521, %v1449
    %v1523 = vpop.permute.xlu0 %1522
    %1524 = vset.pattern.permute.xlu0 0
    %1525 = vperm.xlu0 %1524, %v1450
    %v1526 = vpop.permute.xlu0 %1525
    %1527 = vset.pattern.permute.xlu0 0
    %1528 = vperm.xlu0 %1527, %v1451
    %v1529 = vpop.permute.xlu0 %1528
    %1530 = vset.pattern.permute.xlu0 0
    %1531 = vperm.xlu0 %1530, %v1452
    %v1532 = vpop.permute.xlu0 %1531
    %1533 = vset.pattern.permute.xlu0 0
    %1534 = vperm.xlu0 %1533, %v1453
    %v1535 = vpop.permute.xlu0 %1534
    %1536 = vset.pattern.permute.xlu0 0
    %1537 = vperm.xlu0 %1536, %v1454
    %v1538 = vpop.permute.xlu0 %1537
    %1539 = vset.pattern.permute.xlu0 0
    %1540 = vperm.xlu0 %1539, %v1455
    %v1541 = vpop.permute.xlu0 %1540
    %1542 = vset.pattern.permute.xlu0 0
    %1543 = vperm.xlu0 %1542, %v1456
    %v1544 = vpop.permute.xlu0 %1543
    %1545 = vset.pattern.permute.xlu0 0
    %1546 = vperm.xlu0 %1545, %v1457
    %v1547 = vpop.permute.xlu0 %1546
    %1548 = vset.pattern.permute.xlu0 0
    %1549 = vperm.xlu0 %1548, %v1458
    %v1550 = vpop.permute.xlu0 %1549
    %1551 = vset.pattern.permute.xlu0 0
    %1552 = vperm.xlu0 %1551, %v1459
    %v1553 = vpop.permute.xlu0 %1552
    %1554 = vset.pattern.permute.xlu0 0
    %1555 = vperm.xlu0 %1554, %v1460
    %v1556 = vpop.permute.xlu0 %1555
    %1557 = vset.pattern.permute.xlu0 0
    %1558 = vperm.xlu0 %1557, %v1461
    %v1559 = vpop.permute.xlu0 %1558
    %1560 = vset.pattern.permute.xlu0 0
    %1561 = vperm.xlu0 %1560, %v1462
    %v1562 = vpop.permute.xlu0 %1561
    %1563 = vset.pattern.permute.xlu0 0
    %1564 = vperm.xlu0 %1563, %v1463
    %v1565 = vpop.permute.xlu0 %1564
    %1566 = vset.pattern.permute.xlu0 0
    %1567 = vperm.xlu0 %1566, %v1464
    %v1568 = vpop.permute.xlu0 %1567
    %1569 = vset.pattern.permute.xlu0 0
    %1570 = vperm.xlu0 %1569, %v1465
    %v1571 = vpop.permute.xlu0 %1570
    %1572 = vset.pattern.permute.xlu0 0
    %1573 = vperm.xlu0 %1572, %v1466
    %v1574 = vpop.permute.xlu0 %1573
    %1575 = vset.pattern.permute.xlu0 0
    %1576 = vperm.xlu0 %1575, %v1467
    %v1577 = vpop.permute.xlu0 %1576
    %1578 = vset.pattern.permute.xlu0 0
    %1579 = vperm.xlu0 %1578, %v1468
    %v1580 = vpop.permute.xlu0 %1579
    %1581 = vset.pattern.permute.xlu0 0
    %1582 = vperm.xlu0 %1581, %v1469
    %v1583 = vpop.permute.xlu0 %1582
    %1584 = vset.pattern.permute.xlu0 0
    %1585 = vperm.xlu0 %1584, %v1470
    %v1586 = vpop.permute.xlu0 %1585
    %1587 = vset.pattern.permute.xlu0 0
    %1588 = vperm.xlu0 %1587, %v1471
    %v1589 = vpop.permute.xlu0 %1588
    %1590 = vset.pattern.permute.xlu0 0
    %1591 = vperm.xlu0 %1590, %v1472
    %v1592 = vpop.permute.xlu0 %1591
    %1593 = vset.pattern.permute.xlu0 0
    %1594 = vperm.xlu0 %1593, %v1473
    %v1595 = vpop.permute.xlu0 %1594
    %1596 = vset.pattern.permute.xlu0 0
    %1597 = vperm.xlu0 %1596, %v1474
    %v1598 = vpop.permute.xlu0 %1597
    %1599 = vset.pattern.permute.xlu0 0
    %1600 = vperm.xlu0 %1599, %v1475
    %v1601 = vpop.permute.xlu0 %1600
    %1602 = vset.pattern.permute.xlu0 0
    %1603 = vperm.xlu0 %1602, %v1476
    %v1604 = vpop.permute.xlu0 %1603
    %v1605 = vperm.slane %v1511, %v464
    %v1606 = vadd.s32 %v464, 4294967288
    %v1607 = vperm.slane %v1514, %v1606
    %vm1608 = vcmask 130112
    %v1609 = vsel %vm1608, %v1607, %v1605
    %v1610 = vperm.slane %v1517, %v464
    %v1611 = vperm.slane %v1520, %v1606
    %v1612 = vsel %vm1608, %v1611, %v1610
    %v1613 = vperm.slane %v1523, %v464
    %v1614 = vperm.slane %v1526, %v1606
    %v1615 = vsel %vm1608, %v1614, %v1613
    %v1616 = vperm.slane %v1529, %v464
    %v1617 = vperm.slane %v1532, %v1606
    %v1618 = vsel %vm1608, %v1617, %v1616
    %v1619 = vperm.slane %v1535, %v464
    %v1620 = vperm.slane %v1538, %v1606
    %v1621 = vsel %vm1608, %v1620, %v1619
    %v1622 = vperm.slane %v1541, %v464
    %v1623 = vperm.slane %v1544, %v1606
    %v1624 = vsel %vm1608, %v1623, %v1622
    %v1625 = vperm.slane %v1547, %v464
    %v1626 = vperm.slane %v1550, %v1606
    %v1627 = vsel %vm1608, %v1626, %v1625
    %v1628 = vperm.slane %v1553, %v464
    %v1629 = vperm.slane %v1556, %v1606
    %v1630 = vsel %vm1608, %v1629, %v1628
    %v1631 = vperm.slane %v1559, %v464
    %v1632 = vperm.slane %v1562, %v1606
    %v1633 = vsel %vm1608, %v1632, %v1631
    %v1634 = vperm.slane %v1565, %v464
    %v1635 = vperm.slane %v1568, %v1606
    %v1636 = vsel %vm1608, %v1635, %v1634
    %v1637 = vperm.slane %v1571, %v464
    %v1638 = vperm.slane %v1574, %v1606
    %v1639 = vsel %vm1608, %v1638, %v1637
    %v1640 = vperm.slane %v1577, %v464
    %v1641 = vperm.slane %v1580, %v1606
    %v1642 = vsel %vm1608, %v1641, %v1640
    %v1643 = vperm.slane %v1583, %v464
    %v1644 = vperm.slane %v1586, %v1606
    %v1645 = vsel %vm1608, %v1644, %v1643
    %v1646 = vperm.slane %v1589, %v464
    %v1647 = vperm.slane %v1592, %v1606
    %v1648 = vsel %vm1608, %v1647, %v1646
    %v1649 = vperm.slane %v1595, %v464
    %v1650 = vperm.slane %v1598, %v1606
    %v1651 = vsel %vm1608, %v1650, %v1649
    %v1652 = vperm.slane %v1601, %v464
    %v1653 = vperm.slane %v1604, %v1606
    %v1654 = vsel %vm1608, %v1653, %v1652
    %v1655 = vsel %vm473, %v1612, %v1609
    %v1656 = vsel %vm475, %v1615, %v1655
    %v1657 = vsel %vm477, %v1618, %v1656
    %v1658 = vsel %vm479, %v1621, %v1657
    %v1659 = vsel %vm481, %v1624, %v1658
    %v1660 = vsel %vm483, %v1627, %v1659
    %v1661 = vsel %vm485, %v1630, %v1660
    %v1662 = vsel %vm473, %v1636, %v1633
    %v1663 = vsel %vm475, %v1639, %v1662
    %v1664 = vsel %vm477, %v1642, %v1663
    %v1665 = vsel %vm479, %v1645, %v1664
    %v1666 = vsel %vm481, %v1648, %v1665
    %v1667 = vsel %vm483, %v1651, %v1666
    %v1668 = vsel %vm485, %v1654, %v1667
    %v1671 = vsel %vm154, %v1661, -inf
    %1672 = vmax.xlane.f32.xlu0 %v1671
    %v1673 = vpop.xlane.xlu0 %1672
    %v1674 = vsel %vm154, %v1668, -inf
    %1675 = vmax.xlane.f32.xlu0 %v1674
    %v1676 = vpop.xlane.xlu0 %1675
    %v1679 = vperm.slane %v1673, 0
    %v1680 = vperm.slane %v1673, 1
    %v1681 = vperm.slane %v1673, 2
    %v1682 = vperm.slane %v1673, 3
    %v1683 = vperm.slane %v1673, 4
    %v1684 = vperm.slane %v1673, 5
    %v1685 = vperm.slane %v1673, 6
    %v1686 = vperm.slane %v1673, 7
    %v1687 = vperm.slane %v1676, 0
    %v1688 = vperm.slane %v1676, 1
    %v1689 = vperm.slane %v1676, 2
    %v1690 = vperm.slane %v1676, 3
    %v1691 = vperm.slane %v1676, 4
    %v1692 = vperm.slane %v1676, 5
    %v1693 = vperm.slane %v1676, 6
    %v1694 = vperm.slane %v1676, 7
    %v1711 = vsub.f32 %v1445, %v1679
    %v1712 = vsub.f32 %v1446, %v1679
    %v1713 = vsub.f32 %v1447, %v1680
    %v1714 = vsub.f32 %v1448, %v1680
    %v1715 = vsub.f32 %v1449, %v1681
    %v1716 = vsub.f32 %v1450, %v1681
    %v1717 = vsub.f32 %v1451, %v1682
    %v1718 = vsub.f32 %v1452, %v1682
    %v1719 = vsub.f32 %v1453, %v1683
    %v1720 = vsub.f32 %v1454, %v1683
    %v1721 = vsub.f32 %v1455, %v1684
    %v1722 = vsub.f32 %v1456, %v1684
    %v1723 = vsub.f32 %v1457, %v1685
    %v1724 = vsub.f32 %v1458, %v1685
    %v1725 = vsub.f32 %v1459, %v1686
    %v1726 = vsub.f32 %v1460, %v1686
    %v1727 = vsub.f32 %v1461, %v1687
    %v1728 = vsub.f32 %v1462, %v1687
    %v1729 = vsub.f32 %v1463, %v1688
    %v1730 = vsub.f32 %v1464, %v1688
    %v1731 = vsub.f32 %v1465, %v1689
    %v1732 = vsub.f32 %v1466, %v1689
    %v1733 = vsub.f32 %v1467, %v1690
    %v1734 = vsub.f32 %v1468, %v1690
    %v1735 = vsub.f32 %v1469, %v1691
    %v1736 = vsub.f32 %v1470, %v1691
    %v1737 = vsub.f32 %v1471, %v1692
    %v1738 = vsub.f32 %v1472, %v1692
    %v1739 = vsub.f32 %v1473, %v1693
    %v1740 = vsub.f32 %v1474, %v1693
    %v1741 = vsub.f32 %v1475, %v1694
    %v1742 = vsub.f32 %v1476, %v1694
    %v1743 = vmul.f32 %v1711, 1.442695
    %v1744 = vpow.pop %v1743
    %v1745 = vmul.f32 %v1712, 1.442695
    %v1746 = vpow.pop %v1745
    %v1747 = vmul.f32 %v1713, 1.442695
    %v1748 = vpow.pop %v1747
    %v1749 = vmul.f32 %v1714, 1.442695
    %v1750 = vpow.pop %v1749
    %v1751 = vmul.f32 %v1715, 1.442695
    %v1752 = vpow.pop %v1751
    %v1753 = vmul.f32 %v1716, 1.442695
    %v1754 = vpow.pop %v1753
    %v1755 = vmul.f32 %v1717, 1.442695
    %v1756 = vpow.pop %v1755
    %v1757 = vmul.f32 %v1718, 1.442695
    %v1758 = vpow.pop %v1757
    %v1759 = vmul.f32 %v1719, 1.442695
    %v1760 = vpow.pop %v1759
    %v1761 = vmul.f32 %v1720, 1.442695
    %v1762 = vpow.pop %v1761
    %v1763 = vmul.f32 %v1721, 1.442695
    %v1764 = vpow.pop %v1763
    %v1765 = vmul.f32 %v1722, 1.442695
    %v1766 = vpow.pop %v1765
    %v1767 = vmul.f32 %v1723, 1.442695
    %v1768 = vpow.pop %v1767
    %v1769 = vmul.f32 %v1724, 1.442695
    %v1770 = vpow.pop %v1769
    %v1771 = vmul.f32 %v1725, 1.442695
    %v1772 = vpow.pop %v1771
    %v1773 = vmul.f32 %v1726, 1.442695
    %v1774 = vpow.pop %v1773
    %v1775 = vmul.f32 %v1727, 1.442695
    %v1776 = vpow.pop %v1775
    %v1777 = vmul.f32 %v1728, 1.442695
    %v1778 = vpow.pop %v1777
    %v1779 = vmul.f32 %v1729, 1.442695
    %v1780 = vpow.pop %v1779
    %v1781 = vmul.f32 %v1730, 1.442695
    %v1782 = vpow.pop %v1781
    %v1783 = vmul.f32 %v1731, 1.442695
    %v1784 = vpow.pop %v1783
    %v1785 = vmul.f32 %v1732, 1.442695
    %v1786 = vpow.pop %v1785
    %v1787 = vmul.f32 %v1733, 1.442695
    %v1788 = vpow.pop %v1787
    %v1789 = vmul.f32 %v1734, 1.442695
    %v1790 = vpow.pop %v1789
    %v1791 = vmul.f32 %v1735, 1.442695
    %v1792 = vpow.pop %v1791
    %v1793 = vmul.f32 %v1736, 1.442695
    %v1794 = vpow.pop %v1793
    %v1795 = vmul.f32 %v1737, 1.442695
    %v1796 = vpow.pop %v1795
    %v1797 = vmul.f32 %v1738, 1.442695
    %v1798 = vpow.pop %v1797
    %v1799 = vmul.f32 %v1739, 1.442695
    %v1800 = vpow.pop %v1799
    %v1801 = vmul.f32 %v1740, 1.442695
    %v1802 = vpow.pop %v1801
    %v1803 = vmul.f32 %v1741, 1.442695
    %v1804 = vpow.pop %v1803
    %v1805 = vmul.f32 %v1742, 1.442695
    %v1806 = vpow.pop %v1805
    %1839 = vset.pattern.permute.xlu0 0
    %1840 = vperm.xlu0 %1839, %v1744
    %v1841 = vpop.permute.xlu0 %1840
    %1842 = vset.pattern.permute.xlu0 0
    %1843 = vperm.xlu0 %1842, %v1746
    %v1844 = vpop.permute.xlu0 %1843
    %1845 = vset.pattern.permute.xlu0 0
    %1846 = vperm.xlu0 %1845, %v1748
    %v1847 = vpop.permute.xlu0 %1846
    %1848 = vset.pattern.permute.xlu0 0
    %1849 = vperm.xlu0 %1848, %v1750
    %v1850 = vpop.permute.xlu0 %1849
    %1851 = vset.pattern.permute.xlu0 0
    %1852 = vperm.xlu0 %1851, %v1752
    %v1853 = vpop.permute.xlu0 %1852
    %1854 = vset.pattern.permute.xlu0 0
    %1855 = vperm.xlu0 %1854, %v1754
    %v1856 = vpop.permute.xlu0 %1855
    %1857 = vset.pattern.permute.xlu0 0
    %1858 = vperm.xlu0 %1857, %v1756
    %v1859 = vpop.permute.xlu0 %1858
    %1860 = vset.pattern.permute.xlu0 0
    %1861 = vperm.xlu0 %1860, %v1758
    %v1862 = vpop.permute.xlu0 %1861
    %1863 = vset.pattern.permute.xlu0 0
    %1864 = vperm.xlu0 %1863, %v1760
    %v1865 = vpop.permute.xlu0 %1864
    %1866 = vset.pattern.permute.xlu0 0
    %1867 = vperm.xlu0 %1866, %v1762
    %v1868 = vpop.permute.xlu0 %1867
    %1869 = vset.pattern.permute.xlu0 0
    %1870 = vperm.xlu0 %1869, %v1764
    %v1871 = vpop.permute.xlu0 %1870
    %1872 = vset.pattern.permute.xlu0 0
    %1873 = vperm.xlu0 %1872, %v1766
    %v1874 = vpop.permute.xlu0 %1873
    %1875 = vset.pattern.permute.xlu0 0
    %1876 = vperm.xlu0 %1875, %v1768
    %v1877 = vpop.permute.xlu0 %1876
    %1878 = vset.pattern.permute.xlu0 0
    %1879 = vperm.xlu0 %1878, %v1770
    %v1880 = vpop.permute.xlu0 %1879
    %1881 = vset.pattern.permute.xlu0 0
    %1882 = vperm.xlu0 %1881, %v1772
    %v1883 = vpop.permute.xlu0 %1882
    %1884 = vset.pattern.permute.xlu0 0
    %1885 = vperm.xlu0 %1884, %v1774
    %v1886 = vpop.permute.xlu0 %1885
    %1887 = vset.pattern.permute.xlu0 0
    %1888 = vperm.xlu0 %1887, %v1776
    %v1889 = vpop.permute.xlu0 %1888
    %1890 = vset.pattern.permute.xlu0 0
    %1891 = vperm.xlu0 %1890, %v1778
    %v1892 = vpop.permute.xlu0 %1891
    %1893 = vset.pattern.permute.xlu0 0
    %1894 = vperm.xlu0 %1893, %v1780
    %v1895 = vpop.permute.xlu0 %1894
    %1896 = vset.pattern.permute.xlu0 0
    %1897 = vperm.xlu0 %1896, %v1782
    %v1898 = vpop.permute.xlu0 %1897
    %1899 = vset.pattern.permute.xlu0 0
    %1900 = vperm.xlu0 %1899, %v1784
    %v1901 = vpop.permute.xlu0 %1900
    %1902 = vset.pattern.permute.xlu0 0
    %1903 = vperm.xlu0 %1902, %v1786
    %v1904 = vpop.permute.xlu0 %1903
    %1905 = vset.pattern.permute.xlu0 0
    %1906 = vperm.xlu0 %1905, %v1788
    %v1907 = vpop.permute.xlu0 %1906
    %1908 = vset.pattern.permute.xlu0 0
    %1909 = vperm.xlu0 %1908, %v1790
    %v1910 = vpop.permute.xlu0 %1909
    %1911 = vset.pattern.permute.xlu0 0
    %1912 = vperm.xlu0 %1911, %v1792
    %v1913 = vpop.permute.xlu0 %1912
    %1914 = vset.pattern.permute.xlu0 0
    %1915 = vperm.xlu0 %1914, %v1794
    %v1916 = vpop.permute.xlu0 %1915
    %1917 = vset.pattern.permute.xlu0 0
    %1918 = vperm.xlu0 %1917, %v1796
    %v1919 = vpop.permute.xlu0 %1918
    %1920 = vset.pattern.permute.xlu0 0
    %1921 = vperm.xlu0 %1920, %v1798
    %v1922 = vpop.permute.xlu0 %1921
    %1923 = vset.pattern.permute.xlu0 0
    %1924 = vperm.xlu0 %1923, %v1800
    %v1925 = vpop.permute.xlu0 %1924
    %1926 = vset.pattern.permute.xlu0 0
    %1927 = vperm.xlu0 %1926, %v1802
    %v1928 = vpop.permute.xlu0 %1927
    %1929 = vset.pattern.permute.xlu0 0
    %1930 = vperm.xlu0 %1929, %v1804
    %v1931 = vpop.permute.xlu0 %1930
    %1932 = vset.pattern.permute.xlu0 0
    %1933 = vperm.xlu0 %1932, %v1806
    %v1934 = vpop.permute.xlu0 %1933
    %v1935 = vperm.slane %v1841, %v464
    %v1936 = vperm.slane %v1844, %v1606
    %v1937 = vsel %vm1608, %v1936, %v1935
    %v1938 = vperm.slane %v1847, %v464
    %v1939 = vperm.slane %v1850, %v1606
    %v1940 = vsel %vm1608, %v1939, %v1938
    %v1941 = vperm.slane %v1853, %v464
    %v1942 = vperm.slane %v1856, %v1606
    %v1943 = vsel %vm1608, %v1942, %v1941
    %v1944 = vperm.slane %v1859, %v464
    %v1945 = vperm.slane %v1862, %v1606
    %v1946 = vsel %vm1608, %v1945, %v1944
    %v1947 = vperm.slane %v1865, %v464
    %v1948 = vperm.slane %v1868, %v1606
    %v1949 = vsel %vm1608, %v1948, %v1947
    %v1950 = vperm.slane %v1871, %v464
    %v1951 = vperm.slane %v1874, %v1606
    %v1952 = vsel %vm1608, %v1951, %v1950
    %v1953 = vperm.slane %v1877, %v464
    %v1954 = vperm.slane %v1880, %v1606
    %v1955 = vsel %vm1608, %v1954, %v1953
    %v1956 = vperm.slane %v1883, %v464
    %v1957 = vperm.slane %v1886, %v1606
    %v1958 = vsel %vm1608, %v1957, %v1956
    %v1959 = vperm.slane %v1889, %v464
    %v1960 = vperm.slane %v1892, %v1606
    %v1961 = vsel %vm1608, %v1960, %v1959
    %v1962 = vperm.slane %v1895, %v464
    %v1963 = vperm.slane %v1898, %v1606
    %v1964 = vsel %vm1608, %v1963, %v1962
    %v1965 = vperm.slane %v1901, %v464
    %v1966 = vperm.slane %v1904, %v1606
    %v1967 = vsel %vm1608, %v1966, %v1965
    %v1968 = vperm.slane %v1907, %v464
    %v1969 = vperm.slane %v1910, %v1606
    %v1970 = vsel %vm1608, %v1969, %v1968
    %v1971 = vperm.slane %v1913, %v464
    %v1972 = vperm.slane %v1916, %v1606
    %v1973 = vsel %vm1608, %v1972, %v1971
    %v1974 = vperm.slane %v1919, %v464
    %v1975 = vperm.slane %v1922, %v1606
    %v1976 = vsel %vm1608, %v1975, %v1974
    %v1977 = vperm.slane %v1925, %v464
    %v1978 = vperm.slane %v1928, %v1606
    %v1979 = vsel %vm1608, %v1978, %v1977
    %v1980 = vperm.slane %v1931, %v464
    %v1981 = vperm.slane %v1934, %v1606
    %v1982 = vsel %vm1608, %v1981, %v1980
    %v1983 = vsel %vm473, %v1940, %v1937
    %v1984 = vsel %vm475, %v1943, %v1983
    %v1985 = vsel %vm477, %v1946, %v1984
    %v1986 = vsel %vm479, %v1949, %v1985
    %v1987 = vsel %vm481, %v1952, %v1986
    %v1988 = vsel %vm483, %v1955, %v1987
    %v1989 = vsel %vm485, %v1958, %v1988
    %v1990 = vsel %vm473, %v1964, %v1961
    %v1991 = vsel %vm475, %v1967, %v1990
    %v1992 = vsel %vm477, %v1970, %v1991
    %v1993 = vsel %vm479, %v1973, %v1992
    %v1994 = vsel %vm481, %v1976, %v1993
    %v1995 = vsel %vm483, %v1979, %v1994
    %v1996 = vsel %vm485, %v1982, %v1995
    %v1999 = vsel %vm154, %v1989, 0.0
    %2000 = vadd.xlane.f32.xlu0 %v1999
    %v2001 = vpop.xlane.xlu0 %2000
    %v2002 = vsel %vm154, %v1996, 0.0
    %2003 = vadd.xlane.f32.xlu0 %v2002
    %v2004 = vpop.xlane.xlu0 %2003
    %v2007 = vperm.slane %v2001, 0
    %v2008 = vperm.slane %v2001, 1
    %v2009 = vperm.slane %v2001, 2
    %v2010 = vperm.slane %v2001, 3
    %v2011 = vperm.slane %v2001, 4
    %v2012 = vperm.slane %v2001, 5
    %v2013 = vperm.slane %v2001, 6
    %v2014 = vperm.slane %v2001, 7
    %v2015 = vperm.slane %v2004, 0
    %v2016 = vperm.slane %v2004, 1
    %v2017 = vperm.slane %v2004, 2
    %v2018 = vperm.slane %v2004, 3
    %v2019 = vperm.slane %v2004, 4
    %v2020 = vperm.slane %v2004, 5
    %v2021 = vperm.slane %v2004, 6
    %v2022 = vperm.slane %v2004, 7
    %v2039 = vrcp.pop %v2007
    %v2040 = vmul.f32 %v2007, %v2039
    %v2041 = vsub.f32 1.0, %v2040
    %v2042 = vmul.f32 %v2039, %v2041
    %v2043 = vadd.f32 %v2039, %v2042
    %vm2044 = vweird.f32 %v2007
    %vm2045 = vweird.f32 %v2039
    %vm2046 = vmor %vm2044, %vm2045
    %v2047 = vsel %vm2046, %v2039, %v2043
    %v2048 = vand.u32 2147483647, %v2007
    %vm2049 = vcmp.eq.f32.partialorder %v2048, 8.507059e+37
    %v2050 = vand.u32 %v2007, 2147483648
    %v2051 = vor.u32 1.1754944e-38, %v2050
    %v2052 = vsel %vm2049, %v2051, %v2047
    %v2053 = vmul.f32 %v1744, %v2052
    %v2054 = vmul.f32 %v1746, %v2052
    %v2055 = vrcp.pop %v2008
    %v2056 = vmul.f32 %v2008, %v2055
    %v2057 = vsub.f32 1.0, %v2056
    %v2058 = vmul.f32 %v2055, %v2057
    %v2059 = vadd.f32 %v2055, %v2058
    %vm2060 = vweird.f32 %v2008
    %vm2061 = vweird.f32 %v2055
    %vm2062 = vmor %vm2060, %vm2061
    %v2063 = vsel %vm2062, %v2055, %v2059
    %v2064 = vand.u32 2147483647, %v2008
    %vm2065 = vcmp.eq.f32.partialorder %v2064, 8.507059e+37
    %v2066 = vand.u32 %v2008, 2147483648
    %v2067 = vor.u32 1.1754944e-38, %v2066
    %v2068 = vsel %vm2065, %v2067, %v2063
    %v2069 = vmul.f32 %v1748, %v2068
    %v2070 = vmul.f32 %v1750, %v2068
    %v2071 = vrcp.pop %v2009
    %v2072 = vmul.f32 %v2009, %v2071
    %v2073 = vsub.f32 1.0, %v2072
    %v2074 = vmul.f32 %v2071, %v2073
    %v2075 = vadd.f32 %v2071, %v2074
    %vm2076 = vweird.f32 %v2009
    %vm2077 = vweird.f32 %v2071
    %vm2078 = vmor %vm2076, %vm2077
    %v2079 = vsel %vm2078, %v2071, %v2075
    %v2080 = vand.u32 2147483647, %v2009
    %vm2081 = vcmp.eq.f32.partialorder %v2080, 8.507059e+37
    %v2082 = vand.u32 %v2009, 2147483648
    %v2083 = vor.u32 1.1754944e-38, %v2082
    %v2084 = vsel %vm2081, %v2083, %v2079
    %v2085 = vmul.f32 %v1752, %v2084
    %v2086 = vmul.f32 %v1754, %v2084
    %v2087 = vrcp.pop %v2010
    %v2088 = vmul.f32 %v2010, %v2087
    %v2089 = vsub.f32 1.0, %v2088
    %v2090 = vmul.f32 %v2087, %v2089
    %v2091 = vadd.f32 %v2087, %v2090
    %vm2092 = vweird.f32 %v2010
    %vm2093 = vweird.f32 %v2087
    %vm2094 = vmor %vm2092, %vm2093
    %v2095 = vsel %vm2094, %v2087, %v2091
    %v2096 = vand.u32 2147483647, %v2010
    %vm2097 = vcmp.eq.f32.partialorder %v2096, 8.507059e+37
    %v2098 = vand.u32 %v2010, 2147483648
    %v2099 = vor.u32 1.1754944e-38, %v2098
    %v2100 = vsel %vm2097, %v2099, %v2095
    %v2101 = vmul.f32 %v1756, %v2100
    %v2102 = vmul.f32 %v1758, %v2100
    %v2103 = vrcp.pop %v2011
    %v2104 = vmul.f32 %v2011, %v2103
    %v2105 = vsub.f32 1.0, %v2104
    %v2106 = vmul.f32 %v2103, %v2105
    %v2107 = vadd.f32 %v2103, %v2106
    %vm2108 = vweird.f32 %v2011
    %vm2109 = vweird.f32 %v2103
    %vm2110 = vmor %vm2108, %vm2109
    %v2111 = vsel %vm2110, %v2103, %v2107
    %v2112 = vand.u32 2147483647, %v2011
    %vm2113 = vcmp.eq.f32.partialorder %v2112, 8.507059e+37
    %v2114 = vand.u32 %v2011, 2147483648
    %v2115 = vor.u32 1.1754944e-38, %v2114
    %v2116 = vsel %vm2113, %v2115, %v2111
    %v2117 = vmul.f32 %v1760, %v2116
    %v2118 = vmul.f32 %v1762, %v2116
    %v2119 = vrcp.pop %v2012
    %v2120 = vmul.f32 %v2012, %v2119
    %v2121 = vsub.f32 1.0, %v2120
    %v2122 = vmul.f32 %v2119, %v2121
    %v2123 = vadd.f32 %v2119, %v2122
    %vm2124 = vweird.f32 %v2012
    %vm2125 = vweird.f32 %v2119
    %vm2126 = vmor %vm2124, %vm2125
    %v2127 = vsel %vm2126, %v2119, %v2123
    %v2128 = vand.u32 2147483647, %v2012
    %vm2129 = vcmp.eq.f32.partialorder %v2128, 8.507059e+37
    %v2130 = vand.u32 %v2012, 2147483648
    %v2131 = vor.u32 1.1754944e-38, %v2130
    %v2132 = vsel %vm2129, %v2131, %v2127
    %v2133 = vmul.f32 %v1764, %v2132
    %v2134 = vmul.f32 %v1766, %v2132
    %v2135 = vrcp.pop %v2013
    %v2136 = vmul.f32 %v2013, %v2135
    %v2137 = vsub.f32 1.0, %v2136
    %v2138 = vmul.f32 %v2135, %v2137
    %v2139 = vadd.f32 %v2135, %v2138
    %vm2140 = vweird.f32 %v2013
    %vm2141 = vweird.f32 %v2135
    %vm2142 = vmor %vm2140, %vm2141
    %v2143 = vsel %vm2142, %v2135, %v2139
    %v2144 = vand.u32 2147483647, %v2013
    %vm2145 = vcmp.eq.f32.partialorder %v2144, 8.507059e+37
    %v2146 = vand.u32 %v2013, 2147483648
    %v2147 = vor.u32 1.1754944e-38, %v2146
    %v2148 = vsel %vm2145, %v2147, %v2143
    %v2149 = vmul.f32 %v1768, %v2148
    %v2150 = vmul.f32 %v1770, %v2148
    %v2151 = vrcp.pop %v2014
    %v2152 = vmul.f32 %v2014, %v2151
    %v2153 = vsub.f32 1.0, %v2152
    %v2154 = vmul.f32 %v2151, %v2153
    %v2155 = vadd.f32 %v2151, %v2154
    %vm2156 = vweird.f32 %v2014
    %vm2157 = vweird.f32 %v2151
    %vm2158 = vmor %vm2156, %vm2157
    %v2159 = vsel %vm2158, %v2151, %v2155
    %v2160 = vand.u32 2147483647, %v2014
    %vm2161 = vcmp.eq.f32.partialorder %v2160, 8.507059e+37
    %v2162 = vand.u32 %v2014, 2147483648
    %v2163 = vor.u32 1.1754944e-38, %v2162
    %v2164 = vsel %vm2161, %v2163, %v2159
    %v2165 = vmul.f32 %v1772, %v2164
    %v2166 = vmul.f32 %v1774, %v2164
    %v2167 = vrcp.pop %v2015
    %v2168 = vmul.f32 %v2015, %v2167
    %v2169 = vsub.f32 1.0, %v2168
    %v2170 = vmul.f32 %v2167, %v2169
    %v2171 = vadd.f32 %v2167, %v2170
    %vm2172 = vweird.f32 %v2015
    %vm2173 = vweird.f32 %v2167
    %vm2174 = vmor %vm2172, %vm2173
    %v2175 = vsel %vm2174, %v2167, %v2171
    %v2176 = vand.u32 2147483647, %v2015
    %vm2177 = vcmp.eq.f32.partialorder %v2176, 8.507059e+37
    %v2178 = vand.u32 %v2015, 2147483648
    %v2179 = vor.u32 1.1754944e-38, %v2178
    %v2180 = vsel %vm2177, %v2179, %v2175
    %v2181 = vmul.f32 %v1776, %v2180
    %v2182 = vmul.f32 %v1778, %v2180
    %v2183 = vrcp.pop %v2016
    %v2184 = vmul.f32 %v2016, %v2183
    %v2185 = vsub.f32 1.0, %v2184
    %v2186 = vmul.f32 %v2183, %v2185
    %v2187 = vadd.f32 %v2183, %v2186
    %vm2188 = vweird.f32 %v2016
    %vm2189 = vweird.f32 %v2183
    %vm2190 = vmor %vm2188, %vm2189
    %v2191 = vsel %vm2190, %v2183, %v2187
    %v2192 = vand.u32 2147483647, %v2016
    %vm2193 = vcmp.eq.f32.partialorder %v2192, 8.507059e+37
    %v2194 = vand.u32 %v2016, 2147483648
    %v2195 = vor.u32 1.1754944e-38, %v2194
    %v2196 = vsel %vm2193, %v2195, %v2191
    %v2197 = vmul.f32 %v1780, %v2196
    %v2198 = vmul.f32 %v1782, %v2196
    %v2199 = vrcp.pop %v2017
    %v2200 = vmul.f32 %v2017, %v2199
    %v2201 = vsub.f32 1.0, %v2200
    %v2202 = vmul.f32 %v2199, %v2201
    %v2203 = vadd.f32 %v2199, %v2202
    %vm2204 = vweird.f32 %v2017
    %vm2205 = vweird.f32 %v2199
    %vm2206 = vmor %vm2204, %vm2205
    %v2207 = vsel %vm2206, %v2199, %v2203
    %v2208 = vand.u32 2147483647, %v2017
    %vm2209 = vcmp.eq.f32.partialorder %v2208, 8.507059e+37
    %v2210 = vand.u32 %v2017, 2147483648
    %v2211 = vor.u32 1.1754944e-38, %v2210
    %v2212 = vsel %vm2209, %v2211, %v2207
    %v2213 = vmul.f32 %v1784, %v2212
    %v2214 = vmul.f32 %v1786, %v2212
    %v2215 = vrcp.pop %v2018
    %v2216 = vmul.f32 %v2018, %v2215
    %v2217 = vsub.f32 1.0, %v2216
    %v2218 = vmul.f32 %v2215, %v2217
    %v2219 = vadd.f32 %v2215, %v2218
    %vm2220 = vweird.f32 %v2018
    %vm2221 = vweird.f32 %v2215
    %vm2222 = vmor %vm2220, %vm2221
    %v2223 = vsel %vm2222, %v2215, %v2219
    %v2224 = vand.u32 2147483647, %v2018
    %vm2225 = vcmp.eq.f32.partialorder %v2224, 8.507059e+37
    %v2226 = vand.u32 %v2018, 2147483648
    %v2227 = vor.u32 1.1754944e-38, %v2226
    %v2228 = vsel %vm2225, %v2227, %v2223
    %v2229 = vmul.f32 %v1788, %v2228
    %v2230 = vmul.f32 %v1790, %v2228
    %v2231 = vrcp.pop %v2019
    %v2232 = vmul.f32 %v2019, %v2231
    %v2233 = vsub.f32 1.0, %v2232
    %v2234 = vmul.f32 %v2231, %v2233
    %v2235 = vadd.f32 %v2231, %v2234
    %vm2236 = vweird.f32 %v2019
    %vm2237 = vweird.f32 %v2231
    %vm2238 = vmor %vm2236, %vm2237
    %v2239 = vsel %vm2238, %v2231, %v2235
    %v2240 = vand.u32 2147483647, %v2019
    %vm2241 = vcmp.eq.f32.partialorder %v2240, 8.507059e+37
    %v2242 = vand.u32 %v2019, 2147483648
    %v2243 = vor.u32 1.1754944e-38, %v2242
    %v2244 = vsel %vm2241, %v2243, %v2239
    %v2245 = vmul.f32 %v1792, %v2244
    %v2246 = vmul.f32 %v1794, %v2244
    %v2247 = vrcp.pop %v2020
    %v2248 = vmul.f32 %v2020, %v2247
    %v2249 = vsub.f32 1.0, %v2248
    %v2250 = vmul.f32 %v2247, %v2249
    %v2251 = vadd.f32 %v2247, %v2250
    %vm2252 = vweird.f32 %v2020
    %vm2253 = vweird.f32 %v2247
    %vm2254 = vmor %vm2252, %vm2253
    %v2255 = vsel %vm2254, %v2247, %v2251
    %v2256 = vand.u32 2147483647, %v2020
    %vm2257 = vcmp.eq.f32.partialorder %v2256, 8.507059e+37
    %v2258 = vand.u32 %v2020, 2147483648
    %v2259 = vor.u32 1.1754944e-38, %v2258
    %v2260 = vsel %vm2257, %v2259, %v2255
    %v2261 = vmul.f32 %v1796, %v2260
    %v2262 = vmul.f32 %v1798, %v2260
    %v2263 = vrcp.pop %v2021
    %v2264 = vmul.f32 %v2021, %v2263
    %v2265 = vsub.f32 1.0, %v2264
    %v2266 = vmul.f32 %v2263, %v2265
    %v2267 = vadd.f32 %v2263, %v2266
    %vm2268 = vweird.f32 %v2021
    %vm2269 = vweird.f32 %v2263
    %vm2270 = vmor %vm2268, %vm2269
    %v2271 = vsel %vm2270, %v2263, %v2267
    %v2272 = vand.u32 2147483647, %v2021
    %vm2273 = vcmp.eq.f32.partialorder %v2272, 8.507059e+37
    %v2274 = vand.u32 %v2021, 2147483648
    %v2275 = vor.u32 1.1754944e-38, %v2274
    %v2276 = vsel %vm2273, %v2275, %v2271
    %v2277 = vmul.f32 %v1800, %v2276
    %v2278 = vmul.f32 %v1802, %v2276
    %v2279 = vrcp.pop %v2022
    %v2280 = vmul.f32 %v2022, %v2279
    %v2281 = vsub.f32 1.0, %v2280
    %v2282 = vmul.f32 %v2279, %v2281
    %v2283 = vadd.f32 %v2279, %v2282
    %vm2284 = vweird.f32 %v2022
    %vm2285 = vweird.f32 %v2279
    %vm2286 = vmor %vm2284, %vm2285
    %v2287 = vsel %vm2286, %v2279, %v2283
    %v2288 = vand.u32 2147483647, %v2022
    %vm2289 = vcmp.eq.f32.partialorder %v2288, 8.507059e+37
    %v2290 = vand.u32 %v2022, 2147483648
    %v2291 = vor.u32 1.1754944e-38, %v2290
    %v2292 = vsel %vm2289, %v2291, %v2287
    %v2293 = vmul.f32 %v1804, %v2292
    %v2294 = vmul.f32 %v1806, %v2292
    %2327 = vset.pattern.permute.xlu0 0
    %2328 = vperm.xlu0 %2327, %v2053
    %v2329 = vpop.permute.xlu0 %2328
    %2330 = vset.pattern.permute.xlu0 0
    %2331 = vperm.xlu0 %2330, %v2054
    %v2332 = vpop.permute.xlu0 %2331
    %2333 = vset.pattern.permute.xlu0 0
    %2334 = vperm.xlu0 %2333, %v2069
    %v2335 = vpop.permute.xlu0 %2334
    %2336 = vset.pattern.permute.xlu0 0
    %2337 = vperm.xlu0 %2336, %v2070
    %v2338 = vpop.permute.xlu0 %2337
    %2339 = vset.pattern.permute.xlu0 0
    %2340 = vperm.xlu0 %2339, %v2085
    %v2341 = vpop.permute.xlu0 %2340
    %2342 = vset.pattern.permute.xlu0 0
    %2343 = vperm.xlu0 %2342, %v2086
    %v2344 = vpop.permute.xlu0 %2343
    %2345 = vset.pattern.permute.xlu0 0
    %2346 = vperm.xlu0 %2345, %v2101
    %v2347 = vpop.permute.xlu0 %2346
    %2348 = vset.pattern.permute.xlu0 0
    %2349 = vperm.xlu0 %2348, %v2102
    %v2350 = vpop.permute.xlu0 %2349
    %2351 = vset.pattern.permute.xlu0 0
    %2352 = vperm.xlu0 %2351, %v2117
    %v2353 = vpop.permute.xlu0 %2352
    %2354 = vset.pattern.permute.xlu0 0
    %2355 = vperm.xlu0 %2354, %v2118
    %v2356 = vpop.permute.xlu0 %2355
    %2357 = vset.pattern.permute.xlu0 0
    %2358 = vperm.xlu0 %2357, %v2133
    %v2359 = vpop.permute.xlu0 %2358
    %2360 = vset.pattern.permute.xlu0 0
    %2361 = vperm.xlu0 %2360, %v2134
    %v2362 = vpop.permute.xlu0 %2361
    %2363 = vset.pattern.permute.xlu0 0
    %2364 = vperm.xlu0 %2363, %v2149
    %v2365 = vpop.permute.xlu0 %2364
    %2366 = vset.pattern.permute.xlu0 0
    %2367 = vperm.xlu0 %2366, %v2150
    %v2368 = vpop.permute.xlu0 %2367
    %2369 = vset.pattern.permute.xlu0 0
    %2370 = vperm.xlu0 %2369, %v2165
    %v2371 = vpop.permute.xlu0 %2370
    %2372 = vset.pattern.permute.xlu0 0
    %2373 = vperm.xlu0 %2372, %v2166
    %v2374 = vpop.permute.xlu0 %2373
    %2375 = vset.pattern.permute.xlu0 0
    %2376 = vperm.xlu0 %2375, %v2181
    %v2377 = vpop.permute.xlu0 %2376
    %2378 = vset.pattern.permute.xlu0 0
    %2379 = vperm.xlu0 %2378, %v2182
    %v2380 = vpop.permute.xlu0 %2379
    %2381 = vset.pattern.permute.xlu0 0
    %2382 = vperm.xlu0 %2381, %v2197
    %v2383 = vpop.permute.xlu0 %2382
    %2384 = vset.pattern.permute.xlu0 0
    %2385 = vperm.xlu0 %2384, %v2198
    %v2386 = vpop.permute.xlu0 %2385
    %2387 = vset.pattern.permute.xlu0 0
    %2388 = vperm.xlu0 %2387, %v2213
    %v2389 = vpop.permute.xlu0 %2388
    %2390 = vset.pattern.permute.xlu0 0
    %2391 = vperm.xlu0 %2390, %v2214
    %v2392 = vpop.permute.xlu0 %2391
    %2393 = vset.pattern.permute.xlu0 0
    %2394 = vperm.xlu0 %2393, %v2229
    %v2395 = vpop.permute.xlu0 %2394
    %2396 = vset.pattern.permute.xlu0 0
    %2397 = vperm.xlu0 %2396, %v2230
    %v2398 = vpop.permute.xlu0 %2397
    %2399 = vset.pattern.permute.xlu0 0
    %2400 = vperm.xlu0 %2399, %v2245
    %v2401 = vpop.permute.xlu0 %2400
    %2402 = vset.pattern.permute.xlu0 0
    %2403 = vperm.xlu0 %2402, %v2246
    %v2404 = vpop.permute.xlu0 %2403
    %2405 = vset.pattern.permute.xlu0 0
    %2406 = vperm.xlu0 %2405, %v2261
    %v2407 = vpop.permute.xlu0 %2406
    %2408 = vset.pattern.permute.xlu0 0
    %2409 = vperm.xlu0 %2408, %v2262
    %v2410 = vpop.permute.xlu0 %2409
    %2411 = vset.pattern.permute.xlu0 0
    %2412 = vperm.xlu0 %2411, %v2277
    %v2413 = vpop.permute.xlu0 %2412
    %2414 = vset.pattern.permute.xlu0 0
    %2415 = vperm.xlu0 %2414, %v2278
    %v2416 = vpop.permute.xlu0 %2415
    %2417 = vset.pattern.permute.xlu0 0
    %2418 = vperm.xlu0 %2417, %v2293
    %v2419 = vpop.permute.xlu0 %2418
    %2420 = vset.pattern.permute.xlu0 0
    %2421 = vperm.xlu0 %2420, %v2294
    %v2422 = vpop.permute.xlu0 %2421
    %v2423 = vperm.slane %v2329, %v464
    %v2424 = vperm.slane %v2332, %v1606
    %v2425 = vsel %vm1608, %v2424, %v2423
    %v2426 = vperm.slane %v2335, %v464
    %v2427 = vperm.slane %v2338, %v1606
    %v2428 = vsel %vm1608, %v2427, %v2426
    %v2429 = vperm.slane %v2341, %v464
    %v2430 = vperm.slane %v2344, %v1606
    %v2431 = vsel %vm1608, %v2430, %v2429
    %v2432 = vperm.slane %v2347, %v464
    %v2433 = vperm.slane %v2350, %v1606
    %v2434 = vsel %vm1608, %v2433, %v2432
    %v2435 = vperm.slane %v2353, %v464
    %v2436 = vperm.slane %v2356, %v1606
    %v2437 = vsel %vm1608, %v2436, %v2435
    %v2438 = vperm.slane %v2359, %v464
    %v2439 = vperm.slane %v2362, %v1606
    %v2440 = vsel %vm1608, %v2439, %v2438
    %v2441 = vperm.slane %v2365, %v464
    %v2442 = vperm.slane %v2368, %v1606
    %v2443 = vsel %vm1608, %v2442, %v2441
    %v2444 = vperm.slane %v2371, %v464
    %v2445 = vperm.slane %v2374, %v1606
    %v2446 = vsel %vm1608, %v2445, %v2444
    %v2447 = vperm.slane %v2377, %v464
    %v2448 = vperm.slane %v2380, %v1606
    %v2449 = vsel %vm1608, %v2448, %v2447
    %v2450 = vperm.slane %v2383, %v464
    %v2451 = vperm.slane %v2386, %v1606
    %v2452 = vsel %vm1608, %v2451, %v2450
    %v2453 = vperm.slane %v2389, %v464
    %v2454 = vperm.slane %v2392, %v1606
    %v2455 = vsel %vm1608, %v2454, %v2453
    %v2456 = vperm.slane %v2395, %v464
    %v2457 = vperm.slane %v2398, %v1606
    %v2458 = vsel %vm1608, %v2457, %v2456
    %v2459 = vperm.slane %v2401, %v464
    %v2460 = vperm.slane %v2404, %v1606
    %v2461 = vsel %vm1608, %v2460, %v2459
    %v2462 = vperm.slane %v2407, %v464
    %v2463 = vperm.slane %v2410, %v1606
    %v2464 = vsel %vm1608, %v2463, %v2462
    %v2465 = vperm.slane %v2413, %v464
    %v2466 = vperm.slane %v2416, %v1606
    %v2467 = vsel %vm1608, %v2466, %v2465
    %v2468 = vperm.slane %v2419, %v464
    %v2469 = vperm.slane %v2422, %v1606
    %v2470 = vsel %vm1608, %v2469, %v2468
    %v2471 = vsel %vm473, %v2428, %v2425
    %v2472 = vsel %vm475, %v2431, %v2471
    %v2473 = vsel %vm477, %v2434, %v2472
    %v2474 = vsel %vm479, %v2437, %v2473
    %v2475 = vsel %vm481, %v2440, %v2474
    %v2476 = vsel %vm483, %v2443, %v2475
    %v2477 = vsel %vm485, %v2446, %v2476
    %v2478 = vsel %vm473, %v2452, %v2449
    %v2479 = vsel %vm475, %v2455, %v2478
    %v2480 = vsel %vm477, %v2458, %v2479
    %v2481 = vsel %vm479, %v2461, %v2480
    %v2482 = vsel %vm481, %v2464, %v2481
    %v2483 = vsel %vm483, %v2467, %v2482
    %v2484 = vsel %vm485, %v2470, %v2483
    %v2485 = vsel %vm154, %v2477, 0
    %v2487 = vsel %vm154, %v2484, 0
    %2489 = vmatpush.msra.mxu0 0.0
    %2490 = vmatpush.msra.mxu0 0.0
    %2491 = vmatpush.msra.mxu0 0.0
    %2492 = vmatpush.msra.mxu0 0.0
    %2493 = vmatpush.msra.mxu0 0.0
    %2494 = vmatpush.msra.mxu0 0.0
    %2495 = vmatpush.msra.mxu0 0.0
    %2496 = vmatpush.msra.mxu0 0.0
    %2497 = vmatpush.msra.mxu0 0.0
    %2498 = vmatpush.msra.mxu0 0.0
    %2499 = vmatpush.msra.mxu0 0.0
    %2500 = vmatpush.msra.mxu0 0.0
    %2501 = vmatpush.msra.mxu0 0.0
    %2502 = vmatpush.msra.mxu0 0.0
    %2503 = vmatpush.msra.mxu0 %v201
    %2504 = vmatpush.msra.mxu0 %v200
    %2505 = vmatmul.f32.gmra.mxu0 %v2485
    %v2506 = vpop.f32.mrf.mxu0
    %v2507 = vadd.f32 0.0, %v2506
    %2508 = vmatmul.f32.gmra.mxu0 %v2487
    %v2509 = vpop.f32.mrf.mxu0
    %v2510 = vadd.f32 0.0, %v2509
    %2511 = vdwg.mxu0
    %v2512 = vsub.f32 0.0, %v2507
    %v2513 = vsub.f32 0.0, %v2510
    %v2514 = vmul.f32 %v2512, 1.442695
    %v2515 = vpow.pop %v2514
    %v2516 = vmul.f32 %v2513, 1.442695
    %v2517 = vpow.pop %v2516
    %v2518 = vadd.f32 %v2515, 1.0
    %v2519 = vadd.f32 %v2517, 1.0
    %v2520 = vrcp.pop %v2518
    %v2521 = vmul.f32 %v2518, %v2520
    %v2522 = vsub.f32 1.0, %v2521
    %v2523 = vmul.f32 %v2520, %v2522
    %v2524 = vadd.f32 %v2520, %v2523
    %vm2525 = vweird.f32 %v2518
    %vm2526 = vweird.f32 %v2520
    %vm2527 = vmor %vm2525, %vm2526
    %v2528 = vsel %vm2527, %v2520, %v2524
    %v2529 = vand.u32 2147483647, %v2518
    %vm2530 = vcmp.eq.f32.partialorder %v2529, 8.507059e+37
    %v2531 = vand.u32 %v2518, 2147483648
    %v2532 = vor.u32 1.1754944e-38, %v2531
    %v2533 = vsel %vm2530, %v2532, %v2528
    %v2534 = vmul.f32 1.0, %v2533
    %v2535 = vrcp.pop %v2519
    %v2536 = vmul.f32 %v2519, %v2535
    %v2537 = vsub.f32 1.0, %v2536
    %v2538 = vmul.f32 %v2535, %v2537
    %v2539 = vadd.f32 %v2535, %v2538
    %vm2540 = vweird.f32 %v2519
    %vm2541 = vweird.f32 %v2535
    %vm2542 = vmor %vm2540, %vm2541
    %v2543 = vsel %vm2542, %v2535, %v2539
    %v2544 = vand.u32 2147483647, %v2519
    %vm2545 = vcmp.eq.f32.partialorder %v2544, 8.507059e+37
    %v2546 = vand.u32 %v2519, 2147483648
    %v2547 = vor.u32 1.1754944e-38, %v2546
    %v2548 = vsel %vm2545, %v2547, %v2543
    %v2549 = vmul.f32 1.0, %v2548
    %2552 = vrot.lane.b32.xlu0 %v820, 8
    %v2553 = vpop.permute.xlu0 %2552
    %2554 = vrot.lane.b32.xlu0 %v835, 8
    %v2555 = vpop.permute.xlu0 %2554
    %2560 = vrot.lane.b32.xlu0 %v2534, 16
    %v2561 = vpop.permute.xlu0 %2560
    %2562 = vrot.lane.b32.xlu0 %v2549, 16
    %v2563 = vpop.permute.xlu0 %2562
    %v2566 = vsel %vm151, %v200, %v2553
    %v2567 = vsel %vm151, %v201, %v2555
    %v2568 = vsel %vm154, %v2566, %v2561
    %v2569 = vsel %vm154, %v2567, %v2563
    %v2570 = vperm.slane %v53, 0
    %v2572 = vsel %vm157, %v2568, 0
    %v2575 = vsel %vm157, %v2569, 0
    %2577 = vmatpush.msra.mxu0 0.0
    %2578 = vmatpush.msra.mxu0 0.0
    %2579 = vmatpush.msra.mxu0 0.0
    %2580 = vmatpush.msra.mxu0 0.0
    %2581 = vmatpush.msra.mxu0 0.0
    %2582 = vmatpush.msra.mxu0 0.0
    %2583 = vmatpush.msra.mxu0 0.0
    %2584 = vmatpush.msra.mxu0 0.0
    %2585 = vmatpush.msra.mxu0 0.0
    %2586 = vmatpush.msra.mxu0 0.0
    %2587 = vmatpush.msra.mxu0 0.0
    %2588 = vmatpush.msra.mxu0 0.0
    %2589 = vmatpush.msra.mxu0 0.0
    %2590 = vmatpush.msra.mxu0 %v48
    %2591 = vmatpush.msra.mxu0 %v47
    %2592 = vmatpush.msra.mxu0 %v46
    %2593 = vmatmul.f32.gmra.mxu0 %v2572
    %v2594 = vpop.f32.mrf.mxu0
    %v2595 = vadd.f32 %v2570, %v2594
    %2596 = vmatmul.f32.gmra.mxu0 %v2575
    %v2597 = vpop.f32.mrf.mxu0
    %v2598 = vadd.f32 %v2570, %v2597
    %2599 = vdwg.mxu0
    %s2600 = scalar_lea.vmem %s0, 16
    %v2601 = vld [vmem:[%s2600] sm:$0xff]
    %v2602 = vld [vmem:[%s2600 + $0x8] sm:$0xff]
    %v2605 = vrot.slane %v2601, 5
    %v2606 = vrot.slane %v2602, 5
    %v2607 = vsel %vm69, %v2605, %v2606
    %v2611 = vsel %vm69, 0.0, %v2605
    %v2612 = vsel %vm69, %v2606, 0.0
    %v2615 = vrot.slane %v2611, 1
    %v2616 = vrot.slane %v2607, 1
    %v2617 = vsel %vm80, %v2615, %v2616
    %v2618 = vrot.slane %v2612, 1
    %v2619 = vsel %vm80, %v2616, %v2618
    %2620 = vrot.lane.b32.xlu0 %v2617, 8
    %v2621 = vpop.permute.xlu0 %2620
    %2622 = vrot.lane.b32.xlu0 %v2619, 8
    %v2623 = vpop.permute.xlu0 %2622
    %v2626 = vrot.slane %v2611, 2
    %v2627 = vrot.slane %v2607, 2
    %v2628 = vsel %vm92, %v2626, %v2627
    %v2629 = vrot.slane %v2612, 2
    %v2630 = vsel %vm92, %v2627, %v2629
    %2631 = vrot.lane.b32.xlu0 %v2628, 16
    %v2632 = vpop.permute.xlu0 %2631
    %2633 = vrot.lane.b32.xlu0 %v2630, 16
    %v2634 = vpop.permute.xlu0 %2633
    %v2637 = vrot.slane %v2611, 3
    %v2638 = vrot.slane %v2607, 3
    %v2639 = vsel %vm104, %v2637, %v2638
    %v2640 = vrot.slane %v2612, 3
    %v2641 = vsel %vm104, %v2638, %v2640
    %2642 = vrot.lane.b32.xlu0 %v2639, 24
    %v2643 = vpop.permute.xlu0 %2642
    %2644 = vrot.lane.b32.xlu0 %v2641, 24
    %v2645 = vpop.permute.xlu0 %2644
    %v2648 = vrot.slane %v2611, 4
    %v2649 = vrot.slane %v2607, 4
    %v2650 = vsel %vm116, %v2648, %v2649
    %v2651 = vrot.slane %v2612, 4
    %v2652 = vsel %vm116, %v2649, %v2651
    %2653 = vrot.lane.b32.xlu0 %v2650, 32
    %v2654 = vpop.permute.xlu0 %2653
    %2655 = vrot.lane.b32.xlu0 %v2652, 32
    %v2656 = vpop.permute.xlu0 %2655
    %v2659 = vrot.slane %v2611, 5
    %v2660 = vrot.slane %v2607, 5
    %v2661 = vsel %vm69, %v2659, %v2660
    %v2662 = vrot.slane %v2612, 5
    %v2663 = vsel %vm69, %v2660, %v2662
    %2664 = vrot.lane.b32.xlu0 %v2661, 40
    %v2665 = vpop.permute.xlu0 %2664
    %2666 = vrot.lane.b32.xlu0 %v2663, 40
    %v2667 = vpop.permute.xlu0 %2666
    %v2670 = vrot.slane %v2611, 6
    %v2671 = vrot.slane %v2607, 6
    %v2672 = vsel %vm139, %v2670, %v2671
    %v2673 = vrot.slane %v2612, 6
    %v2674 = vsel %vm139, %v2671, %v2673
    %2675 = vrot.lane.b32.xlu0 %v2672, 48
    %v2676 = vpop.permute.xlu0 %2675
    %2677 = vrot.lane.b32.xlu0 %v2674, 48
    %v2678 = vpop.permute.xlu0 %2677
    %v2681 = vsel %vm151, %v2611, %v2621
    %v2682 = vsel %vm151, %v2607, %v2623
    %v2683 = vsel %vm154, %v2681, %v2632
    %v2684 = vsel %vm154, %v2682, %v2634
    %v2685 = vsel %vm157, %v2683, %v2643
    %v2686 = vsel %vm157, %v2684, %v2645
    %v2687 = vsel %vm160, %v2685, %v2654
    %v2688 = vsel %vm160, %v2686, %v2656
    %v2689 = vsel %vm163, %v2687, %v2665
    %v2690 = vsel %vm163, %v2688, %v2667
    %v2691 = vsel %vm166, %v2689, %v2676
    %v2692 = vsel %vm166, %v2690, %v2678
    %v2694 = vsel %vm170, %v2691, 0
    %v2697 = vsel %vm170, %v2692, 0
    %2699 = vmatpush.msra.mxu0 0.0
    %2700 = vmatpush.msra.mxu0 0.0
    %2701 = vmatpush.msra.mxu0 0.0
    %2702 = vmatpush.msra.mxu0 0.0
    %2703 = vmatpush.msra.mxu0 0.0
    %2704 = vmatpush.msra.mxu0 0.0
    %2705 = vmatpush.msra.mxu0 0.0
    %2706 = vmatpush.msra.mxu0 0.0
    %2707 = vmatpush.msra.mxu0 0.0
    %2708 = vmatpush.msra.mxu0 %v34
    %2709 = vmatpush.msra.mxu0 %v33
    %2710 = vmatpush.msra.mxu0 %v32
    %2711 = vmatpush.msra.mxu0 %v31
    %2712 = vmatpush.msra.mxu0 %v30
    %2713 = vmatpush.msra.mxu0 %v29
    %2714 = vmatpush.msra.mxu0 %v28
    %2715 = vmatmul.f32.gmra.mxu0 %v2694
    %v2716 = vpop.f32.mrf.mxu0
    %v2717 = vadd.f32 %v169, %v2716
    %2718 = vmatmul.f32.gmra.mxu0 %v2697
    %v2719 = vpop.f32.mrf.mxu0
    %v2720 = vadd.f32 %v169, %v2719
    %2721 = vdwg.mxu0
    %v2722 = vmax.f32 %v2717, 0.0
    %v2723 = vmax.f32 %v2720, 0.0
    %2724 = vxpose.xlu0.b32.start [1/16] %v2722, 128
    %2725 = vxpose.xlu0.b32.cont [2/16] %v2723, 128
    %2726 = vxpose.xlu0.b32.cont [3/16] 0.0, 128
    %2727 = vxpose.xlu0.b32.cont [4/16] 0.0, 128
    %2728 = vxpose.xlu0.b32.cont [5/16] 0.0, 128
    %2729 = vxpose.xlu0.b32.cont [6/16] 0.0, 128
    %2730 = vxpose.xlu0.b32.cont [7/16] 0.0, 128
    %2731 = vxpose.xlu0.b32.cont [8/16] 0.0, 128
    %2732 = vxpose.xlu0.b32.cont [9/16] 0.0, 128
    %2733 = vxpose.xlu0.b32.cont [10/16] 0.0, 128
    %2734 = vxpose.xlu0.b32.cont [11/16] 0.0, 128
    %2735 = vxpose.xlu0.b32.cont [12/16] 0.0, 128
    %2736 = vxpose.xlu0.b32.cont [13/16] 0.0, 128
    %2737 = vxpose.xlu0.b32.cont [14/16] 0.0, 128
    %2738 = vxpose.xlu0.b32.cont [15/16] 0.0, 128
    %2739 = vxpose.xlu0.b32.end [16/16] 0.0, 128
    %v2740 = vpop.trf.xlu0
    %v2741 = vpop.trf.xlu0
    %v2742 = vpop.trf.xlu0
    %v2743 = vpop.trf.xlu0
    %v2744 = vpop.trf.xlu0
    %v2745 = vpop.trf.xlu0
    %v2746 = vpop.trf.xlu0
    %v2747 = vpop.trf.xlu0
    %v2748 = vpop.trf.xlu0
    %v2749 = vpop.trf.xlu0
    %v2750 = vpop.trf.xlu0
    %v2751 = vpop.trf.xlu0
    %v2752 = vpop.trf.xlu0
    %v2753 = vpop.trf.xlu0
    %v2754 = vpop.trf.xlu0
    %v2755 = vpop.trf.xlu0
    %v2757 = vsel %vm154, %v2740, 0
    %2759 = vmatpush.msra.mxu0 0.0
    %2760 = vmatpush.msra.mxu0 0.0
    %2761 = vmatpush.msra.mxu0 0.0
    %2762 = vmatpush.msra.mxu0 0.0
    %2763 = vmatpush.msra.mxu0 0.0
    %2764 = vmatpush.msra.mxu0 0.0
    %2765 = vmatpush.msra.mxu0 0.0
    %2766 = vmatpush.msra.mxu0 0.0
    %2767 = vmatpush.msra.mxu0 0.0
    %2768 = vmatpush.msra.mxu0 0.0
    %2769 = vmatpush.msra.mxu0 0.0
    %2770 = vmatpush.msra.mxu0 0.0
    %2771 = vmatpush.msra.mxu0 0.0
    %2772 = vmatpush.msra.mxu0 0.0
    %2773 = vmatpush.msra.mxu0 %v37
    %2774 = vmatpush.msra.mxu0 %v36
    %2775 = vmatmul.f32.gmra.mxu0 %v2757
    %v2776 = vpop.f32.mrf.mxu0
    %v2777 = vadd.f32 0.0, %v2776
    %2778 = vdwg.mxu0
    %v2780 = vrot.slane %v2777, 1
    %v2781 = vrot.slane %v2777, 2
    %v2782 = vrot.slane %v2777, 3
    %v2783 = vrot.slane %v2777, 4
    %v2784 = vrot.slane %v2777, 5
    %v2785 = vrot.slane %v2777, 6
    %v2786 = vrot.slane %v2777, 7
    %v2787 = vperm.slane %v2777, 0
    %v2788 = vperm.slane %v2780, 0
    %v2789 = vperm.slane %v2781, 0
    %v2790 = vperm.slane %v2782, 0
    %v2791 = vperm.slane %v2783, 0
    %v2792 = vperm.slane %v2784, 0
    %v2793 = vperm.slane %v2785, 0
    %v2794 = vperm.slane %v2786, 0
    %2803 = vrot.lane.b32.xlu0 %v2777, 96
    %v2804 = vpop.permute.xlu0 %2803
    %v2806 = vadd.f32 %v2787, %v2804
    %v2807 = vadd.f32 %v2788, %v2804
    %v2808 = vadd.f32 %v2789, %v2804
    %v2809 = vadd.f32 %v2790, %v2804
    %v2810 = vadd.f32 %v2791, %v2804
    %v2811 = vadd.f32 %v2792, %v2804
    %v2812 = vadd.f32 %v2793, %v2804
    %v2813 = vadd.f32 %v2794, %v2804
    %v2814 = vadd.f32 %v2806, %v292
    %v2815 = vadd.f32 %v2807, %v292
    %v2816 = vadd.f32 %v2808, %v292
    %v2817 = vadd.f32 %v2809, %v292
    %v2818 = vadd.f32 %v2810, %v292
    %v2819 = vadd.f32 %v2811, %v292
    %v2820 = vadd.f32 %v2812, %v292
    %v2821 = vadd.f32 %v2813, %v292
    %vm2822 = vcmp.ge.f32.partialorder %v2814, 0.0
    %vm2823 = vcmp.ge.f32.partialorder %v2815, 0.0
    %vm2824 = vcmp.ge.f32.partialorder %v2816, 0.0
    %vm2825 = vcmp.ge.f32.partialorder %v2817, 0.0
    %vm2826 = vcmp.ge.f32.partialorder %v2818, 0.0
    %vm2827 = vcmp.ge.f32.partialorder %v2819, 0.0
    %vm2828 = vcmp.ge.f32.partialorder %v2820, 0.0
    %vm2829 = vcmp.ge.f32.partialorder %v2821, 0.0
    %v2830 = vmul.f32 %v2814, 0.2
    %v2831 = vmul.f32 %v2815, 0.2
    %v2832 = vmul.f32 %v2816, 0.2
    %v2833 = vmul.f32 %v2817, 0.2
    %v2834 = vmul.f32 %v2818, 0.2
    %v2835 = vmul.f32 %v2819, 0.2
    %v2836 = vmul.f32 %v2820, 0.2
    %v2837 = vmul.f32 %v2821, 0.2
    %v2838 = vsel %vm2822, %v2814, %v2830
    %v2839 = vsel %vm2823, %v2815, %v2831
    %v2840 = vsel %vm2824, %v2816, %v2832
    %v2841 = vsel %vm2825, %v2817, %v2833
    %v2842 = vsel %vm2826, %v2818, %v2834
    %v2843 = vsel %vm2827, %v2819, %v2835
    %v2844 = vsel %vm2828, %v2820, %v2836
    %v2845 = vsel %vm2829, %v2821, %v2837
    %v2846 = vmul.f32 %v2838, %v325
    %v2847 = vmul.f32 %v2839, %v325
    %v2848 = vmul.f32 %v2840, %v325
    %v2849 = vmul.f32 %v2841, %v325
    %v2850 = vmul.f32 %v2842, %v325
    %v2851 = vmul.f32 %v2843, %v325
    %v2852 = vmul.f32 %v2844, %v325
    %v2853 = vmul.f32 %v2845, %v325
    %v2854 = vsel %vm160, %v2846, 0.0
    %2855 = vadd.xlane.f32.xlu0 %v2854
    %v2856 = vpop.xlane.xlu0 %2855
    %v2857 = vsel %vm160, %v2847, 0.0
    %2858 = vadd.xlane.f32.xlu0 %v2857
    %v2859 = vpop.xlane.xlu0 %2858
    %v2860 = vsel %vm160, %v2848, 0.0
    %2861 = vadd.xlane.f32.xlu0 %v2860
    %v2862 = vpop.xlane.xlu0 %2861
    %v2863 = vsel %vm160, %v2849, 0.0
    %2864 = vadd.xlane.f32.xlu0 %v2863
    %v2865 = vpop.xlane.xlu0 %2864
    %v2866 = vsel %vm160, %v2850, 0.0
    %2867 = vadd.xlane.f32.xlu0 %v2866
    %v2868 = vpop.xlane.xlu0 %2867
    %v2869 = vsel %vm160, %v2851, 0.0
    %2870 = vadd.xlane.f32.xlu0 %v2869
    %v2871 = vpop.xlane.xlu0 %2870
    %v2872 = vsel %vm160, %v2852, 0.0
    %2873 = vadd.xlane.f32.xlu0 %v2872
    %v2874 = vpop.xlane.xlu0 %2873
    %v2875 = vsel %vm160, %v2853, 0.0
    %2876 = vadd.xlane.f32.xlu0 %v2875
    %v2877 = vpop.xlane.xlu0 %2876
    %v2878 = vadd.f32 %v2856, %v365
    %v2879 = vadd.f32 %v2859, %v372
    %v2880 = vadd.f32 %v2862, %v379
    %v2881 = vadd.f32 %v2865, %v386
    %v2882 = vadd.f32 %v2868, %v393
    %v2883 = vadd.f32 %v2871, %v400
    %v2884 = vadd.f32 %v2874, %v407
    %v2885 = vadd.f32 %v2877, %v414
    %2894 = vset.pattern.permute.xlu0 0
    %2895 = vperm.xlu0 %2894, %v2878
    %v2896 = vpop.permute.xlu0 %2895
    %2897 = vset.pattern.permute.xlu0 0
    %2898 = vperm.xlu0 %2897, %v2879
    %v2899 = vpop.permute.xlu0 %2898
    %2900 = vset.pattern.permute.xlu0 0
    %2901 = vperm.xlu0 %2900, %v2880
    %v2902 = vpop.permute.xlu0 %2901
    %2903 = vset.pattern.permute.xlu0 0
    %2904 = vperm.xlu0 %2903, %v2881
    %v2905 = vpop.permute.xlu0 %2904
    %2906 = vset.pattern.permute.xlu0 0
    %2907 = vperm.xlu0 %2906, %v2882
    %v2908 = vpop.permute.xlu0 %2907
    %2909 = vset.pattern.permute.xlu0 0
    %2910 = vperm.xlu0 %2909, %v2883
    %v2911 = vpop.permute.xlu0 %2910
    %2912 = vset.pattern.permute.xlu0 0
    %2913 = vperm.xlu0 %2912, %v2884
    %v2914 = vpop.permute.xlu0 %2913
    %2915 = vset.pattern.permute.xlu0 0
    %2916 = vperm.xlu0 %2915, %v2885
    %v2917 = vpop.permute.xlu0 %2916
    %v2918 = vperm.slane %v2896, %v464
    %v2919 = vperm.slane %v2899, %v464
    %v2920 = vperm.slane %v2902, %v464
    %v2921 = vperm.slane %v2905, %v464
    %v2922 = vperm.slane %v2908, %v464
    %v2923 = vperm.slane %v2911, %v464
    %v2924 = vperm.slane %v2914, %v464
    %v2925 = vperm.slane %v2917, %v464
    %v2926 = vsel %vm473, %v2919, %v2918
    %v2927 = vsel %vm475, %v2920, %v2926
    %v2928 = vsel %vm477, %v2921, %v2927
    %v2929 = vsel %vm479, %v2922, %v2928
    %v2930 = vsel %vm481, %v2923, %v2929
    %v2931 = vsel %vm483, %v2924, %v2930
    %v2932 = vsel %vm485, %v2925, %v2931
    %v2934 = vsel %vm151, %v2932, -inf
    %2935 = vmax.xlane.f32.xlu0 %v2934
    %v2936 = vpop.xlane.xlu0 %2935
    %v2938 = vperm.slane %v2936, 0
    %v2939 = vperm.slane %v2936, 1
    %v2940 = vperm.slane %v2936, 2
    %v2941 = vperm.slane %v2936, 3
    %v2942 = vperm.slane %v2936, 4
    %v2943 = vperm.slane %v2936, 5
    %v2944 = vperm.slane %v2936, 6
    %v2945 = vperm.slane %v2936, 7
    %v2954 = vsub.f32 %v2878, %v2938
    %v2955 = vsub.f32 %v2879, %v2939
    %v2956 = vsub.f32 %v2880, %v2940
    %v2957 = vsub.f32 %v2881, %v2941
    %v2958 = vsub.f32 %v2882, %v2942
    %v2959 = vsub.f32 %v2883, %v2943
    %v2960 = vsub.f32 %v2884, %v2944
    %v2961 = vsub.f32 %v2885, %v2945
    %v2962 = vmul.f32 %v2954, 1.442695
    %v2963 = vpow.pop %v2962
    %v2964 = vmul.f32 %v2955, 1.442695
    %v2965 = vpow.pop %v2964
    %v2966 = vmul.f32 %v2956, 1.442695
    %v2967 = vpow.pop %v2966
    %v2968 = vmul.f32 %v2957, 1.442695
    %v2969 = vpow.pop %v2968
    %v2970 = vmul.f32 %v2958, 1.442695
    %v2971 = vpow.pop %v2970
    %v2972 = vmul.f32 %v2959, 1.442695
    %v2973 = vpow.pop %v2972
    %v2974 = vmul.f32 %v2960, 1.442695
    %v2975 = vpow.pop %v2974
    %v2976 = vmul.f32 %v2961, 1.442695
    %v2977 = vpow.pop %v2976
    %2986 = vset.pattern.permute.xlu0 0
    %2987 = vperm.xlu0 %2986, %v2963
    %v2988 = vpop.permute.xlu0 %2987
    %2989 = vset.pattern.permute.xlu0 0
    %2990 = vperm.xlu0 %2989, %v2965
    %v2991 = vpop.permute.xlu0 %2990
    %2992 = vset.pattern.permute.xlu0 0
    %2993 = vperm.xlu0 %2992, %v2967
    %v2994 = vpop.permute.xlu0 %2993
    %2995 = vset.pattern.permute.xlu0 0
    %2996 = vperm.xlu0 %2995, %v2969
    %v2997 = vpop.permute.xlu0 %2996
    %2998 = vset.pattern.permute.xlu0 0
    %2999 = vperm.xlu0 %2998, %v2971
    %v3000 = vpop.permute.xlu0 %2999
    %3001 = vset.pattern.permute.xlu0 0
    %3002 = vperm.xlu0 %3001, %v2973
    %v3003 = vpop.permute.xlu0 %3002
    %3004 = vset.pattern.permute.xlu0 0
    %3005 = vperm.xlu0 %3004, %v2975
    %v3006 = vpop.permute.xlu0 %3005
    %3007 = vset.pattern.permute.xlu0 0
    %3008 = vperm.xlu0 %3007, %v2977
    %v3009 = vpop.permute.xlu0 %3008
    %v3010 = vperm.slane %v2988, %v464
    %v3011 = vperm.slane %v2991, %v464
    %v3012 = vperm.slane %v2994, %v464
    %v3013 = vperm.slane %v2997, %v464
    %v3014 = vperm.slane %v3000, %v464
    %v3015 = vperm.slane %v3003, %v464
    %v3016 = vperm.slane %v3006, %v464
    %v3017 = vperm.slane %v3009, %v464
    %v3018 = vsel %vm473, %v3011, %v3010
    %v3019 = vsel %vm475, %v3012, %v3018
    %v3020 = vsel %vm477, %v3013, %v3019
    %v3021 = vsel %vm479, %v3014, %v3020
    %v3022 = vsel %vm481, %v3015, %v3021
    %v3023 = vsel %vm483, %v3016, %v3022
    %v3024 = vsel %vm485, %v3017, %v3023
    %v3026 = vsel %vm151, %v3024, 0.0
    %3027 = vadd.xlane.f32.xlu0 %v3026
    %v3028 = vpop.xlane.xlu0 %3027
    %v3030 = vperm.slane %v3028, 0
    %v3031 = vperm.slane %v3028, 1
    %v3032 = vperm.slane %v3028, 2
    %v3033 = vperm.slane %v3028, 3
    %v3034 = vperm.slane %v3028, 4
    %v3035 = vperm.slane %v3028, 5
    %v3036 = vperm.slane %v3028, 6
    %v3037 = vperm.slane %v3028, 7
    %v3046 = vrcp.pop %v3030
    %v3047 = vmul.f32 %v3030, %v3046
    %v3048 = vsub.f32 1.0, %v3047
    %v3049 = vmul.f32 %v3046, %v3048
    %v3050 = vadd.f32 %v3046, %v3049
    %vm3051 = vweird.f32 %v3030
    %vm3052 = vweird.f32 %v3046
    %vm3053 = vmor %vm3051, %vm3052
    %v3054 = vsel %vm3053, %v3046, %v3050
    %v3055 = vand.u32 2147483647, %v3030
    %vm3056 = vcmp.eq.f32.partialorder %v3055, 8.507059e+37
    %v3057 = vand.u32 %v3030, 2147483648
    %v3058 = vor.u32 1.1754944e-38, %v3057
    %v3059 = vsel %vm3056, %v3058, %v3054
    %v3060 = vmul.f32 %v2963, %v3059
    %v3061 = vrcp.pop %v3031
    %v3062 = vmul.f32 %v3031, %v3061
    %v3063 = vsub.f32 1.0, %v3062
    %v3064 = vmul.f32 %v3061, %v3063
    %v3065 = vadd.f32 %v3061, %v3064
    %vm3066 = vweird.f32 %v3031
    %vm3067 = vweird.f32 %v3061
    %vm3068 = vmor %vm3066, %vm3067
    %v3069 = vsel %vm3068, %v3061, %v3065
    %v3070 = vand.u32 2147483647, %v3031
    %vm3071 = vcmp.eq.f32.partialorder %v3070, 8.507059e+37
    %v3072 = vand.u32 %v3031, 2147483648
    %v3073 = vor.u32 1.1754944e-38, %v3072
    %v3074 = vsel %vm3071, %v3073, %v3069
    %v3075 = vmul.f32 %v2965, %v3074
    %v3076 = vrcp.pop %v3032
    %v3077 = vmul.f32 %v3032, %v3076
    %v3078 = vsub.f32 1.0, %v3077
    %v3079 = vmul.f32 %v3076, %v3078
    %v3080 = vadd.f32 %v3076, %v3079
    %vm3081 = vweird.f32 %v3032
    %vm3082 = vweird.f32 %v3076
    %vm3083 = vmor %vm3081, %vm3082
    %v3084 = vsel %vm3083, %v3076, %v3080
    %v3085 = vand.u32 2147483647, %v3032
    %vm3086 = vcmp.eq.f32.partialorder %v3085, 8.507059e+37
    %v3087 = vand.u32 %v3032, 2147483648
    %v3088 = vor.u32 1.1754944e-38, %v3087
    %v3089 = vsel %vm3086, %v3088, %v3084
    %v3090 = vmul.f32 %v2967, %v3089
    %v3091 = vrcp.pop %v3033
    %v3092 = vmul.f32 %v3033, %v3091
    %v3093 = vsub.f32 1.0, %v3092
    %v3094 = vmul.f32 %v3091, %v3093
    %v3095 = vadd.f32 %v3091, %v3094
    %vm3096 = vweird.f32 %v3033
    %vm3097 = vweird.f32 %v3091
    %vm3098 = vmor %vm3096, %vm3097
    %v3099 = vsel %vm3098, %v3091, %v3095
    %v3100 = vand.u32 2147483647, %v3033
    %vm3101 = vcmp.eq.f32.partialorder %v3100, 8.507059e+37
    %v3102 = vand.u32 %v3033, 2147483648
    %v3103 = vor.u32 1.1754944e-38, %v3102
    %v3104 = vsel %vm3101, %v3103, %v3099
    %v3105 = vmul.f32 %v2969, %v3104
    %v3106 = vrcp.pop %v3034
    %v3107 = vmul.f32 %v3034, %v3106
    %v3108 = vsub.f32 1.0, %v3107
    %v3109 = vmul.f32 %v3106, %v3108
    %v3110 = vadd.f32 %v3106, %v3109
    %vm3111 = vweird.f32 %v3034
    %vm3112 = vweird.f32 %v3106
    %vm3113 = vmor %vm3111, %vm3112
    %v3114 = vsel %vm3113, %v3106, %v3110
    %v3115 = vand.u32 2147483647, %v3034
    %vm3116 = vcmp.eq.f32.partialorder %v3115, 8.507059e+37
    %v3117 = vand.u32 %v3034, 2147483648
    %v3118 = vor.u32 1.1754944e-38, %v3117
    %v3119 = vsel %vm3116, %v3118, %v3114
    %v3120 = vmul.f32 %v2971, %v3119
    %v3121 = vrcp.pop %v3035
    %v3122 = vmul.f32 %v3035, %v3121
    %v3123 = vsub.f32 1.0, %v3122
    %v3124 = vmul.f32 %v3121, %v3123
    %v3125 = vadd.f32 %v3121, %v3124
    %vm3126 = vweird.f32 %v3035
    %vm3127 = vweird.f32 %v3121
    %vm3128 = vmor %vm3126, %vm3127
    %v3129 = vsel %vm3128, %v3121, %v3125
    %v3130 = vand.u32 2147483647, %v3035
    %vm3131 = vcmp.eq.f32.partialorder %v3130, 8.507059e+37
    %v3132 = vand.u32 %v3035, 2147483648
    %v3133 = vor.u32 1.1754944e-38, %v3132
    %v3134 = vsel %vm3131, %v3133, %v3129
    %v3135 = vmul.f32 %v2973, %v3134
    %v3136 = vrcp.pop %v3036
    %v3137 = vmul.f32 %v3036, %v3136
    %v3138 = vsub.f32 1.0, %v3137
    %v3139 = vmul.f32 %v3136, %v3138
    %v3140 = vadd.f32 %v3136, %v3139
    %vm3141 = vweird.f32 %v3036
    %vm3142 = vweird.f32 %v3136
    %vm3143 = vmor %vm3141, %vm3142
    %v3144 = vsel %vm3143, %v3136, %v3140
    %v3145 = vand.u32 2147483647, %v3036
    %vm3146 = vcmp.eq.f32.partialorder %v3145, 8.507059e+37
    %v3147 = vand.u32 %v3036, 2147483648
    %v3148 = vor.u32 1.1754944e-38, %v3147
    %v3149 = vsel %vm3146, %v3148, %v3144
    %v3150 = vmul.f32 %v2975, %v3149
    %v3151 = vrcp.pop %v3037
    %v3152 = vmul.f32 %v3037, %v3151
    %v3153 = vsub.f32 1.0, %v3152
    %v3154 = vmul.f32 %v3151, %v3153
    %v3155 = vadd.f32 %v3151, %v3154
    %vm3156 = vweird.f32 %v3037
    %vm3157 = vweird.f32 %v3151
    %vm3158 = vmor %vm3156, %vm3157
    %v3159 = vsel %vm3158, %v3151, %v3155
    %v3160 = vand.u32 2147483647, %v3037
    %vm3161 = vcmp.eq.f32.partialorder %v3160, 8.507059e+37
    %v3162 = vand.u32 %v3037, 2147483648
    %v3163 = vor.u32 1.1754944e-38, %v3162
    %v3164 = vsel %vm3161, %v3163, %v3159
    %v3165 = vmul.f32 %v2977, %v3164
    %3174 = vset.pattern.permute.xlu0 0
    %3175 = vperm.xlu0 %3174, %v3060
    %v3176 = vpop.permute.xlu0 %3175
    %3177 = vset.pattern.permute.xlu0 0
    %3178 = vperm.xlu0 %3177, %v3075
    %v3179 = vpop.permute.xlu0 %3178
    %3180 = vset.pattern.permute.xlu0 0
    %3181 = vperm.xlu0 %3180, %v3090
    %v3182 = vpop.permute.xlu0 %3181
    %3183 = vset.pattern.permute.xlu0 0
    %3184 = vperm.xlu0 %3183, %v3105
    %v3185 = vpop.permute.xlu0 %3184
    %3186 = vset.pattern.permute.xlu0 0
    %3187 = vperm.xlu0 %3186, %v3120
    %v3188 = vpop.permute.xlu0 %3187
    %3189 = vset.pattern.permute.xlu0 0
    %3190 = vperm.xlu0 %3189, %v3135
    %v3191 = vpop.permute.xlu0 %3190
    %3192 = vset.pattern.permute.xlu0 0
    %3193 = vperm.xlu0 %3192, %v3150
    %v3194 = vpop.permute.xlu0 %3193
    %3195 = vset.pattern.permute.xlu0 0
    %3196 = vperm.xlu0 %3195, %v3165
    %v3197 = vpop.permute.xlu0 %3196
    %v3198 = vperm.slane %v3176, %v464
    %v3199 = vperm.slane %v3179, %v464
    %v3200 = vperm.slane %v3182, %v464
    %v3201 = vperm.slane %v3185, %v464
    %v3202 = vperm.slane %v3188, %v464
    %v3203 = vperm.slane %v3191, %v464
    %v3204 = vperm.slane %v3194, %v464
    %v3205 = vperm.slane %v3197, %v464
    %v3206 = vsel %vm473, %v3199, %v3198
    %v3207 = vsel %vm475, %v3200, %v3206
    %v3208 = vsel %vm477, %v3201, %v3207
    %v3209 = vsel %vm479, %v3202, %v3208
    %v3210 = vsel %vm481, %v3203, %v3209
    %v3211 = vsel %vm483, %v3204, %v3210
    %v3212 = vsel %vm485, %v3205, %v3211
    %v3214 = vsel %vm151, %v2722, 0
    %v3217 = vsel %vm151, %v2723, 0
    %v3219 = vsel %vm151, %v3212, 0
    %3221 = vmatpush.xpose.msra.mxu0 0.0
    %3222 = vmatpush.xpose.msra.mxu0 0.0
    %3223 = vmatpush.xpose.msra.mxu0 0.0
    %3224 = vmatpush.xpose.msra.mxu0 0.0
    %3225 = vmatpush.xpose.msra.mxu0 0.0
    %3226 = vmatpush.xpose.msra.mxu0 0.0
    %3227 = vmatpush.xpose.msra.mxu0 0.0
    %3228 = vmatpush.xpose.msra.mxu0 0.0
    %3229 = vmatpush.xpose.msra.mxu0 0.0
    %3230 = vmatpush.xpose.msra.mxu0 0.0
    %3231 = vmatpush.xpose.msra.mxu0 0.0
    %3232 = vmatpush.xpose.msra.mxu0 0.0
    %3233 = vmatpush.xpose.msra.mxu0 0.0
    %3234 = vmatpush.xpose.msra.mxu0 0.0
    %3235 = vmatpush.xpose.msra.mxu0 0.0
    %3236 = vmatpush.xpose.msra.mxu0 %v3219
    %3237 = vmatmul.f32.gmra.mxu0 %v3214
    %v3238 = vpop.f32.mrf.mxu0
    %v3239 = vadd.f32 0.0, %v3238
    %3240 = vmatmul.f32.gmra.mxu0 %v3217
    %v3241 = vpop.f32.mrf.mxu0
    %v3242 = vadd.f32 0.0, %v3241
    %3243 = vdwg.mxu0
    %v3244 = vsub.f32 0.0, %v3239
    %v3245 = vsub.f32 0.0, %v3242
    %v3246 = vmul.f32 %v3244, 1.442695
    %v3247 = vpow.pop %v3246
    %v3248 = vmul.f32 %v3245, 1.442695
    %v3249 = vpow.pop %v3248
    %v3250 = vadd.f32 %v3247, 1.0
    %v3251 = vadd.f32 %v3249, 1.0
    %v3252 = vrcp.pop %v3250
    %v3253 = vmul.f32 %v3250, %v3252
    %v3254 = vsub.f32 1.0, %v3253
    %v3255 = vmul.f32 %v3252, %v3254
    %v3256 = vadd.f32 %v3252, %v3255
    %vm3257 = vweird.f32 %v3250
    %vm3258 = vweird.f32 %v3252
    %vm3259 = vmor %vm3257, %vm3258
    %v3260 = vsel %vm3259, %v3252, %v3256
    %v3261 = vand.u32 2147483647, %v3250
    %vm3262 = vcmp.eq.f32.partialorder %v3261, 8.507059e+37
    %v3263 = vand.u32 %v3250, 2147483648
    %v3264 = vor.u32 1.1754944e-38, %v3263
    %v3265 = vsel %vm3262, %v3264, %v3260
    %v3266 = vmul.f32 1.0, %v3265
    %v3267 = vrcp.pop %v3251
    %v3268 = vmul.f32 %v3251, %v3267
    %v3269 = vsub.f32 1.0, %v3268
    %v3270 = vmul.f32 %v3267, %v3269
    %v3271 = vadd.f32 %v3267, %v3270
    %vm3272 = vweird.f32 %v3251
    %vm3273 = vweird.f32 %v3267
    %vm3274 = vmor %vm3272, %vm3273
    %v3275 = vsel %vm3274, %v3267, %v3271
    %v3276 = vand.u32 2147483647, %v3251
    %vm3277 = vcmp.eq.f32.partialorder %v3276, 8.507059e+37
    %v3278 = vand.u32 %v3251, 2147483648
    %v3279 = vor.u32 1.1754944e-38, %v3278
    %v3280 = vsel %vm3277, %v3279, %v3275
    %v3281 = vmul.f32 1.0, %v3280
    %3282 = vmatpush.msra.mxu0 0.0
    %3283 = vmatpush.msra.mxu0 0.0
    %3284 = vmatpush.msra.mxu0 0.0
    %3285 = vmatpush.msra.mxu0 0.0
    %3286 = vmatpush.msra.mxu0 0.0
    %3287 = vmatpush.msra.mxu0 0.0
    %3288 = vmatpush.msra.mxu0 0.0
    %3289 = vmatpush.msra.mxu0 0.0
    %3290 = vmatpush.msra.mxu0 0.0
    %3291 = vmatpush.msra.mxu0 0.0
    %3292 = vmatpush.msra.mxu0 0.0
    %3293 = vmatpush.msra.mxu0 0.0
    %3294 = vmatpush.msra.mxu0 0.0
    %3295 = vmatpush.msra.mxu0 0.0
    %3296 = vmatpush.msra.mxu0 0.0
    %3297 = vmatpush.msra.mxu0 %v41
    %3298 = vmatmul.f32.gmra.mxu0 %v3214
    %v3299 = vpop.f32.mrf.mxu0
    %v3300 = vadd.f32 0.0, %v3299
    %3301 = vmatmul.f32.gmra.mxu0 %v3217
    %v3302 = vpop.f32.mrf.mxu0
    %v3303 = vadd.f32 0.0, %v3302
    %3304 = vdwg.mxu0
    %v3307 = vrot.slane %v3300, 1
    %v3308 = vrot.slane %v3300, 2
    %v3309 = vrot.slane %v3300, 3
    %v3310 = vrot.slane %v3300, 4
    %v3311 = vrot.slane %v3300, 5
    %v3312 = vrot.slane %v3300, 6
    %v3313 = vrot.slane %v3300, 7
    %v3314 = vrot.slane %v3303, 1
    %v3315 = vrot.slane %v3303, 2
    %v3316 = vrot.slane %v3303, 3
    %v3317 = vrot.slane %v3303, 4
    %v3318 = vrot.slane %v3303, 5
    %v3319 = vrot.slane %v3303, 6
    %v3320 = vrot.slane %v3303, 7
    %v3321 = vperm.slane %v3300, 0
    %v3322 = vperm.slane %v3307, 0
    %v3323 = vperm.slane %v3308, 0
    %v3324 = vperm.slane %v3309, 0
    %v3325 = vperm.slane %v3310, 0
    %v3326 = vperm.slane %v3311, 0
    %v3327 = vperm.slane %v3312, 0
    %v3328 = vperm.slane %v3313, 0
    %v3329 = vperm.slane %v3303, 0
    %v3330 = vperm.slane %v3314, 0
    %v3331 = vperm.slane %v3315, 0
    %v3332 = vperm.slane %v3316, 0
    %v3333 = vperm.slane %v3317, 0
    %v3334 = vperm.slane %v3318, 0
    %v3335 = vperm.slane %v3319, 0
    %v3336 = vperm.slane %v3320, 0
    %3353 = vrot.lane.b32.xlu0 %v3300, 112
    %v3354 = vpop.permute.xlu0 %3353
    %3355 = vrot.lane.b32.xlu0 %v3303, 112
    %v3356 = vpop.permute.xlu0 %3355
    %v3359 = vadd.f32 %v3321, %v3354
    %v3360 = vadd.f32 %v3321, %v3356
    %v3361 = vadd.f32 %v3322, %v3354
    %v3362 = vadd.f32 %v3322, %v3356
    %v3363 = vadd.f32 %v3323, %v3354
    %v3364 = vadd.f32 %v3323, %v3356
    %v3365 = vadd.f32 %v3324, %v3354
    %v3366 = vadd.f32 %v3324, %v3356
    %v3367 = vadd.f32 %v3325, %v3354
    %v3368 = vadd.f32 %v3325, %v3356
    %v3369 = vadd.f32 %v3326, %v3354
    %v3370 = vadd.f32 %v3326, %v3356
    %v3371 = vadd.f32 %v3327, %v3354
    %v3372 = vadd.f32 %v3327, %v3356
    %v3373 = vadd.f32 %v3328, %v3354
    %v3374 = vadd.f32 %v3328, %v3356
    %v3375 = vadd.f32 %v3329, %v3354
    %v3376 = vadd.f32 %v3329, %v3356
    %v3377 = vadd.f32 %v3330, %v3354
    %v3378 = vadd.f32 %v3330, %v3356
    %v3379 = vadd.f32 %v3331, %v3354
    %v3380 = vadd.f32 %v3331, %v3356
    %v3381 = vadd.f32 %v3332, %v3354
    %v3382 = vadd.f32 %v3332, %v3356
    %v3383 = vadd.f32 %v3333, %v3354
    %v3384 = vadd.f32 %v3333, %v3356
    %v3385 = vadd.f32 %v3334, %v3354
    %v3386 = vadd.f32 %v3334, %v3356
    %v3387 = vadd.f32 %v3335, %v3354
    %v3388 = vadd.f32 %v3335, %v3356
    %v3389 = vadd.f32 %v3336, %v3354
    %v3390 = vadd.f32 %v3336, %v3356
    %v3391 = vadd.f32 %v3359, %v945
    %v3392 = vadd.f32 %v3360, %v945
    %v3393 = vadd.f32 %v3361, %v945
    %v3394 = vadd.f32 %v3362, %v945
    %v3395 = vadd.f32 %v3363, %v945
    %v3396 = vadd.f32 %v3364, %v945
    %v3397 = vadd.f32 %v3365, %v945
    %v3398 = vadd.f32 %v3366, %v945
    %v3399 = vadd.f32 %v3367, %v945
    %v3400 = vadd.f32 %v3368, %v945
    %v3401 = vadd.f32 %v3369, %v945
    %v3402 = vadd.f32 %v3370, %v945
    %v3403 = vadd.f32 %v3371, %v945
    %v3404 = vadd.f32 %v3372, %v945
    %v3405 = vadd.f32 %v3373, %v945
    %v3406 = vadd.f32 %v3374, %v945
    %v3407 = vadd.f32 %v3375, %v945
    %v3408 = vadd.f32 %v3376, %v945
    %v3409 = vadd.f32 %v3377, %v945
    %v3410 = vadd.f32 %v3378, %v945
    %v3411 = vadd.f32 %v3379, %v945
    %v3412 = vadd.f32 %v3380, %v945
    %v3413 = vadd.f32 %v3381, %v945
    %v3414 = vadd.f32 %v3382, %v945
    %v3415 = vadd.f32 %v3383, %v945
    %v3416 = vadd.f32 %v3384, %v945
    %v3417 = vadd.f32 %v3385, %v945
    %v3418 = vadd.f32 %v3386, %v945
    %v3419 = vadd.f32 %v3387, %v945
    %v3420 = vadd.f32 %v3388, %v945
    %v3421 = vadd.f32 %v3389, %v945
    %v3422 = vadd.f32 %v3390, %v945
    %vm3423 = vcmp.ge.f32.partialorder %v3391, 0.0
    %vm3424 = vcmp.ge.f32.partialorder %v3392, 0.0
    %vm3425 = vcmp.ge.f32.partialorder %v3393, 0.0
    %vm3426 = vcmp.ge.f32.partialorder %v3394, 0.0
    %vm3427 = vcmp.ge.f32.partialorder %v3395, 0.0
    %vm3428 = vcmp.ge.f32.partialorder %v3396, 0.0
    %vm3429 = vcmp.ge.f32.partialorder %v3397, 0.0
    %vm3430 = vcmp.ge.f32.partialorder %v3398, 0.0
    %vm3431 = vcmp.ge.f32.partialorder %v3399, 0.0
    %vm3432 = vcmp.ge.f32.partialorder %v3400, 0.0
    %vm3433 = vcmp.ge.f32.partialorder %v3401, 0.0
    %vm3434 = vcmp.ge.f32.partialorder %v3402, 0.0
    %vm3435 = vcmp.ge.f32.partialorder %v3403, 0.0
    %vm3436 = vcmp.ge.f32.partialorder %v3404, 0.0
    %vm3437 = vcmp.ge.f32.partialorder %v3405, 0.0
    %vm3438 = vcmp.ge.f32.partialorder %v3406, 0.0
    %vm3439 = vcmp.ge.f32.partialorder %v3407, 0.0
    %vm3440 = vcmp.ge.f32.partialorder %v3408, 0.0
    %vm3441 = vcmp.ge.f32.partialorder %v3409, 0.0
    %vm3442 = vcmp.ge.f32.partialorder %v3410, 0.0
    %vm3443 = vcmp.ge.f32.partialorder %v3411, 0.0
    %vm3444 = vcmp.ge.f32.partialorder %v3412, 0.0
    %vm3445 = vcmp.ge.f32.partialorder %v3413, 0.0
    %vm3446 = vcmp.ge.f32.partialorder %v3414, 0.0
    %vm3447 = vcmp.ge.f32.partialorder %v3415, 0.0
    %vm3448 = vcmp.ge.f32.partialorder %v3416, 0.0
    %vm3449 = vcmp.ge.f32.partialorder %v3417, 0.0
    %vm3450 = vcmp.ge.f32.partialorder %v3418, 0.0
    %vm3451 = vcmp.ge.f32.partialorder %v3419, 0.0
    %vm3452 = vcmp.ge.f32.partialorder %v3420, 0.0
    %vm3453 = vcmp.ge.f32.partialorder %v3421, 0.0
    %vm3454 = vcmp.ge.f32.partialorder %v3422, 0.0
    %v3455 = vmul.f32 %v3391, 0.2
    %v3456 = vmul.f32 %v3392, 0.2
    %v3457 = vmul.f32 %v3393, 0.2
    %v3458 = vmul.f32 %v3394, 0.2
    %v3459 = vmul.f32 %v3395, 0.2
    %v3460 = vmul.f32 %v3396, 0.2
    %v3461 = vmul.f32 %v3397, 0.2
    %v3462 = vmul.f32 %v3398, 0.2
    %v3463 = vmul.f32 %v3399, 0.2
    %v3464 = vmul.f32 %v3400, 0.2
    %v3465 = vmul.f32 %v3401, 0.2
    %v3466 = vmul.f32 %v3402, 0.2
    %v3467 = vmul.f32 %v3403, 0.2
    %v3468 = vmul.f32 %v3404, 0.2
    %v3469 = vmul.f32 %v3405, 0.2
    %v3470 = vmul.f32 %v3406, 0.2
    %v3471 = vmul.f32 %v3407, 0.2
    %v3472 = vmul.f32 %v3408, 0.2
    %v3473 = vmul.f32 %v3409, 0.2
    %v3474 = vmul.f32 %v3410, 0.2
    %v3475 = vmul.f32 %v3411, 0.2
    %v3476 = vmul.f32 %v3412, 0.2
    %v3477 = vmul.f32 %v3413, 0.2
    %v3478 = vmul.f32 %v3414, 0.2
    %v3479 = vmul.f32 %v3415, 0.2
    %v3480 = vmul.f32 %v3416, 0.2
    %v3481 = vmul.f32 %v3417, 0.2
    %v3482 = vmul.f32 %v3418, 0.2
    %v3483 = vmul.f32 %v3419, 0.2
    %v3484 = vmul.f32 %v3420, 0.2
    %v3485 = vmul.f32 %v3421, 0.2
    %v3486 = vmul.f32 %v3422, 0.2
    %v3487 = vsel %vm3423, %v3391, %v3455
    %v3488 = vsel %vm3424, %v3392, %v3456
    %v3489 = vsel %vm3425, %v3393, %v3457
    %v3490 = vsel %vm3426, %v3394, %v3458
    %v3491 = vsel %vm3427, %v3395, %v3459
    %v3492 = vsel %vm3428, %v3396, %v3460
    %v3493 = vsel %vm3429, %v3397, %v3461
    %v3494 = vsel %vm3430, %v3398, %v3462
    %v3495 = vsel %vm3431, %v3399, %v3463
    %v3496 = vsel %vm3432, %v3400, %v3464
    %v3497 = vsel %vm3433, %v3401, %v3465
    %v3498 = vsel %vm3434, %v3402, %v3466
    %v3499 = vsel %vm3435, %v3403, %v3467
    %v3500 = vsel %vm3436, %v3404, %v3468
    %v3501 = vsel %vm3437, %v3405, %v3469
    %v3502 = vsel %vm3438, %v3406, %v3470
    %v3503 = vsel %vm3439, %v3407, %v3471
    %v3504 = vsel %vm3440, %v3408, %v3472
    %v3505 = vsel %vm3441, %v3409, %v3473
    %v3506 = vsel %vm3442, %v3410, %v3474
    %v3507 = vsel %vm3443, %v3411, %v3475
    %v3508 = vsel %vm3444, %v3412, %v3476
    %v3509 = vsel %vm3445, %v3413, %v3477
    %v3510 = vsel %vm3446, %v3414, %v3478
    %v3511 = vsel %vm3447, %v3415, %v3479
    %v3512 = vsel %vm3448, %v3416, %v3480
    %v3513 = vsel %vm3449, %v3417, %v3481
    %v3514 = vsel %vm3450, %v3418, %v3482
    %v3515 = vsel %vm3451, %v3419, %v3483
    %v3516 = vsel %vm3452, %v3420, %v3484
    %v3517 = vsel %vm3453, %v3421, %v3485
    %v3518 = vsel %vm3454, %v3422, %v3486
    %v3519 = vmul.f32 %v3487, %v1074
    %v3520 = vmul.f32 %v3488, %v1074
    %v3521 = vmul.f32 %v3489, %v1074
    %v3522 = vmul.f32 %v3490, %v1074
    %v3523 = vmul.f32 %v3491, %v1074
    %v3524 = vmul.f32 %v3492, %v1074
    %v3525 = vmul.f32 %v3493, %v1074
    %v3526 = vmul.f32 %v3494, %v1074
    %v3527 = vmul.f32 %v3495, %v1074
    %v3528 = vmul.f32 %v3496, %v1074
    %v3529 = vmul.f32 %v3497, %v1074
    %v3530 = vmul.f32 %v3498, %v1074
    %v3531 = vmul.f32 %v3499, %v1074
    %v3532 = vmul.f32 %v3500, %v1074
    %v3533 = vmul.f32 %v3501, %v1074
    %v3534 = vmul.f32 %v3502, %v1074
    %v3535 = vmul.f32 %v3503, %v1074
    %v3536 = vmul.f32 %v3504, %v1074
    %v3537 = vmul.f32 %v3505, %v1074
    %v3538 = vmul.f32 %v3506, %v1074
    %v3539 = vmul.f32 %v3507, %v1074
    %v3540 = vmul.f32 %v3508, %v1074
    %v3541 = vmul.f32 %v3509, %v1074
    %v3542 = vmul.f32 %v3510, %v1074
    %v3543 = vmul.f32 %v3511, %v1074
    %v3544 = vmul.f32 %v3512, %v1074
    %v3545 = vmul.f32 %v3513, %v1074
    %v3546 = vmul.f32 %v3514, %v1074
    %v3547 = vmul.f32 %v3515, %v1074
    %v3548 = vmul.f32 %v3516, %v1074
    %v3549 = vmul.f32 %v3517, %v1074
    %v3550 = vmul.f32 %v3518, %v1074
    %v3551 = vsel %vm154, %v3519, 0.0
    %3552 = vadd.xlane.f32.xlu0 %v3551
    %v3553 = vpop.xlane.xlu0 %3552
    %v3554 = vsel %vm154, %v3520, 0.0
    %3555 = vadd.xlane.f32.xlu0 %v3554
    %v3556 = vpop.xlane.xlu0 %3555
    %v3557 = vsel %vm154, %v3521, 0.0
    %3558 = vadd.xlane.f32.xlu0 %v3557
    %v3559 = vpop.xlane.xlu0 %3558
    %v3560 = vsel %vm154, %v3522, 0.0
    %3561 = vadd.xlane.f32.xlu0 %v3560
    %v3562 = vpop.xlane.xlu0 %3561
    %v3563 = vsel %vm154, %v3523, 0.0
    %3564 = vadd.xlane.f32.xlu0 %v3563
    %v3565 = vpop.xlane.xlu0 %3564
    %v3566 = vsel %vm154, %v3524, 0.0
    %3567 = vadd.xlane.f32.xlu0 %v3566
    %v3568 = vpop.xlane.xlu0 %3567
    %v3569 = vsel %vm154, %v3525, 0.0
    %3570 = vadd.xlane.f32.xlu0 %v3569
    %v3571 = vpop.xlane.xlu0 %3570
    %v3572 = vsel %vm154, %v3526, 0.0
    %3573 = vadd.xlane.f32.xlu0 %v3572
    %v3574 = vpop.xlane.xlu0 %3573
    %v3575 = vsel %vm154, %v3527, 0.0
    %3576 = vadd.xlane.f32.xlu0 %v3575
    %v3577 = vpop.xlane.xlu0 %3576
    %v3578 = vsel %vm154, %v3528, 0.0
    %3579 = vadd.xlane.f32.xlu0 %v3578
    %v3580 = vpop.xlane.xlu0 %3579
    %v3581 = vsel %vm154, %v3529, 0.0
    %3582 = vadd.xlane.f32.xlu0 %v3581
    %v3583 = vpop.xlane.xlu0 %3582
    %v3584 = vsel %vm154, %v3530, 0.0
    %3585 = vadd.xlane.f32.xlu0 %v3584
    %v3586 = vpop.xlane.xlu0 %3585
    %v3587 = vsel %vm154, %v3531, 0.0
    %3588 = vadd.xlane.f32.xlu0 %v3587
    %v3589 = vpop.xlane.xlu0 %3588
    %v3590 = vsel %vm154, %v3532, 0.0
    %3591 = vadd.xlane.f32.xlu0 %v3590
    %v3592 = vpop.xlane.xlu0 %3591
    %v3593 = vsel %vm154, %v3533, 0.0
    %3594 = vadd.xlane.f32.xlu0 %v3593
    %v3595 = vpop.xlane.xlu0 %3594
    %v3596 = vsel %vm154, %v3534, 0.0
    %3597 = vadd.xlane.f32.xlu0 %v3596
    %v3598 = vpop.xlane.xlu0 %3597
    %v3599 = vsel %vm154, %v3535, 0.0
    %3600 = vadd.xlane.f32.xlu0 %v3599
    %v3601 = vpop.xlane.xlu0 %3600
    %v3602 = vsel %vm154, %v3536, 0.0
    %3603 = vadd.xlane.f32.xlu0 %v3602
    %v3604 = vpop.xlane.xlu0 %3603
    %v3605 = vsel %vm154, %v3537, 0.0
    %3606 = vadd.xlane.f32.xlu0 %v3605
    %v3607 = vpop.xlane.xlu0 %3606
    %v3608 = vsel %vm154, %v3538, 0.0
    %3609 = vadd.xlane.f32.xlu0 %v3608
    %v3610 = vpop.xlane.xlu0 %3609
    %v3611 = vsel %vm154, %v3539, 0.0
    %3612 = vadd.xlane.f32.xlu0 %v3611
    %v3613 = vpop.xlane.xlu0 %3612
    %v3614 = vsel %vm154, %v3540, 0.0
    %3615 = vadd.xlane.f32.xlu0 %v3614
    %v3616 = vpop.xlane.xlu0 %3615
    %v3617 = vsel %vm154, %v3541, 0.0
    %3618 = vadd.xlane.f32.xlu0 %v3617
    %v3619 = vpop.xlane.xlu0 %3618
    %v3620 = vsel %vm154, %v3542, 0.0
    %3621 = vadd.xlane.f32.xlu0 %v3620
    %v3622 = vpop.xlane.xlu0 %3621
    %v3623 = vsel %vm154, %v3543, 0.0
    %3624 = vadd.xlane.f32.xlu0 %v3623
    %v3625 = vpop.xlane.xlu0 %3624
    %v3626 = vsel %vm154, %v3544, 0.0
    %3627 = vadd.xlane.f32.xlu0 %v3626
    %v3628 = vpop.xlane.xlu0 %3627
    %v3629 = vsel %vm154, %v3545, 0.0
    %3630 = vadd.xlane.f32.xlu0 %v3629
    %v3631 = vpop.xlane.xlu0 %3630
    %v3632 = vsel %vm154, %v3546, 0.0
    %3633 = vadd.xlane.f32.xlu0 %v3632
    %v3634 = vpop.xlane.xlu0 %3633
    %v3635 = vsel %vm154, %v3547, 0.0
    %3636 = vadd.xlane.f32.xlu0 %v3635
    %v3637 = vpop.xlane.xlu0 %3636
    %v3638 = vsel %vm154, %v3548, 0.0
    %3639 = vadd.xlane.f32.xlu0 %v3638
    %v3640 = vpop.xlane.xlu0 %3639
    %v3641 = vsel %vm154, %v3549, 0.0
    %3642 = vadd.xlane.f32.xlu0 %v3641
    %v3643 = vpop.xlane.xlu0 %3642
    %v3644 = vsel %vm154, %v3550, 0.0
    %3645 = vadd.xlane.f32.xlu0 %v3644
    %v3646 = vpop.xlane.xlu0 %3645
    %v3647 = vadd.f32 %v3553, %v1211
    %v3648 = vadd.f32 %v3556, %v1217
    %v3649 = vadd.f32 %v3559, %v1224
    %v3650 = vadd.f32 %v3562, %v1230
    %v3651 = vadd.f32 %v3565, %v1237
    %v3652 = vadd.f32 %v3568, %v1243
    %v3653 = vadd.f32 %v3571, %v1250
    %v3654 = vadd.f32 %v3574, %v1256
    %v3655 = vadd.f32 %v3577, %v1263
    %v3656 = vadd.f32 %v3580, %v1269
    %v3657 = vadd.f32 %v3583, %v1276
    %v3658 = vadd.f32 %v3586, %v1282
    %v3659 = vadd.f32 %v3589, %v1289
    %v3660 = vadd.f32 %v3592, %v1295
    %v3661 = vadd.f32 %v3595, %v1302
    %v3662 = vadd.f32 %v3598, %v1308
    %v3663 = vadd.f32 %v3601, %v1315
    %v3664 = vadd.f32 %v3604, %v1321
    %v3665 = vadd.f32 %v3607, %v1328
    %v3666 = vadd.f32 %v3610, %v1334
    %v3667 = vadd.f32 %v3613, %v1341
    %v3668 = vadd.f32 %v3616, %v1347
    %v3669 = vadd.f32 %v3619, %v1354
    %v3670 = vadd.f32 %v3622, %v1360
    %v3671 = vadd.f32 %v3625, %v1367
    %v3672 = vadd.f32 %v3628, %v1373
    %v3673 = vadd.f32 %v3631, %v1380
    %v3674 = vadd.f32 %v3634, %v1386
    %v3675 = vadd.f32 %v3637, %v1393
    %v3676 = vadd.f32 %v3640, %v1399
    %v3677 = vadd.f32 %v3643, %v1406
    %v3678 = vadd.f32 %v3646, %v1412
    %3711 = vset.pattern.permute.xlu0 0
    %3712 = vperm.xlu0 %3711, %v3647
    %v3713 = vpop.permute.xlu0 %3712
    %3714 = vset.pattern.permute.xlu0 0
    %3715 = vperm.xlu0 %3714, %v3648
    %v3716 = vpop.permute.xlu0 %3715
    %3717 = vset.pattern.permute.xlu0 0
    %3718 = vperm.xlu0 %3717, %v3649
    %v3719 = vpop.permute.xlu0 %3718
    %3720 = vset.pattern.permute.xlu0 0
    %3721 = vperm.xlu0 %3720, %v3650
    %v3722 = vpop.permute.xlu0 %3721
    %3723 = vset.pattern.permute.xlu0 0
    %3724 = vperm.xlu0 %3723, %v3651
    %v3725 = vpop.permute.xlu0 %3724
    %3726 = vset.pattern.permute.xlu0 0
    %3727 = vperm.xlu0 %3726, %v3652
    %v3728 = vpop.permute.xlu0 %3727
    %3729 = vset.pattern.permute.xlu0 0
    %3730 = vperm.xlu0 %3729, %v3653
    %v3731 = vpop.permute.xlu0 %3730
    %3732 = vset.pattern.permute.xlu0 0
    %3733 = vperm.xlu0 %3732, %v3654
    %v3734 = vpop.permute.xlu0 %3733
    %3735 = vset.pattern.permute.xlu0 0
    %3736 = vperm.xlu0 %3735, %v3655
    %v3737 = vpop.permute.xlu0 %3736
    %3738 = vset.pattern.permute.xlu0 0
    %3739 = vperm.xlu0 %3738, %v3656
    %v3740 = vpop.permute.xlu0 %3739
    %3741 = vset.pattern.permute.xlu0 0
    %3742 = vperm.xlu0 %3741, %v3657
    %v3743 = vpop.permute.xlu0 %3742
    %3744 = vset.pattern.permute.xlu0 0
    %3745 = vperm.xlu0 %3744, %v3658
    %v3746 = vpop.permute.xlu0 %3745
    %3747 = vset.pattern.permute.xlu0 0
    %3748 = vperm.xlu0 %3747, %v3659
    %v3749 = vpop.permute.xlu0 %3748
    %3750 = vset.pattern.permute.xlu0 0
    %3751 = vperm.xlu0 %3750, %v3660
    %v3752 = vpop.permute.xlu0 %3751
    %3753 = vset.pattern.permute.xlu0 0
    %3754 = vperm.xlu0 %3753, %v3661
    %v3755 = vpop.permute.xlu0 %3754
    %3756 = vset.pattern.permute.xlu0 0
    %3757 = vperm.xlu0 %3756, %v3662
    %v3758 = vpop.permute.xlu0 %3757
    %3759 = vset.pattern.permute.xlu0 0
    %3760 = vperm.xlu0 %3759, %v3663
    %v3761 = vpop.permute.xlu0 %3760
    %3762 = vset.pattern.permute.xlu0 0
    %3763 = vperm.xlu0 %3762, %v3664
    %v3764 = vpop.permute.xlu0 %3763
    %3765 = vset.pattern.permute.xlu0 0
    %3766 = vperm.xlu0 %3765, %v3665
    %v3767 = vpop.permute.xlu0 %3766
    %3768 = vset.pattern.permute.xlu0 0
    %3769 = vperm.xlu0 %3768, %v3666
    %v3770 = vpop.permute.xlu0 %3769
    %3771 = vset.pattern.permute.xlu0 0
    %3772 = vperm.xlu0 %3771, %v3667
    %v3773 = vpop.permute.xlu0 %3772
    %3774 = vset.pattern.permute.xlu0 0
    %3775 = vperm.xlu0 %3774, %v3668
    %v3776 = vpop.permute.xlu0 %3775
    %3777 = vset.pattern.permute.xlu0 0
    %3778 = vperm.xlu0 %3777, %v3669
    %v3779 = vpop.permute.xlu0 %3778
    %3780 = vset.pattern.permute.xlu0 0
    %3781 = vperm.xlu0 %3780, %v3670
    %v3782 = vpop.permute.xlu0 %3781
    %3783 = vset.pattern.permute.xlu0 0
    %3784 = vperm.xlu0 %3783, %v3671
    %v3785 = vpop.permute.xlu0 %3784
    %3786 = vset.pattern.permute.xlu0 0
    %3787 = vperm.xlu0 %3786, %v3672
    %v3788 = vpop.permute.xlu0 %3787
    %3789 = vset.pattern.permute.xlu0 0
    %3790 = vperm.xlu0 %3789, %v3673
    %v3791 = vpop.permute.xlu0 %3790
    %3792 = vset.pattern.permute.xlu0 0
    %3793 = vperm.xlu0 %3792, %v3674
    %v3794 = vpop.permute.xlu0 %3793
    %3795 = vset.pattern.permute.xlu0 0
    %3796 = vperm.xlu0 %3795, %v3675
    %v3797 = vpop.permute.xlu0 %3796
    %3798 = vset.pattern.permute.xlu0 0
    %3799 = vperm.xlu0 %3798, %v3676
    %v3800 = vpop.permute.xlu0 %3799
    %3801 = vset.pattern.permute.xlu0 0
    %3802 = vperm.xlu0 %3801, %v3677
    %v3803 = vpop.permute.xlu0 %3802
    %3804 = vset.pattern.permute.xlu0 0
    %3805 = vperm.xlu0 %3804, %v3678
    %v3806 = vpop.permute.xlu0 %3805
    %v3807 = vperm.slane %v3713, %v464
    %v3808 = vperm.slane %v3716, %v1606
    %v3809 = vsel %vm1608, %v3808, %v3807
    %v3810 = vperm.slane %v3719, %v464
    %v3811 = vperm.slane %v3722, %v1606
    %v3812 = vsel %vm1608, %v3811, %v3810
    %v3813 = vperm.slane %v3725, %v464
    %v3814 = vperm.slane %v3728, %v1606
    %v3815 = vsel %vm1608, %v3814, %v3813
    %v3816 = vperm.slane %v3731, %v464
    %v3817 = vperm.slane %v3734, %v1606
    %v3818 = vsel %vm1608, %v3817, %v3816
    %v3819 = vperm.slane %v3737, %v464
    %v3820 = vperm.slane %v3740, %v1606
    %v3821 = vsel %vm1608, %v3820, %v3819
    %v3822 = vperm.slane %v3743, %v464
    %v3823 = vperm.slane %v3746, %v1606
    %v3824 = vsel %vm1608, %v3823, %v3822
    %v3825 = vperm.slane %v3749, %v464
    %v3826 = vperm.slane %v3752, %v1606
    %v3827 = vsel %vm1608, %v3826, %v3825
    %v3828 = vperm.slane %v3755, %v464
    %v3829 = vperm.slane %v3758, %v1606
    %v3830 = vsel %vm1608, %v3829, %v3828
    %v3831 = vperm.slane %v3761, %v464
    %v3832 = vperm.slane %v3764, %v1606
    %v3833 = vsel %vm1608, %v3832, %v3831
    %v3834 = vperm.slane %v3767, %v464
    %v3835 = vperm.slane %v3770, %v1606
    %v3836 = vsel %vm1608, %v3835, %v3834
    %v3837 = vperm.slane %v3773, %v464
    %v3838 = vperm.slane %v3776, %v1606
    %v3839 = vsel %vm1608, %v3838, %v3837
    %v3840 = vperm.slane %v3779, %v464
    %v3841 = vperm.slane %v3782, %v1606
    %v3842 = vsel %vm1608, %v3841, %v3840
    %v3843 = vperm.slane %v3785, %v464
    %v3844 = vperm.slane %v3788, %v1606
    %v3845 = vsel %vm1608, %v3844, %v3843
    %v3846 = vperm.slane %v3791, %v464
    %v3847 = vperm.slane %v3794, %v1606
    %v3848 = vsel %vm1608, %v3847, %v3846
    %v3849 = vperm.slane %v3797, %v464
    %v3850 = vperm.slane %v3800, %v1606
    %v3851 = vsel %vm1608, %v3850, %v3849
    %v3852 = vperm.slane %v3803, %v464
    %v3853 = vperm.slane %v3806, %v1606
    %v3854 = vsel %vm1608, %v3853, %v3852
    %v3855 = vsel %vm473, %v3812, %v3809
    %v3856 = vsel %vm475, %v3815, %v3855
    %v3857 = vsel %vm477, %v3818, %v3856
    %v3858 = vsel %vm479, %v3821, %v3857
    %v3859 = vsel %vm481, %v3824, %v3858
    %v3860 = vsel %vm483, %v3827, %v3859
    %v3861 = vsel %vm485, %v3830, %v3860
    %v3862 = vsel %vm473, %v3836, %v3833
    %v3863 = vsel %vm475, %v3839, %v3862
    %v3864 = vsel %vm477, %v3842, %v3863
    %v3865 = vsel %vm479, %v3845, %v3864
    %v3866 = vsel %vm481, %v3848, %v3865
    %v3867 = vsel %vm483, %v3851, %v3866
    %v3868 = vsel %vm485, %v3854, %v3867
    %v3871 = vsel %vm154, %v3861, -inf
    %3872 = vmax.xlane.f32.xlu0 %v3871
    %v3873 = vpop.xlane.xlu0 %3872
    %v3874 = vsel %vm154, %v3868, -inf
    %3875 = vmax.xlane.f32.xlu0 %v3874
    %v3876 = vpop.xlane.xlu0 %3875
    %v3879 = vperm.slane %v3873, 0
    %v3880 = vperm.slane %v3873, 1
    %v3881 = vperm.slane %v3873, 2
    %v3882 = vperm.slane %v3873, 3
    %v3883 = vperm.slane %v3873, 4
    %v3884 = vperm.slane %v3873, 5
    %v3885 = vperm.slane %v3873, 6
    %v3886 = vperm.slane %v3873, 7
    %v3887 = vperm.slane %v3876, 0
    %v3888 = vperm.slane %v3876, 1
    %v3889 = vperm.slane %v3876, 2
    %v3890 = vperm.slane %v3876, 3
    %v3891 = vperm.slane %v3876, 4
    %v3892 = vperm.slane %v3876, 5
    %v3893 = vperm.slane %v3876, 6
    %v3894 = vperm.slane %v3876, 7
    %v3911 = vsub.f32 %v3647, %v3879
    %v3912 = vsub.f32 %v3648, %v3879
    %v3913 = vsub.f32 %v3649, %v3880
    %v3914 = vsub.f32 %v3650, %v3880
    %v3915 = vsub.f32 %v3651, %v3881
    %v3916 = vsub.f32 %v3652, %v3881
    %v3917 = vsub.f32 %v3653, %v3882
    %v3918 = vsub.f32 %v3654, %v3882
    %v3919 = vsub.f32 %v3655, %v3883
    %v3920 = vsub.f32 %v3656, %v3883
    %v3921 = vsub.f32 %v3657, %v3884
    %v3922 = vsub.f32 %v3658, %v3884
    %v3923 = vsub.f32 %v3659, %v3885
    %v3924 = vsub.f32 %v3660, %v3885
    %v3925 = vsub.f32 %v3661, %v3886
    %v3926 = vsub.f32 %v3662, %v3886
    %v3927 = vsub.f32 %v3663, %v3887
    %v3928 = vsub.f32 %v3664, %v3887
    %v3929 = vsub.f32 %v3665, %v3888
    %v3930 = vsub.f32 %v3666, %v3888
    %v3931 = vsub.f32 %v3667, %v3889
    %v3932 = vsub.f32 %v3668, %v3889
    %v3933 = vsub.f32 %v3669, %v3890
    %v3934 = vsub.f32 %v3670, %v3890
    %v3935 = vsub.f32 %v3671, %v3891
    %v3936 = vsub.f32 %v3672, %v3891
    %v3937 = vsub.f32 %v3673, %v3892
    %v3938 = vsub.f32 %v3674, %v3892
    %v3939 = vsub.f32 %v3675, %v3893
    %v3940 = vsub.f32 %v3676, %v3893
    %v3941 = vsub.f32 %v3677, %v3894
    %v3942 = vsub.f32 %v3678, %v3894
    %v3943 = vmul.f32 %v3911, 1.442695
    %v3944 = vpow.pop %v3943
    %v3945 = vmul.f32 %v3912, 1.442695
    %v3946 = vpow.pop %v3945
    %v3947 = vmul.f32 %v3913, 1.442695
    %v3948 = vpow.pop %v3947
    %v3949 = vmul.f32 %v3914, 1.442695
    %v3950 = vpow.pop %v3949
    %v3951 = vmul.f32 %v3915, 1.442695
    %v3952 = vpow.pop %v3951
    %v3953 = vmul.f32 %v3916, 1.442695
    %v3954 = vpow.pop %v3953
    %v3955 = vmul.f32 %v3917, 1.442695
    %v3956 = vpow.pop %v3955
    %v3957 = vmul.f32 %v3918, 1.442695
    %v3958 = vpow.pop %v3957
    %v3959 = vmul.f32 %v3919, 1.442695
    %v3960 = vpow.pop %v3959
    %v3961 = vmul.f32 %v3920, 1.442695
    %v3962 = vpow.pop %v3961
    %v3963 = vmul.f32 %v3921, 1.442695
    %v3964 = vpow.pop %v3963
    %v3965 = vmul.f32 %v3922, 1.442695
    %v3966 = vpow.pop %v3965
    %v3967 = vmul.f32 %v3923, 1.442695
    %v3968 = vpow.pop %v3967
    %v3969 = vmul.f32 %v3924, 1.442695
    %v3970 = vpow.pop %v3969
    %v3971 = vmul.f32 %v3925, 1.442695
    %v3972 = vpow.pop %v3971
    %v3973 = vmul.f32 %v3926, 1.442695
    %v3974 = vpow.pop %v3973
    %v3975 = vmul.f32 %v3927, 1.442695
    %v3976 = vpow.pop %v3975
    %v3977 = vmul.f32 %v3928, 1.442695
    %v3978 = vpow.pop %v3977
    %v3979 = vmul.f32 %v3929, 1.442695
    %v3980 = vpow.pop %v3979
    %v3981 = vmul.f32 %v3930, 1.442695
    %v3982 = vpow.pop %v3981
    %v3983 = vmul.f32 %v3931, 1.442695
    %v3984 = vpow.pop %v3983
    %v3985 = vmul.f32 %v3932, 1.442695
    %v3986 = vpow.pop %v3985
    %v3987 = vmul.f32 %v3933, 1.442695
    %v3988 = vpow.pop %v3987
    %v3989 = vmul.f32 %v3934, 1.442695
    %v3990 = vpow.pop %v3989
    %v3991 = vmul.f32 %v3935, 1.442695
    %v3992 = vpow.pop %v3991
    %v3993 = vmul.f32 %v3936, 1.442695
    %v3994 = vpow.pop %v3993
    %v3995 = vmul.f32 %v3937, 1.442695
    %v3996 = vpow.pop %v3995
    %v3997 = vmul.f32 %v3938, 1.442695
    %v3998 = vpow.pop %v3997
    %v3999 = vmul.f32 %v3939, 1.442695
    %v4000 = vpow.pop %v3999
    %v4001 = vmul.f32 %v3940, 1.442695
    %v4002 = vpow.pop %v4001
    %v4003 = vmul.f32 %v3941, 1.442695
    %v4004 = vpow.pop %v4003
    %v4005 = vmul.f32 %v3942, 1.442695
    %v4006 = vpow.pop %v4005
    %4039 = vset.pattern.permute.xlu0 0
    %4040 = vperm.xlu0 %4039, %v3944
    %v4041 = vpop.permute.xlu0 %4040
    %4042 = vset.pattern.permute.xlu0 0
    %4043 = vperm.xlu0 %4042, %v3946
    %v4044 = vpop.permute.xlu0 %4043
    %4045 = vset.pattern.permute.xlu0 0
    %4046 = vperm.xlu0 %4045, %v3948
    %v4047 = vpop.permute.xlu0 %4046
    %4048 = vset.pattern.permute.xlu0 0
    %4049 = vperm.xlu0 %4048, %v3950
    %v4050 = vpop.permute.xlu0 %4049
    %4051 = vset.pattern.permute.xlu0 0
    %4052 = vperm.xlu0 %4051, %v3952
    %v4053 = vpop.permute.xlu0 %4052
    %4054 = vset.pattern.permute.xlu0 0
    %4055 = vperm.xlu0 %4054, %v3954
    %v4056 = vpop.permute.xlu0 %4055
    %4057 = vset.pattern.permute.xlu0 0
    %4058 = vperm.xlu0 %4057, %v3956
    %v4059 = vpop.permute.xlu0 %4058
    %4060 = vset.pattern.permute.xlu0 0
    %4061 = vperm.xlu0 %4060, %v3958
    %v4062 = vpop.permute.xlu0 %4061
    %4063 = vset.pattern.permute.xlu0 0
    %4064 = vperm.xlu0 %4063, %v3960
    %v4065 = vpop.permute.xlu0 %4064
    %4066 = vset.pattern.permute.xlu0 0
    %4067 = vperm.xlu0 %4066, %v3962
    %v4068 = vpop.permute.xlu0 %4067
    %4069 = vset.pattern.permute.xlu0 0
    %4070 = vperm.xlu0 %4069, %v3964
    %v4071 = vpop.permute.xlu0 %4070
    %4072 = vset.pattern.permute.xlu0 0
    %4073 = vperm.xlu0 %4072, %v3966
    %v4074 = vpop.permute.xlu0 %4073
    %4075 = vset.pattern.permute.xlu0 0
    %4076 = vperm.xlu0 %4075, %v3968
    %v4077 = vpop.permute.xlu0 %4076
    %4078 = vset.pattern.permute.xlu0 0
    %4079 = vperm.xlu0 %4078, %v3970
    %v4080 = vpop.permute.xlu0 %4079
    %4081 = vset.pattern.permute.xlu0 0
    %4082 = vperm.xlu0 %4081, %v3972
    %v4083 = vpop.permute.xlu0 %4082
    %4084 = vset.pattern.permute.xlu0 0
    %4085 = vperm.xlu0 %4084, %v3974
    %v4086 = vpop.permute.xlu0 %4085
    %4087 = vset.pattern.permute.xlu0 0
    %4088 = vperm.xlu0 %4087, %v3976
    %v4089 = vpop.permute.xlu0 %4088
    %4090 = vset.pattern.permute.xlu0 0
    %4091 = vperm.xlu0 %4090, %v3978
    %v4092 = vpop.permute.xlu0 %4091
    %4093 = vset.pattern.permute.xlu0 0
    %4094 = vperm.xlu0 %4093, %v3980
    %v4095 = vpop.permute.xlu0 %4094
    %4096 = vset.pattern.permute.xlu0 0
    %4097 = vperm.xlu0 %4096, %v3982
    %v4098 = vpop.permute.xlu0 %4097
    %4099 = vset.pattern.permute.xlu0 0
    %4100 = vperm.xlu0 %4099, %v3984
    %v4101 = vpop.permute.xlu0 %4100
    %4102 = vset.pattern.permute.xlu0 0
    %4103 = vperm.xlu0 %4102, %v3986
    %v4104 = vpop.permute.xlu0 %4103
    %4105 = vset.pattern.permute.xlu0 0
    %4106 = vperm.xlu0 %4105, %v3988
    %v4107 = vpop.permute.xlu0 %4106
    %4108 = vset.pattern.permute.xlu0 0
    %4109 = vperm.xlu0 %4108, %v3990
    %v4110 = vpop.permute.xlu0 %4109
    %4111 = vset.pattern.permute.xlu0 0
    %4112 = vperm.xlu0 %4111, %v3992
    %v4113 = vpop.permute.xlu0 %4112
    %4114 = vset.pattern.permute.xlu0 0
    %4115 = vperm.xlu0 %4114, %v3994
    %v4116 = vpop.permute.xlu0 %4115
    %4117 = vset.pattern.permute.xlu0 0
    %4118 = vperm.xlu0 %4117, %v3996
    %v4119 = vpop.permute.xlu0 %4118
    %4120 = vset.pattern.permute.xlu0 0
    %4121 = vperm.xlu0 %4120, %v3998
    %v4122 = vpop.permute.xlu0 %4121
    %4123 = vset.pattern.permute.xlu0 0
    %4124 = vperm.xlu0 %4123, %v4000
    %v4125 = vpop.permute.xlu0 %4124
    %4126 = vset.pattern.permute.xlu0 0
    %4127 = vperm.xlu0 %4126, %v4002
    %v4128 = vpop.permute.xlu0 %4127
    %4129 = vset.pattern.permute.xlu0 0
    %4130 = vperm.xlu0 %4129, %v4004
    %v4131 = vpop.permute.xlu0 %4130
    %4132 = vset.pattern.permute.xlu0 0
    %4133 = vperm.xlu0 %4132, %v4006
    %v4134 = vpop.permute.xlu0 %4133
    %v4135 = vperm.slane %v4041, %v464
    %v4136 = vperm.slane %v4044, %v1606
    %v4137 = vsel %vm1608, %v4136, %v4135
    %v4138 = vperm.slane %v4047, %v464
    %v4139 = vperm.slane %v4050, %v1606
    %v4140 = vsel %vm1608, %v4139, %v4138
    %v4141 = vperm.slane %v4053, %v464
    %v4142 = vperm.slane %v4056, %v1606
    %v4143 = vsel %vm1608, %v4142, %v4141
    %v4144 = vperm.slane %v4059, %v464
    %v4145 = vperm.slane %v4062, %v1606
    %v4146 = vsel %vm1608, %v4145, %v4144
    %v4147 = vperm.slane %v4065, %v464
    %v4148 = vperm.slane %v4068, %v1606
    %v4149 = vsel %vm1608, %v4148, %v4147
    %v4150 = vperm.slane %v4071, %v464
    %v4151 = vperm.slane %v4074, %v1606
    %v4152 = vsel %vm1608, %v4151, %v4150
    %v4153 = vperm.slane %v4077, %v464
    %v4154 = vperm.slane %v4080, %v1606
    %v4155 = vsel %vm1608, %v4154, %v4153
    %v4156 = vperm.slane %v4083, %v464
    %v4157 = vperm.slane %v4086, %v1606
    %v4158 = vsel %vm1608, %v4157, %v4156
    %v4159 = vperm.slane %v4089, %v464
    %v4160 = vperm.slane %v4092, %v1606
    %v4161 = vsel %vm1608, %v4160, %v4159
    %v4162 = vperm.slane %v4095, %v464
    %v4163 = vperm.slane %v4098, %v1606
    %v4164 = vsel %vm1608, %v4163, %v4162
    %v4165 = vperm.slane %v4101, %v464
    %v4166 = vperm.slane %v4104, %v1606
    %v4167 = vsel %vm1608, %v4166, %v4165
    %v4168 = vperm.slane %v4107, %v464
    %v4169 = vperm.slane %v4110, %v1606
    %v4170 = vsel %vm1608, %v4169, %v4168
    %v4171 = vperm.slane %v4113, %v464
    %v4172 = vperm.slane %v4116, %v1606
    %v4173 = vsel %vm1608, %v4172, %v4171
    %v4174 = vperm.slane %v4119, %v464
    %v4175 = vperm.slane %v4122, %v1606
    %v4176 = vsel %vm1608, %v4175, %v4174
    %v4177 = vperm.slane %v4125, %v464
    %v4178 = vperm.slane %v4128, %v1606
    %v4179 = vsel %vm1608, %v4178, %v4177
    %v4180 = vperm.slane %v4131, %v464
    %v4181 = vperm.slane %v4134, %v1606
    %v4182 = vsel %vm1608, %v4181, %v4180
    %v4183 = vsel %vm473, %v4140, %v4137
    %v4184 = vsel %vm475, %v4143, %v4183
    %v4185 = vsel %vm477, %v4146, %v4184
    %v4186 = vsel %vm479, %v4149, %v4185
    %v4187 = vsel %vm481, %v4152, %v4186
    %v4188 = vsel %vm483, %v4155, %v4187
    %v4189 = vsel %vm485, %v4158, %v4188
    %v4190 = vsel %vm473, %v4164, %v4161
    %v4191 = vsel %vm475, %v4167, %v4190
    %v4192 = vsel %vm477, %v4170, %v4191
    %v4193 = vsel %vm479, %v4173, %v4192
    %v4194 = vsel %vm481, %v4176, %v4193
    %v4195 = vsel %vm483, %v4179, %v4194
    %v4196 = vsel %vm485, %v4182, %v4195
    %v4199 = vsel %vm154, %v4189, 0.0
    %4200 = vadd.xlane.f32.xlu0 %v4199
    %v4201 = vpop.xlane.xlu0 %4200
    %v4202 = vsel %vm154, %v4196, 0.0
    %4203 = vadd.xlane.f32.xlu0 %v4202
    %v4204 = vpop.xlane.xlu0 %4203
    %v4207 = vperm.slane %v4201, 0
    %v4208 = vperm.slane %v4201, 1
    %v4209 = vperm.slane %v4201, 2
    %v4210 = vperm.slane %v4201, 3
    %v4211 = vperm.slane %v4201, 4
    %v4212 = vperm.slane %v4201, 5
    %v4213 = vperm.slane %v4201, 6
    %v4214 = vperm.slane %v4201, 7
    %v4215 = vperm.slane %v4204, 0
    %v4216 = vperm.slane %v4204, 1
    %v4217 = vperm.slane %v4204, 2
    %v4218 = vperm.slane %v4204, 3
    %v4219 = vperm.slane %v4204, 4
    %v4220 = vperm.slane %v4204, 5
    %v4221 = vperm.slane %v4204, 6
    %v4222 = vperm.slane %v4204, 7
    %v4239 = vrcp.pop %v4207
    %v4240 = vmul.f32 %v4207, %v4239
    %v4241 = vsub.f32 1.0, %v4240
    %v4242 = vmul.f32 %v4239, %v4241
    %v4243 = vadd.f32 %v4239, %v4242
    %vm4244 = vweird.f32 %v4207
    %vm4245 = vweird.f32 %v4239
    %vm4246 = vmor %vm4244, %vm4245
    %v4247 = vsel %vm4246, %v4239, %v4243
    %v4248 = vand.u32 2147483647, %v4207
    %vm4249 = vcmp.eq.f32.partialorder %v4248, 8.507059e+37
    %v4250 = vand.u32 %v4207, 2147483648
    %v4251 = vor.u32 1.1754944e-38, %v4250
    %v4252 = vsel %vm4249, %v4251, %v4247
    %v4253 = vmul.f32 %v3944, %v4252
    %v4254 = vmul.f32 %v3946, %v4252
    %v4255 = vrcp.pop %v4208
    %v4256 = vmul.f32 %v4208, %v4255
    %v4257 = vsub.f32 1.0, %v4256
    %v4258 = vmul.f32 %v4255, %v4257
    %v4259 = vadd.f32 %v4255, %v4258
    %vm4260 = vweird.f32 %v4208
    %vm4261 = vweird.f32 %v4255
    %vm4262 = vmor %vm4260, %vm4261
    %v4263 = vsel %vm4262, %v4255, %v4259
    %v4264 = vand.u32 2147483647, %v4208
    %vm4265 = vcmp.eq.f32.partialorder %v4264, 8.507059e+37
    %v4266 = vand.u32 %v4208, 2147483648
    %v4267 = vor.u32 1.1754944e-38, %v4266
    %v4268 = vsel %vm4265, %v4267, %v4263
    %v4269 = vmul.f32 %v3948, %v4268
    %v4270 = vmul.f32 %v3950, %v4268
    %v4271 = vrcp.pop %v4209
    %v4272 = vmul.f32 %v4209, %v4271
    %v4273 = vsub.f32 1.0, %v4272
    %v4274 = vmul.f32 %v4271, %v4273
    %v4275 = vadd.f32 %v4271, %v4274
    %vm4276 = vweird.f32 %v4209
    %vm4277 = vweird.f32 %v4271
    %vm4278 = vmor %vm4276, %vm4277
    %v4279 = vsel %vm4278, %v4271, %v4275
    %v4280 = vand.u32 2147483647, %v4209
    %vm4281 = vcmp.eq.f32.partialorder %v4280, 8.507059e+37
    %v4282 = vand.u32 %v4209, 2147483648
    %v4283 = vor.u32 1.1754944e-38, %v4282
    %v4284 = vsel %vm4281, %v4283, %v4279
    %v4285 = vmul.f32 %v3952, %v4284
    %v4286 = vmul.f32 %v3954, %v4284
    %v4287 = vrcp.pop %v4210
    %v4288 = vmul.f32 %v4210, %v4287
    %v4289 = vsub.f32 1.0, %v4288
    %v4290 = vmul.f32 %v4287, %v4289
    %v4291 = vadd.f32 %v4287, %v4290
    %vm4292 = vweird.f32 %v4210
    %vm4293 = vweird.f32 %v4287
    %vm4294 = vmor %vm4292, %vm4293
    %v4295 = vsel %vm4294, %v4287, %v4291
    %v4296 = vand.u32 2147483647, %v4210
    %vm4297 = vcmp.eq.f32.partialorder %v4296, 8.507059e+37
    %v4298 = vand.u32 %v4210, 2147483648
    %v4299 = vor.u32 1.1754944e-38, %v4298
    %v4300 = vsel %vm4297, %v4299, %v4295
    %v4301 = vmul.f32 %v3956, %v4300
    %v4302 = vmul.f32 %v3958, %v4300
    %v4303 = vrcp.pop %v4211
    %v4304 = vmul.f32 %v4211, %v4303
    %v4305 = vsub.f32 1.0, %v4304
    %v4306 = vmul.f32 %v4303, %v4305
    %v4307 = vadd.f32 %v4303, %v4306
    %vm4308 = vweird.f32 %v4211
    %vm4309 = vweird.f32 %v4303
    %vm4310 = vmor %vm4308, %vm4309
    %v4311 = vsel %vm4310, %v4303, %v4307
    %v4312 = vand.u32 2147483647, %v4211
    %vm4313 = vcmp.eq.f32.partialorder %v4312, 8.507059e+37
    %v4314 = vand.u32 %v4211, 2147483648
    %v4315 = vor.u32 1.1754944e-38, %v4314
    %v4316 = vsel %vm4313, %v4315, %v4311
    %v4317 = vmul.f32 %v3960, %v4316
    %v4318 = vmul.f32 %v3962, %v4316
    %v4319 = vrcp.pop %v4212
    %v4320 = vmul.f32 %v4212, %v4319
    %v4321 = vsub.f32 1.0, %v4320
    %v4322 = vmul.f32 %v4319, %v4321
    %v4323 = vadd.f32 %v4319, %v4322
    %vm4324 = vweird.f32 %v4212
    %vm4325 = vweird.f32 %v4319
    %vm4326 = vmor %vm4324, %vm4325
    %v4327 = vsel %vm4326, %v4319, %v4323
    %v4328 = vand.u32 2147483647, %v4212
    %vm4329 = vcmp.eq.f32.partialorder %v4328, 8.507059e+37
    %v4330 = vand.u32 %v4212, 2147483648
    %v4331 = vor.u32 1.1754944e-38, %v4330
    %v4332 = vsel %vm4329, %v4331, %v4327
    %v4333 = vmul.f32 %v3964, %v4332
    %v4334 = vmul.f32 %v3966, %v4332
    %v4335 = vrcp.pop %v4213
    %v4336 = vmul.f32 %v4213, %v4335
    %v4337 = vsub.f32 1.0, %v4336
    %v4338 = vmul.f32 %v4335, %v4337
    %v4339 = vadd.f32 %v4335, %v4338
    %vm4340 = vweird.f32 %v4213
    %vm4341 = vweird.f32 %v4335
    %vm4342 = vmor %vm4340, %vm4341
    %v4343 = vsel %vm4342, %v4335, %v4339
    %v4344 = vand.u32 2147483647, %v4213
    %vm4345 = vcmp.eq.f32.partialorder %v4344, 8.507059e+37
    %v4346 = vand.u32 %v4213, 2147483648
    %v4347 = vor.u32 1.1754944e-38, %v4346
    %v4348 = vsel %vm4345, %v4347, %v4343
    %v4349 = vmul.f32 %v3968, %v4348
    %v4350 = vmul.f32 %v3970, %v4348
    %v4351 = vrcp.pop %v4214
    %v4352 = vmul.f32 %v4214, %v4351
    %v4353 = vsub.f32 1.0, %v4352
    %v4354 = vmul.f32 %v4351, %v4353
    %v4355 = vadd.f32 %v4351, %v4354
    %vm4356 = vweird.f32 %v4214
    %vm4357 = vweird.f32 %v4351
    %vm4358 = vmor %vm4356, %vm4357
    %v4359 = vsel %vm4358, %v4351, %v4355
    %v4360 = vand.u32 2147483647, %v4214
    %vm4361 = vcmp.eq.f32.partialorder %v4360, 8.507059e+37
    %v4362 = vand.u32 %v4214, 2147483648
    %v4363 = vor.u32 1.1754944e-38, %v4362
    %v4364 = vsel %vm4361, %v4363, %v4359
    %v4365 = vmul.f32 %v3972, %v4364
    %v4366 = vmul.f32 %v3974, %v4364
    %v4367 = vrcp.pop %v4215
    %v4368 = vmul.f32 %v4215, %v4367
    %v4369 = vsub.f32 1.0, %v4368
    %v4370 = vmul.f32 %v4367, %v4369
    %v4371 = vadd.f32 %v4367, %v4370
    %vm4372 = vweird.f32 %v4215
    %vm4373 = vweird.f32 %v4367
    %vm4374 = vmor %vm4372, %vm4373
    %v4375 = vsel %vm4374, %v4367, %v4371
    %v4376 = vand.u32 2147483647, %v4215
    %vm4377 = vcmp.eq.f32.partialorder %v4376, 8.507059e+37
    %v4378 = vand.u32 %v4215, 2147483648
    %v4379 = vor.u32 1.1754944e-38, %v4378
    %v4380 = vsel %vm4377, %v4379, %v4375
    %v4381 = vmul.f32 %v3976, %v4380
    %v4382 = vmul.f32 %v3978, %v4380
    %v4383 = vrcp.pop %v4216
    %v4384 = vmul.f32 %v4216, %v4383
    %v4385 = vsub.f32 1.0, %v4384
    %v4386 = vmul.f32 %v4383, %v4385
    %v4387 = vadd.f32 %v4383, %v4386
    %vm4388 = vweird.f32 %v4216
    %vm4389 = vweird.f32 %v4383
    %vm4390 = vmor %vm4388, %vm4389
    %v4391 = vsel %vm4390, %v4383, %v4387
    %v4392 = vand.u32 2147483647, %v4216
    %vm4393 = vcmp.eq.f32.partialorder %v4392, 8.507059e+37
    %v4394 = vand.u32 %v4216, 2147483648
    %v4395 = vor.u32 1.1754944e-38, %v4394
    %v4396 = vsel %vm4393, %v4395, %v4391
    %v4397 = vmul.f32 %v3980, %v4396
    %v4398 = vmul.f32 %v3982, %v4396
    %v4399 = vrcp.pop %v4217
    %v4400 = vmul.f32 %v4217, %v4399
    %v4401 = vsub.f32 1.0, %v4400
    %v4402 = vmul.f32 %v4399, %v4401
    %v4403 = vadd.f32 %v4399, %v4402
    %vm4404 = vweird.f32 %v4217
    %vm4405 = vweird.f32 %v4399
    %vm4406 = vmor %vm4404, %vm4405
    %v4407 = vsel %vm4406, %v4399, %v4403
    %v4408 = vand.u32 2147483647, %v4217
    %vm4409 = vcmp.eq.f32.partialorder %v4408, 8.507059e+37
    %v4410 = vand.u32 %v4217, 2147483648
    %v4411 = vor.u32 1.1754944e-38, %v4410
    %v4412 = vsel %vm4409, %v4411, %v4407
    %v4413 = vmul.f32 %v3984, %v4412
    %v4414 = vmul.f32 %v3986, %v4412
    %v4415 = vrcp.pop %v4218
    %v4416 = vmul.f32 %v4218, %v4415
    %v4417 = vsub.f32 1.0, %v4416
    %v4418 = vmul.f32 %v4415, %v4417
    %v4419 = vadd.f32 %v4415, %v4418
    %vm4420 = vweird.f32 %v4218
    %vm4421 = vweird.f32 %v4415
    %vm4422 = vmor %vm4420, %vm4421
    %v4423 = vsel %vm4422, %v4415, %v4419
    %v4424 = vand.u32 2147483647, %v4218
    %vm4425 = vcmp.eq.f32.partialorder %v4424, 8.507059e+37
    %v4426 = vand.u32 %v4218, 2147483648
    %v4427 = vor.u32 1.1754944e-38, %v4426
    %v4428 = vsel %vm4425, %v4427, %v4423
    %v4429 = vmul.f32 %v3988, %v4428
    %v4430 = vmul.f32 %v3990, %v4428
    %v4431 = vrcp.pop %v4219
    %v4432 = vmul.f32 %v4219, %v4431
    %v4433 = vsub.f32 1.0, %v4432
    %v4434 = vmul.f32 %v4431, %v4433
    %v4435 = vadd.f32 %v4431, %v4434
    %vm4436 = vweird.f32 %v4219
    %vm4437 = vweird.f32 %v4431
    %vm4438 = vmor %vm4436, %vm4437
    %v4439 = vsel %vm4438, %v4431, %v4435
    %v4440 = vand.u32 2147483647, %v4219
    %vm4441 = vcmp.eq.f32.partialorder %v4440, 8.507059e+37
    %v4442 = vand.u32 %v4219, 2147483648
    %v4443 = vor.u32 1.1754944e-38, %v4442
    %v4444 = vsel %vm4441, %v4443, %v4439
    %v4445 = vmul.f32 %v3992, %v4444
    %v4446 = vmul.f32 %v3994, %v4444
    %v4447 = vrcp.pop %v4220
    %v4448 = vmul.f32 %v4220, %v4447
    %v4449 = vsub.f32 1.0, %v4448
    %v4450 = vmul.f32 %v4447, %v4449
    %v4451 = vadd.f32 %v4447, %v4450
    %vm4452 = vweird.f32 %v4220
    %vm4453 = vweird.f32 %v4447
    %vm4454 = vmor %vm4452, %vm4453
    %v4455 = vsel %vm4454, %v4447, %v4451
    %v4456 = vand.u32 2147483647, %v4220
    %vm4457 = vcmp.eq.f32.partialorder %v4456, 8.507059e+37
    %v4458 = vand.u32 %v4220, 2147483648
    %v4459 = vor.u32 1.1754944e-38, %v4458
    %v4460 = vsel %vm4457, %v4459, %v4455
    %v4461 = vmul.f32 %v3996, %v4460
    %v4462 = vmul.f32 %v3998, %v4460
    %v4463 = vrcp.pop %v4221
    %v4464 = vmul.f32 %v4221, %v4463
    %v4465 = vsub.f32 1.0, %v4464
    %v4466 = vmul.f32 %v4463, %v4465
    %v4467 = vadd.f32 %v4463, %v4466
    %vm4468 = vweird.f32 %v4221
    %vm4469 = vweird.f32 %v4463
    %vm4470 = vmor %vm4468, %vm4469
    %v4471 = vsel %vm4470, %v4463, %v4467
    %v4472 = vand.u32 2147483647, %v4221
    %vm4473 = vcmp.eq.f32.partialorder %v4472, 8.507059e+37
    %v4474 = vand.u32 %v4221, 2147483648
    %v4475 = vor.u32 1.1754944e-38, %v4474
    %v4476 = vsel %vm4473, %v4475, %v4471
    %v4477 = vmul.f32 %v4000, %v4476
    %v4478 = vmul.f32 %v4002, %v4476
    %v4479 = vrcp.pop %v4222
    %v4480 = vmul.f32 %v4222, %v4479
    %v4481 = vsub.f32 1.0, %v4480
    %v4482 = vmul.f32 %v4479, %v4481
    %v4483 = vadd.f32 %v4479, %v4482
    %vm4484 = vweird.f32 %v4222
    %vm4485 = vweird.f32 %v4479
    %vm4486 = vmor %vm4484, %vm4485
    %v4487 = vsel %vm4486, %v4479, %v4483
    %v4488 = vand.u32 2147483647, %v4222
    %vm4489 = vcmp.eq.f32.partialorder %v4488, 8.507059e+37
    %v4490 = vand.u32 %v4222, 2147483648
    %v4491 = vor.u32 1.1754944e-38, %v4490
    %v4492 = vsel %vm4489, %v4491, %v4487
    %v4493 = vmul.f32 %v4004, %v4492
    %v4494 = vmul.f32 %v4006, %v4492
    %4527 = vset.pattern.permute.xlu0 0
    %4528 = vperm.xlu0 %4527, %v4253
    %v4529 = vpop.permute.xlu0 %4528
    %4530 = vset.pattern.permute.xlu0 0
    %4531 = vperm.xlu0 %4530, %v4254
    %v4532 = vpop.permute.xlu0 %4531
    %4533 = vset.pattern.permute.xlu0 0
    %4534 = vperm.xlu0 %4533, %v4269
    %v4535 = vpop.permute.xlu0 %4534
    %4536 = vset.pattern.permute.xlu0 0
    %4537 = vperm.xlu0 %4536, %v4270
    %v4538 = vpop.permute.xlu0 %4537
    %4539 = vset.pattern.permute.xlu0 0
    %4540 = vperm.xlu0 %4539, %v4285
    %v4541 = vpop.permute.xlu0 %4540
    %4542 = vset.pattern.permute.xlu0 0
    %4543 = vperm.xlu0 %4542, %v4286
    %v4544 = vpop.permute.xlu0 %4543
    %4545 = vset.pattern.permute.xlu0 0
    %4546 = vperm.xlu0 %4545, %v4301
    %v4547 = vpop.permute.xlu0 %4546
    %4548 = vset.pattern.permute.xlu0 0
    %4549 = vperm.xlu0 %4548, %v4302
    %v4550 = vpop.permute.xlu0 %4549
    %4551 = vset.pattern.permute.xlu0 0
    %4552 = vperm.xlu0 %4551, %v4317
    %v4553 = vpop.permute.xlu0 %4552
    %4554 = vset.pattern.permute.xlu0 0
    %4555 = vperm.xlu0 %4554, %v4318
    %v4556 = vpop.permute.xlu0 %4555
    %4557 = vset.pattern.permute.xlu0 0
    %4558 = vperm.xlu0 %4557, %v4333
    %v4559 = vpop.permute.xlu0 %4558
    %4560 = vset.pattern.permute.xlu0 0
    %4561 = vperm.xlu0 %4560, %v4334
    %v4562 = vpop.permute.xlu0 %4561
    %4563 = vset.pattern.permute.xlu0 0
    %4564 = vperm.xlu0 %4563, %v4349
    %v4565 = vpop.permute.xlu0 %4564
    %4566 = vset.pattern.permute.xlu0 0
    %4567 = vperm.xlu0 %4566, %v4350
    %v4568 = vpop.permute.xlu0 %4567
    %4569 = vset.pattern.permute.xlu0 0
    %4570 = vperm.xlu0 %4569, %v4365
    %v4571 = vpop.permute.xlu0 %4570
    %4572 = vset.pattern.permute.xlu0 0
    %4573 = vperm.xlu0 %4572, %v4366
    %v4574 = vpop.permute.xlu0 %4573
    %4575 = vset.pattern.permute.xlu0 0
    %4576 = vperm.xlu0 %4575, %v4381
    %v4577 = vpop.permute.xlu0 %4576
    %4578 = vset.pattern.permute.xlu0 0
    %4579 = vperm.xlu0 %4578, %v4382
    %v4580 = vpop.permute.xlu0 %4579
    %4581 = vset.pattern.permute.xlu0 0
    %4582 = vperm.xlu0 %4581, %v4397
    %v4583 = vpop.permute.xlu0 %4582
    %4584 = vset.pattern.permute.xlu0 0
    %4585 = vperm.xlu0 %4584, %v4398
    %v4586 = vpop.permute.xlu0 %4585
    %4587 = vset.pattern.permute.xlu0 0
    %4588 = vperm.xlu0 %4587, %v4413
    %v4589 = vpop.permute.xlu0 %4588
    %4590 = vset.pattern.permute.xlu0 0
    %4591 = vperm.xlu0 %4590, %v4414
    %v4592 = vpop.permute.xlu0 %4591
    %4593 = vset.pattern.permute.xlu0 0
    %4594 = vperm.xlu0 %4593, %v4429
    %v4595 = vpop.permute.xlu0 %4594
    %4596 = vset.pattern.permute.xlu0 0
    %4597 = vperm.xlu0 %4596, %v4430
    %v4598 = vpop.permute.xlu0 %4597
    %4599 = vset.pattern.permute.xlu0 0
    %4600 = vperm.xlu0 %4599, %v4445
    %v4601 = vpop.permute.xlu0 %4600
    %4602 = vset.pattern.permute.xlu0 0
    %4603 = vperm.xlu0 %4602, %v4446
    %v4604 = vpop.permute.xlu0 %4603
    %4605 = vset.pattern.permute.xlu0 0
    %4606 = vperm.xlu0 %4605, %v4461
    %v4607 = vpop.permute.xlu0 %4606
    %4608 = vset.pattern.permute.xlu0 0
    %4609 = vperm.xlu0 %4608, %v4462
    %v4610 = vpop.permute.xlu0 %4609
    %4611 = vset.pattern.permute.xlu0 0
    %4612 = vperm.xlu0 %4611, %v4477
    %v4613 = vpop.permute.xlu0 %4612
    %4614 = vset.pattern.permute.xlu0 0
    %4615 = vperm.xlu0 %4614, %v4478
    %v4616 = vpop.permute.xlu0 %4615
    %4617 = vset.pattern.permute.xlu0 0
    %4618 = vperm.xlu0 %4617, %v4493
    %v4619 = vpop.permute.xlu0 %4618
    %4620 = vset.pattern.permute.xlu0 0
    %4621 = vperm.xlu0 %4620, %v4494
    %v4622 = vpop.permute.xlu0 %4621
    %v4623 = vperm.slane %v4529, %v464
    %v4624 = vperm.slane %v4532, %v1606
    %v4625 = vsel %vm1608, %v4624, %v4623
    %v4626 = vperm.slane %v4535, %v464
    %v4627 = vperm.slane %v4538, %v1606
    %v4628 = vsel %vm1608, %v4627, %v4626
    %v4629 = vperm.slane %v4541, %v464
    %v4630 = vperm.slane %v4544, %v1606
    %v4631 = vsel %vm1608, %v4630, %v4629
    %v4632 = vperm.slane %v4547, %v464
    %v4633 = vperm.slane %v4550, %v1606
    %v4634 = vsel %vm1608, %v4633, %v4632
    %v4635 = vperm.slane %v4553, %v464
    %v4636 = vperm.slane %v4556, %v1606
    %v4637 = vsel %vm1608, %v4636, %v4635
    %v4638 = vperm.slane %v4559, %v464
    %v4639 = vperm.slane %v4562, %v1606
    %v4640 = vsel %vm1608, %v4639, %v4638
    %v4641 = vperm.slane %v4565, %v464
    %v4642 = vperm.slane %v4568, %v1606
    %v4643 = vsel %vm1608, %v4642, %v4641
    %v4644 = vperm.slane %v4571, %v464
    %v4645 = vperm.slane %v4574, %v1606
    %v4646 = vsel %vm1608, %v4645, %v4644
    %v4647 = vperm.slane %v4577, %v464
    %v4648 = vperm.slane %v4580, %v1606
    %v4649 = vsel %vm1608, %v4648, %v4647
    %v4650 = vperm.slane %v4583, %v464
    %v4651 = vperm.slane %v4586, %v1606
    %v4652 = vsel %vm1608, %v4651, %v4650
    %v4653 = vperm.slane %v4589, %v464
    %v4654 = vperm.slane %v4592, %v1606
    %v4655 = vsel %vm1608, %v4654, %v4653
    %v4656 = vperm.slane %v4595, %v464
    %v4657 = vperm.slane %v4598, %v1606
    %v4658 = vsel %vm1608, %v4657, %v4656
    %v4659 = vperm.slane %v4601, %v464
    %v4660 = vperm.slane %v4604, %v1606
    %v4661 = vsel %vm1608, %v4660, %v4659
    %v4662 = vperm.slane %v4607, %v464
    %v4663 = vperm.slane %v4610, %v1606
    %v4664 = vsel %vm1608, %v4663, %v4662
    %v4665 = vperm.slane %v4613, %v464
    %v4666 = vperm.slane %v4616, %v1606
    %v4667 = vsel %vm1608, %v4666, %v4665
    %v4668 = vperm.slane %v4619, %v464
    %v4669 = vperm.slane %v4622, %v1606
    %v4670 = vsel %vm1608, %v4669, %v4668
    %v4671 = vsel %vm473, %v4628, %v4625
    %v4672 = vsel %vm475, %v4631, %v4671
    %v4673 = vsel %vm477, %v4634, %v4672
    %v4674 = vsel %vm479, %v4637, %v4673
    %v4675 = vsel %vm481, %v4640, %v4674
    %v4676 = vsel %vm483, %v4643, %v4675
    %v4677 = vsel %vm485, %v4646, %v4676
    %v4678 = vsel %vm473, %v4652, %v4649
    %v4679 = vsel %vm475, %v4655, %v4678
    %v4680 = vsel %vm477, %v4658, %v4679
    %v4681 = vsel %vm479, %v4661, %v4680
    %v4682 = vsel %vm481, %v4664, %v4681
    %v4683 = vsel %vm483, %v4667, %v4682
    %v4684 = vsel %vm485, %v4670, %v4683
    %v4685 = vsel %vm154, %v4677, 0
    %v4687 = vsel %vm154, %v4684, 0
    %4689 = vmatpush.msra.mxu0 0.0
    %4690 = vmatpush.msra.mxu0 0.0
    %4691 = vmatpush.msra.mxu0 0.0
    %4692 = vmatpush.msra.mxu0 0.0
    %4693 = vmatpush.msra.mxu0 0.0
    %4694 = vmatpush.msra.mxu0 0.0
    %4695 = vmatpush.msra.mxu0 0.0
    %4696 = vmatpush.msra.mxu0 0.0
    %4697 = vmatpush.msra.mxu0 0.0
    %4698 = vmatpush.msra.mxu0 0.0
    %4699 = vmatpush.msra.mxu0 0.0
    %4700 = vmatpush.msra.mxu0 0.0
    %4701 = vmatpush.msra.mxu0 0.0
    %4702 = vmatpush.msra.mxu0 0.0
    %4703 = vmatpush.msra.mxu0 %v2723
    %4704 = vmatpush.msra.mxu0 %v2722
    %4705 = vmatmul.f32.gmra.mxu0 %v4685
    %v4706 = vpop.f32.mrf.mxu0
    %v4707 = vadd.f32 0.0, %v4706
    %4708 = vmatmul.f32.gmra.mxu0 %v4687
    %v4709 = vpop.f32.mrf.mxu0
    %v4710 = vadd.f32 0.0, %v4709
    %4711 = vdwg.mxu0
    %v4712 = vsub.f32 0.0, %v4707
    %v4713 = vsub.f32 0.0, %v4710
    %v4714 = vmul.f32 %v4712, 1.442695
    %v4715 = vpow.pop %v4714
    %v4716 = vmul.f32 %v4713, 1.442695
    %v4717 = vpow.pop %v4716
    %v4718 = vadd.f32 %v4715, 1.0
    %v4719 = vadd.f32 %v4717, 1.0
    %v4720 = vrcp.pop %v4718
    %v4721 = vmul.f32 %v4718, %v4720
    %v4722 = vsub.f32 1.0, %v4721
    %v4723 = vmul.f32 %v4720, %v4722
    %v4724 = vadd.f32 %v4720, %v4723
    %vm4725 = vweird.f32 %v4718
    %vm4726 = vweird.f32 %v4720
    %vm4727 = vmor %vm4725, %vm4726
    %v4728 = vsel %vm4727, %v4720, %v4724
    %v4729 = vand.u32 2147483647, %v4718
    %vm4730 = vcmp.eq.f32.partialorder %v4729, 8.507059e+37
    %v4731 = vand.u32 %v4718, 2147483648
    %v4732 = vor.u32 1.1754944e-38, %v4731
    %v4733 = vsel %vm4730, %v4732, %v4728
    %v4734 = vmul.f32 1.0, %v4733
    %v4735 = vrcp.pop %v4719
    %v4736 = vmul.f32 %v4719, %v4735
    %v4737 = vsub.f32 1.0, %v4736
    %v4738 = vmul.f32 %v4735, %v4737
    %v4739 = vadd.f32 %v4735, %v4738
    %vm4740 = vweird.f32 %v4719
    %vm4741 = vweird.f32 %v4735
    %vm4742 = vmor %vm4740, %vm4741
    %v4743 = vsel %vm4742, %v4735, %v4739
    %v4744 = vand.u32 2147483647, %v4719
    %vm4745 = vcmp.eq.f32.partialorder %v4744, 8.507059e+37
    %v4746 = vand.u32 %v4719, 2147483648
    %v4747 = vor.u32 1.1754944e-38, %v4746
    %v4748 = vsel %vm4745, %v4747, %v4743
    %v4749 = vmul.f32 1.0, %v4748
    %4752 = vrot.lane.b32.xlu0 %v3266, 8
    %v4753 = vpop.permute.xlu0 %4752
    %4754 = vrot.lane.b32.xlu0 %v3281, 8
    %v4755 = vpop.permute.xlu0 %4754
    %4760 = vrot.lane.b32.xlu0 %v4734, 16
    %v4761 = vpop.permute.xlu0 %4760
    %4762 = vrot.lane.b32.xlu0 %v4749, 16
    %v4763 = vpop.permute.xlu0 %4762
    %v4766 = vsel %vm151, %v2722, %v4753
    %v4767 = vsel %vm151, %v2723, %v4755
    %v4768 = vsel %vm154, %v4766, %v4761
    %v4769 = vsel %vm154, %v4767, %v4763
    %v4771 = vsel %vm157, %v4768, 0
    %v4774 = vsel %vm157, %v4769, 0
    %4776 = vmatpush.msra.mxu0 0.0
    %4777 = vmatpush.msra.mxu0 0.0
    %4778 = vmatpush.msra.mxu0 0.0
    %4779 = vmatpush.msra.mxu0 0.0
    %4780 = vmatpush.msra.mxu0 0.0
    %4781 = vmatpush.msra.mxu0 0.0
    %4782 = vmatpush.msra.mxu0 0.0
    %4783 = vmatpush.msra.mxu0 0.0
    %4784 = vmatpush.msra.mxu0 0.0
    %4785 = vmatpush.msra.mxu0 0.0
    %4786 = vmatpush.msra.mxu0 0.0
    %4787 = vmatpush.msra.mxu0 0.0
    %4788 = vmatpush.msra.mxu0 0.0
    %4789 = vmatpush.msra.mxu0 %v48
    %4790 = vmatpush.msra.mxu0 %v47
    %4791 = vmatpush.msra.mxu0 %v46
    %4792 = vmatmul.f32.gmra.mxu0 %v4771
    %v4793 = vpop.f32.mrf.mxu0
    %v4794 = vadd.f32 %v2570, %v4793
    %4795 = vmatmul.f32.gmra.mxu0 %v4774
    %v4796 = vpop.f32.mrf.mxu0
    %v4797 = vadd.f32 %v2570, %v4796
    %4798 = vdwg.mxu0
    %v4800 = vrot.slane %v4794, 7
    %vm4802 = vcmask 1040384
    %v4803 = vsel %vm4802, %v2595, %v4800
    %v4804 = vperm.slane %v54, 0
    %v4806 = vsel %vm160, 0.0, 0
    %4808 = vmatpush.msra.mxu0 0.0
    %4809 = vmatpush.msra.mxu0 0.0
    %4810 = vmatpush.msra.mxu0 0.0
    %4811 = vmatpush.msra.mxu0 0.0
    %4812 = vmatpush.msra.mxu0 0.0
    %4813 = vmatpush.msra.mxu0 0.0
    %4814 = vmatpush.msra.mxu0 0.0
    %4815 = vmatpush.msra.mxu0 0.0
    %4816 = vmatpush.msra.mxu0 0.0
    %4817 = vmatpush.msra.mxu0 0.0
    %4818 = vmatpush.msra.mxu0 0.0
    %4819 = vmatpush.msra.mxu0 0.0
    %4820 = vmatpush.msra.mxu0 %v52
    %4821 = vmatpush.msra.mxu0 %v51
    %4822 = vmatpush.msra.mxu0 %v50
    %4823 = vmatpush.msra.mxu0 %v49
    %4824 = vmatmul.f32.gmra.mxu0 %v4806
    %v4825 = vpop.f32.mrf.mxu0
    %v4826 = vadd.f32 %v4804, %v4825
    %4827 = vdwg.mxu0
    %v4828 = vadd.f32 %v4803, %v4826
    %v4829 = vsub.f32 0.0, %v4828
    %v4830 = vmul.f32 %v4829, 1.442695
    %v4831 = vpow.pop %v4830
    %v4832 = vadd.f32 %v4831, 1.0
    %v4833 = vrcp.pop %v4832
    %v4834 = vmul.f32 %v4832, %v4833
    %v4835 = vsub.f32 1.0, %v4834
    %v4836 = vmul.f32 %v4833, %v4835
    %v4837 = vadd.f32 %v4833, %v4836
    %vm4838 = vweird.f32 %v4832
    %vm4839 = vweird.f32 %v4833
    %vm4840 = vmor %vm4838, %vm4839
    %v4841 = vsel %vm4840, %v4833, %v4837
    %v4842 = vand.u32 2147483647, %v4832
    %vm4843 = vcmp.eq.f32.partialorder %v4842, 8.507059e+37
    %v4844 = vand.u32 %v4832, 2147483648
    %v4845 = vor.u32 1.1754944e-38, %v4844
    %v4846 = vsel %vm4843, %v4845, %v4841
    %v4847 = vmul.f32 1.0, %v4846
    %4849 = vrot.lane.b32.xlu0 %v4826, 64
    %v4850 = vpop.permute.xlu0 %4849
    %v4852 = vmul.f32 %v4847, %v4850
    %4854 = vrot.lane.b32.xlu0 %v4852, 64
    %v4855 = vpop.permute.xlu0 %4854
    %v4857 = vadd.f32 %v4803, %v4855
    %v4858 = vtanh.pop %v4857
    %v4859 = vsub.f32 1.0, %v4847
    %4861 = vrot.lane.b32.xlu0 %v4858, 96
    %v4862 = vpop.permute.xlu0 %4861
    %v4864 = vmul.f32 %v4859, %v4862
    %v4865 = vmul.f32 %v4847, 0.0
    %v4866 = vadd.f32 %v4864, %v4865
    %v4868 = vrot.slane %v2595, 1
    %v4870 = vsel %vm4802, %v4868, %v4794
    %4872 = vrot.lane.b32.xlu0 %v4866, 96
    %v4873 = vpop.permute.xlu0 %4872
    %v4874 = vsel %vm160, %v4873, 0
    %4876 = vmatpush.msra.mxu0 0.0
    %4877 = vmatpush.msra.mxu0 0.0
    %4878 = vmatpush.msra.mxu0 0.0
    %4879 = vmatpush.msra.mxu0 0.0
    %4880 = vmatpush.msra.mxu0 0.0
    %4881 = vmatpush.msra.mxu0 0.0
    %4882 = vmatpush.msra.mxu0 0.0
    %4883 = vmatpush.msra.mxu0 0.0
    %4884 = vmatpush.msra.mxu0 0.0
    %4885 = vmatpush.msra.mxu0 0.0
    %4886 = vmatpush.msra.mxu0 0.0
    %4887 = vmatpush.msra.mxu0 0.0
    %4888 = vmatpush.msra.mxu0 %v52
    %4889 = vmatpush.msra.mxu0 %v51
    %4890 = vmatpush.msra.mxu0 %v50
    %4891 = vmatpush.msra.mxu0 %v49
    %4892 = vmatmul.f32.gmra.mxu0 %v4874
    %v4893 = vpop.f32.mrf.mxu0
    %v4894 = vadd.f32 %v4804, %v4893
    %4895 = vdwg.mxu0
    %v4896 = vadd.f32 %v4870, %v4894
    %v4897 = vsub.f32 0.0, %v4896
    %v4898 = vmul.f32 %v4897, 1.442695
    %v4899 = vpow.pop %v4898
    %v4900 = vadd.f32 %v4899, 1.0
    %v4901 = vrcp.pop %v4900
    %v4902 = vmul.f32 %v4900, %v4901
    %v4903 = vsub.f32 1.0, %v4902
    %v4904 = vmul.f32 %v4901, %v4903
    %v4905 = vadd.f32 %v4901, %v4904
    %vm4906 = vweird.f32 %v4900
    %vm4907 = vweird.f32 %v4901
    %vm4908 = vmor %vm4906, %vm4907
    %v4909 = vsel %vm4908, %v4901, %v4905
    %v4910 = vand.u32 2147483647, %v4900
    %vm4911 = vcmp.eq.f32.partialorder %v4910, 8.507059e+37
    %v4912 = vand.u32 %v4900, 2147483648
    %v4913 = vor.u32 1.1754944e-38, %v4912
    %v4914 = vsel %vm4911, %v4913, %v4909
    %v4915 = vmul.f32 1.0, %v4914
    %4917 = vrot.lane.b32.xlu0 %v4894, 64
    %v4918 = vpop.permute.xlu0 %4917
    %v4920 = vmul.f32 %v4915, %v4918
    %4922 = vrot.lane.b32.xlu0 %v4920, 64
    %v4923 = vpop.permute.xlu0 %4922
    %v4925 = vadd.f32 %v4870, %v4923
    %v4926 = vtanh.pop %v4925
    %v4927 = vsub.f32 1.0, %v4915
    %4929 = vrot.lane.b32.xlu0 %v4926, 96
    %v4930 = vpop.permute.xlu0 %4929
    %v4932 = vmul.f32 %v4927, %v4930
    %v4933 = vmul.f32 %v4915, %v4866
    %v4934 = vadd.f32 %v4932, %v4933
    %v4935 = vrot.slane %v2595, 2
    %v4937 = vrot.slane %v4794, 1
    %v4939 = vsel %vm4802, %v4935, %v4937
    %4941 = vrot.lane.b32.xlu0 %v4934, 96
    %v4942 = vpop.permute.xlu0 %4941
    %v4943 = vsel %vm160, %v4942, 0
    %4945 = vmatpush.msra.mxu0 0.0
    %4946 = vmatpush.msra.mxu0 0.0
    %4947 = vmatpush.msra.mxu0 0.0
    %4948 = vmatpush.msra.mxu0 0.0
    %4949 = vmatpush.msra.mxu0 0.0
    %4950 = vmatpush.msra.mxu0 0.0
    %4951 = vmatpush.msra.mxu0 0.0
    %4952 = vmatpush.msra.mxu0 0.0
    %4953 = vmatpush.msra.mxu0 0.0
    %4954 = vmatpush.msra.mxu0 0.0
    %4955 = vmatpush.msra.mxu0 0.0
    %4956 = vmatpush.msra.mxu0 0.0
    %4957 = vmatpush.msra.mxu0 %v52
    %4958 = vmatpush.msra.mxu0 %v51
    %4959 = vmatpush.msra.mxu0 %v50
    %4960 = vmatpush.msra.mxu0 %v49
    %4961 = vmatmul.f32.gmra.mxu0 %v4943
    %v4962 = vpop.f32.mrf.mxu0
    %v4963 = vadd.f32 %v4804, %v4962
    %4964 = vdwg.mxu0
    %v4965 = vadd.f32 %v4939, %v4963
    %v4966 = vsub.f32 0.0, %v4965
    %v4967 = vmul.f32 %v4966, 1.442695
    %v4968 = vpow.pop %v4967
    %v4969 = vadd.f32 %v4968, 1.0
    %v4970 = vrcp.pop %v4969
    %v4971 = vmul.f32 %v4969, %v4970
    %v4972 = vsub.f32 1.0, %v4971
    %v4973 = vmul.f32 %v4970, %v4972
    %v4974 = vadd.f32 %v4970, %v4973
    %vm4975 = vweird.f32 %v4969
    %vm4976 = vweird.f32 %v4970
    %vm4977 = vmor %vm4975, %vm4976
    %v4978 = vsel %vm4977, %v4970, %v4974
    %v4979 = vand.u32 2147483647, %v4969
    %vm4980 = vcmp.eq.f32.partialorder %v4979, 8.507059e+37
    %v4981 = vand.u32 %v4969, 2147483648
    %v4982 = vor.u32 1.1754944e-38, %v4981
    %v4983 = vsel %vm4980, %v4982, %v4978
    %v4984 = vmul.f32 1.0, %v4983
    %4986 = vrot.lane.b32.xlu0 %v4963, 64
    %v4987 = vpop.permute.xlu0 %4986
    %v4989 = vmul.f32 %v4984, %v4987
    %4991 = vrot.lane.b32.xlu0 %v4989, 64
    %v4992 = vpop.permute.xlu0 %4991
    %v4994 = vadd.f32 %v4939, %v4992
    %v4995 = vtanh.pop %v4994
    %v4996 = vsub.f32 1.0, %v4984
    %4998 = vrot.lane.b32.xlu0 %v4995, 96
    %v4999 = vpop.permute.xlu0 %4998
    %v5001 = vmul.f32 %v4996, %v4999
    %v5002 = vmul.f32 %v4984, %v4934
    %v5003 = vadd.f32 %v5001, %v5002
    %v5004 = vrot.slane %v2595, 3
    %v5006 = vrot.slane %v4794, 2
    %v5008 = vsel %vm4802, %v5004, %v5006
    %5010 = vrot.lane.b32.xlu0 %v5003, 96
    %v5011 = vpop.permute.xlu0 %5010
    %v5012 = vsel %vm160, %v5011, 0
    %5014 = vmatpush.msra.mxu0 0.0
    %5015 = vmatpush.msra.mxu0 0.0
    %5016 = vmatpush.msra.mxu0 0.0
    %5017 = vmatpush.msra.mxu0 0.0
    %5018 = vmatpush.msra.mxu0 0.0
    %5019 = vmatpush.msra.mxu0 0.0
    %5020 = vmatpush.msra.mxu0 0.0
    %5021 = vmatpush.msra.mxu0 0.0
    %5022 = vmatpush.msra.mxu0 0.0
    %5023 = vmatpush.msra.mxu0 0.0
    %5024 = vmatpush.msra.mxu0 0.0
    %5025 = vmatpush.msra.mxu0 0.0
    %5026 = vmatpush.msra.mxu0 %v52
    %5027 = vmatpush.msra.mxu0 %v51
    %5028 = vmatpush.msra.mxu0 %v50
    %5029 = vmatpush.msra.mxu0 %v49
    %5030 = vmatmul.f32.gmra.mxu0 %v5012
    %v5031 = vpop.f32.mrf.mxu0
    %v5032 = vadd.f32 %v4804, %v5031
    %5033 = vdwg.mxu0
    %v5034 = vadd.f32 %v5008, %v5032
    %v5035 = vsub.f32 0.0, %v5034
    %v5036 = vmul.f32 %v5035, 1.442695
    %v5037 = vpow.pop %v5036
    %v5038 = vadd.f32 %v5037, 1.0
    %v5039 = vrcp.pop %v5038
    %v5040 = vmul.f32 %v5038, %v5039
    %v5041 = vsub.f32 1.0, %v5040
    %v5042 = vmul.f32 %v5039, %v5041
    %v5043 = vadd.f32 %v5039, %v5042
    %vm5044 = vweird.f32 %v5038
    %vm5045 = vweird.f32 %v5039
    %vm5046 = vmor %vm5044, %vm5045
    %v5047 = vsel %vm5046, %v5039, %v5043
    %v5048 = vand.u32 2147483647, %v5038
    %vm5049 = vcmp.eq.f32.partialorder %v5048, 8.507059e+37
    %v5050 = vand.u32 %v5038, 2147483648
    %v5051 = vor.u32 1.1754944e-38, %v5050
    %v5052 = vsel %vm5049, %v5051, %v5047
    %v5053 = vmul.f32 1.0, %v5052
    %5055 = vrot.lane.b32.xlu0 %v5032, 64
    %v5056 = vpop.permute.xlu0 %5055
    %v5058 = vmul.f32 %v5053, %v5056
    %5060 = vrot.lane.b32.xlu0 %v5058, 64
    %v5061 = vpop.permute.xlu0 %5060
    %v5063 = vadd.f32 %v5008, %v5061
    %v5064 = vtanh.pop %v5063
    %v5065 = vsub.f32 1.0, %v5053
    %5067 = vrot.lane.b32.xlu0 %v5064, 96
    %v5068 = vpop.permute.xlu0 %5067
    %v5070 = vmul.f32 %v5065, %v5068
    %v5071 = vmul.f32 %v5053, %v5003
    %v5072 = vadd.f32 %v5070, %v5071
    %v5073 = vrot.slane %v2595, 4
    %v5075 = vrot.slane %v4794, 3
    %v5077 = vsel %vm4802, %v5073, %v5075
    %5079 = vrot.lane.b32.xlu0 %v5072, 96
    %v5080 = vpop.permute.xlu0 %5079
    %v5081 = vsel %vm160, %v5080, 0
    %5083 = vmatpush.msra.mxu0 0.0
    %5084 = vmatpush.msra.mxu0 0.0
    %5085 = vmatpush.msra.mxu0 0.0
    %5086 = vmatpush.msra.mxu0 0.0
    %5087 = vmatpush.msra.mxu0 0.0
    %5088 = vmatpush.msra.mxu0 0.0
    %5089 = vmatpush.msra.mxu0 0.0
    %5090 = vmatpush.msra.mxu0 0.0
    %5091 = vmatpush.msra.mxu0 0.0
    %5092 = vmatpush.msra.mxu0 0.0
    %5093 = vmatpush.msra.mxu0 0.0
    %5094 = vmatpush.msra.mxu0 0.0
    %5095 = vmatpush.msra.mxu0 %v52
    %5096 = vmatpush.msra.mxu0 %v51
    %5097 = vmatpush.msra.mxu0 %v50
    %5098 = vmatpush.msra.mxu0 %v49
    %5099 = vmatmul.f32.gmra.mxu0 %v5081
    %v5100 = vpop.f32.mrf.mxu0
    %v5101 = vadd.f32 %v4804, %v5100
    %5102 = vdwg.mxu0
    %v5103 = vadd.f32 %v5077, %v5101
    %v5104 = vsub.f32 0.0, %v5103
    %v5105 = vmul.f32 %v5104, 1.442695
    %v5106 = vpow.pop %v5105
    %v5107 = vadd.f32 %v5106, 1.0
    %v5108 = vrcp.pop %v5107
    %v5109 = vmul.f32 %v5107, %v5108
    %v5110 = vsub.f32 1.0, %v5109
    %v5111 = vmul.f32 %v5108, %v5110
    %v5112 = vadd.f32 %v5108, %v5111
    %vm5113 = vweird.f32 %v5107
    %vm5114 = vweird.f32 %v5108
    %vm5115 = vmor %vm5113, %vm5114
    %v5116 = vsel %vm5115, %v5108, %v5112
    %v5117 = vand.u32 2147483647, %v5107
    %vm5118 = vcmp.eq.f32.partialorder %v5117, 8.507059e+37
    %v5119 = vand.u32 %v5107, 2147483648
    %v5120 = vor.u32 1.1754944e-38, %v5119
    %v5121 = vsel %vm5118, %v5120, %v5116
    %v5122 = vmul.f32 1.0, %v5121
    %5124 = vrot.lane.b32.xlu0 %v5101, 64
    %v5125 = vpop.permute.xlu0 %5124
    %v5127 = vmul.f32 %v5122, %v5125
    %5129 = vrot.lane.b32.xlu0 %v5127, 64
    %v5130 = vpop.permute.xlu0 %5129
    %v5132 = vadd.f32 %v5077, %v5130
    %v5133 = vtanh.pop %v5132
    %v5134 = vsub.f32 1.0, %v5122
    %5136 = vrot.lane.b32.xlu0 %v5133, 96
    %v5137 = vpop.permute.xlu0 %5136
    %v5139 = vmul.f32 %v5134, %v5137
    %v5140 = vmul.f32 %v5122, %v5072
    %v5141 = vadd.f32 %v5139, %v5140
    %v5142 = vrot.slane %v2595, 5
    %v5144 = vrot.slane %v4794, 4
    %v5146 = vsel %vm4802, %v5142, %v5144
    %5148 = vrot.lane.b32.xlu0 %v5141, 96
    %v5149 = vpop.permute.xlu0 %5148
    %v5150 = vsel %vm160, %v5149, 0
    %5152 = vmatpush.msra.mxu0 0.0
    %5153 = vmatpush.msra.mxu0 0.0
    %5154 = vmatpush.msra.mxu0 0.0
    %5155 = vmatpush.msra.mxu0 0.0
    %5156 = vmatpush.msra.mxu0 0.0
    %5157 = vmatpush.msra.mxu0 0.0
    %5158 = vmatpush.msra.mxu0 0.0
    %5159 = vmatpush.msra.mxu0 0.0
    %5160 = vmatpush.msra.mxu0 0.0
    %5161 = vmatpush.msra.mxu0 0.0
    %5162 = vmatpush.msra.mxu0 0.0
    %5163 = vmatpush.msra.mxu0 0.0
    %5164 = vmatpush.msra.mxu0 %v52
    %5165 = vmatpush.msra.mxu0 %v51
    %5166 = vmatpush.msra.mxu0 %v50
    %5167 = vmatpush.msra.mxu0 %v49
    %5168 = vmatmul.f32.gmra.mxu0 %v5150
    %v5169 = vpop.f32.mrf.mxu0
    %v5170 = vadd.f32 %v4804, %v5169
    %5171 = vdwg.mxu0
    %v5172 = vadd.f32 %v5146, %v5170
    %v5173 = vsub.f32 0.0, %v5172
    %v5174 = vmul.f32 %v5173, 1.442695
    %v5175 = vpow.pop %v5174
    %v5176 = vadd.f32 %v5175, 1.0
    %v5177 = vrcp.pop %v5176
    %v5178 = vmul.f32 %v5176, %v5177
    %v5179 = vsub.f32 1.0, %v5178
    %v5180 = vmul.f32 %v5177, %v5179
    %v5181 = vadd.f32 %v5177, %v5180
    %vm5182 = vweird.f32 %v5176
    %vm5183 = vweird.f32 %v5177
    %vm5184 = vmor %vm5182, %vm5183
    %v5185 = vsel %vm5184, %v5177, %v5181
    %v5186 = vand.u32 2147483647, %v5176
    %vm5187 = vcmp.eq.f32.partialorder %v5186, 8.507059e+37
    %v5188 = vand.u32 %v5176, 2147483648
    %v5189 = vor.u32 1.1754944e-38, %v5188
    %v5190 = vsel %vm5187, %v5189, %v5185
    %v5191 = vmul.f32 1.0, %v5190
    %5193 = vrot.lane.b32.xlu0 %v5170, 64
    %v5194 = vpop.permute.xlu0 %5193
    %v5196 = vmul.f32 %v5191, %v5194
    %5198 = vrot.lane.b32.xlu0 %v5196, 64
    %v5199 = vpop.permute.xlu0 %5198
    %v5201 = vadd.f32 %v5146, %v5199
    %v5202 = vtanh.pop %v5201
    %v5203 = vsub.f32 1.0, %v5191
    %5205 = vrot.lane.b32.xlu0 %v5202, 96
    %v5206 = vpop.permute.xlu0 %5205
    %v5208 = vmul.f32 %v5203, %v5206
    %v5209 = vmul.f32 %v5191, %v5141
    %v5210 = vadd.f32 %v5208, %v5209
    %v5211 = vrot.slane %v2595, 6
    %v5213 = vrot.slane %v4794, 5
    %v5215 = vsel %vm4802, %v5211, %v5213
    %5217 = vrot.lane.b32.xlu0 %v5210, 96
    %v5218 = vpop.permute.xlu0 %5217
    %v5219 = vsel %vm160, %v5218, 0
    %5221 = vmatpush.msra.mxu0 0.0
    %5222 = vmatpush.msra.mxu0 0.0
    %5223 = vmatpush.msra.mxu0 0.0
    %5224 = vmatpush.msra.mxu0 0.0
    %5225 = vmatpush.msra.mxu0 0.0
    %5226 = vmatpush.msra.mxu0 0.0
    %5227 = vmatpush.msra.mxu0 0.0
    %5228 = vmatpush.msra.mxu0 0.0
    %5229 = vmatpush.msra.mxu0 0.0
    %5230 = vmatpush.msra.mxu0 0.0
    %5231 = vmatpush.msra.mxu0 0.0
    %5232 = vmatpush.msra.mxu0 0.0
    %5233 = vmatpush.msra.mxu0 %v52
    %5234 = vmatpush.msra.mxu0 %v51
    %5235 = vmatpush.msra.mxu0 %v50
    %5236 = vmatpush.msra.mxu0 %v49
    %5237 = vmatmul.f32.gmra.mxu0 %v5219
    %v5238 = vpop.f32.mrf.mxu0
    %v5239 = vadd.f32 %v4804, %v5238
    %5240 = vdwg.mxu0
    %v5241 = vadd.f32 %v5215, %v5239
    %v5242 = vsub.f32 0.0, %v5241
    %v5243 = vmul.f32 %v5242, 1.442695
    %v5244 = vpow.pop %v5243
    %v5245 = vadd.f32 %v5244, 1.0
    %v5246 = vrcp.pop %v5245
    %v5247 = vmul.f32 %v5245, %v5246
    %v5248 = vsub.f32 1.0, %v5247
    %v5249 = vmul.f32 %v5246, %v5248
    %v5250 = vadd.f32 %v5246, %v5249
    %vm5251 = vweird.f32 %v5245
    %vm5252 = vweird.f32 %v5246
    %vm5253 = vmor %vm5251, %vm5252
    %v5254 = vsel %vm5253, %v5246, %v5250
    %v5255 = vand.u32 2147483647, %v5245
    %vm5256 = vcmp.eq.f32.partialorder %v5255, 8.507059e+37
    %v5257 = vand.u32 %v5245, 2147483648
    %v5258 = vor.u32 1.1754944e-38, %v5257
    %v5259 = vsel %vm5256, %v5258, %v5254
    %v5260 = vmul.f32 1.0, %v5259
    %5262 = vrot.lane.b32.xlu0 %v5239, 64
    %v5263 = vpop.permute.xlu0 %5262
    %v5265 = vmul.f32 %v5260, %v5263
    %5267 = vrot.lane.b32.xlu0 %v5265, 64
    %v5268 = vpop.permute.xlu0 %5267
    %v5270 = vadd.f32 %v5215, %v5268
    %v5271 = vtanh.pop %v5270
    %v5272 = vsub.f32 1.0, %v5260
    %5274 = vrot.lane.b32.xlu0 %v5271, 96
    %v5275 = vpop.permute.xlu0 %5274
    %v5277 = vmul.f32 %v5272, %v5275
    %v5278 = vmul.f32 %v5260, %v5210
    %v5279 = vadd.f32 %v5277, %v5278
    %v5280 = vrot.slane %v2595, 7
    %v5282 = vrot.slane %v4794, 6
    %v5284 = vsel %vm4802, %v5280, %v5282
    %5286 = vrot.lane.b32.xlu0 %v5279, 96
    %v5287 = vpop.permute.xlu0 %5286
    %v5288 = vsel %vm160, %v5287, 0
    %5290 = vmatpush.msra.mxu0 0.0
    %5291 = vmatpush.msra.mxu0 0.0
    %5292 = vmatpush.msra.mxu0 0.0
    %5293 = vmatpush.msra.mxu0 0.0
    %5294 = vmatpush.msra.mxu0 0.0
    %5295 = vmatpush.msra.mxu0 0.0
    %5296 = vmatpush.msra.mxu0 0.0
    %5297 = vmatpush.msra.mxu0 0.0
    %5298 = vmatpush.msra.mxu0 0.0
    %5299 = vmatpush.msra.mxu0 0.0
    %5300 = vmatpush.msra.mxu0 0.0
    %5301 = vmatpush.msra.mxu0 0.0
    %5302 = vmatpush.msra.mxu0 %v52
    %5303 = vmatpush.msra.mxu0 %v51
    %5304 = vmatpush.msra.mxu0 %v50
    %5305 = vmatpush.msra.mxu0 %v49
    %5306 = vmatmul.f32.gmra.mxu0 %v5288
    %v5307 = vpop.f32.mrf.mxu0
    %v5308 = vadd.f32 %v4804, %v5307
    %5309 = vdwg.mxu0
    %v5310 = vadd.f32 %v5284, %v5308
    %v5311 = vsub.f32 0.0, %v5310
    %v5312 = vmul.f32 %v5311, 1.442695
    %v5313 = vpow.pop %v5312
    %v5314 = vadd.f32 %v5313, 1.0
    %v5315 = vrcp.pop %v5314
    %v5316 = vmul.f32 %v5314, %v5315
    %v5317 = vsub.f32 1.0, %v5316
    %v5318 = vmul.f32 %v5315, %v5317
    %v5319 = vadd.f32 %v5315, %v5318
    %vm5320 = vweird.f32 %v5314
    %vm5321 = vweird.f32 %v5315
    %vm5322 = vmor %vm5320, %vm5321
    %v5323 = vsel %vm5322, %v5315, %v5319
    %v5324 = vand.u32 2147483647, %v5314
    %vm5325 = vcmp.eq.f32.partialorder %v5324, 8.507059e+37
    %v5326 = vand.u32 %v5314, 2147483648
    %v5327 = vor.u32 1.1754944e-38, %v5326
    %v5328 = vsel %vm5325, %v5327, %v5323
    %v5329 = vmul.f32 1.0, %v5328
    %5331 = vrot.lane.b32.xlu0 %v5308, 64
    %v5332 = vpop.permute.xlu0 %5331
    %v5334 = vmul.f32 %v5329, %v5332
    %5336 = vrot.lane.b32.xlu0 %v5334, 64
    %v5337 = vpop.permute.xlu0 %5336
    %v5339 = vadd.f32 %v5284, %v5337
    %v5340 = vtanh.pop %v5339
    %v5341 = vsub.f32 1.0, %v5329
    %5343 = vrot.lane.b32.xlu0 %v5340, 96
    %v5344 = vpop.permute.xlu0 %5343
    %v5346 = vmul.f32 %v5341, %v5344
    %v5347 = vmul.f32 %v5329, %v5279
    %v5348 = vadd.f32 %v5346, %v5347
    %v5350 = vrot.slane %v4797, 7
    %v5352 = vsel %vm4802, %v2598, %v5350
    %5354 = vrot.lane.b32.xlu0 %v5348, 96
    %v5355 = vpop.permute.xlu0 %5354
    %v5356 = vsel %vm160, %v5355, 0
    %5358 = vmatpush.msra.mxu0 0.0
    %5359 = vmatpush.msra.mxu0 0.0
    %5360 = vmatpush.msra.mxu0 0.0
    %5361 = vmatpush.msra.mxu0 0.0
    %5362 = vmatpush.msra.mxu0 0.0
    %5363 = vmatpush.msra.mxu0 0.0
    %5364 = vmatpush.msra.mxu0 0.0
    %5365 = vmatpush.msra.mxu0 0.0
    %5366 = vmatpush.msra.mxu0 0.0
    %5367 = vmatpush.msra.mxu0 0.0
    %5368 = vmatpush.msra.mxu0 0.0
    %5369 = vmatpush.msra.mxu0 0.0
    %5370 = vmatpush.msra.mxu0 %v52
    %5371 = vmatpush.msra.mxu0 %v51
    %5372 = vmatpush.msra.mxu0 %v50
    %5373 = vmatpush.msra.mxu0 %v49
    %5374 = vmatmul.f32.gmra.mxu0 %v5356
    %v5375 = vpop.f32.mrf.mxu0
    %v5376 = vadd.f32 %v4804, %v5375
    %5377 = vdwg.mxu0
    %v5378 = vadd.f32 %v5352, %v5376
    %v5379 = vsub.f32 0.0, %v5378
    %v5380 = vmul.f32 %v5379, 1.442695
    %v5381 = vpow.pop %v5380
    %v5382 = vadd.f32 %v5381, 1.0
    %v5383 = vrcp.pop %v5382
    %v5384 = vmul.f32 %v5382, %v5383
    %v5385 = vsub.f32 1.0, %v5384
    %v5386 = vmul.f32 %v5383, %v5385
    %v5387 = vadd.f32 %v5383, %v5386
    %vm5388 = vweird.f32 %v5382
    %vm5389 = vweird.f32 %v5383
    %vm5390 = vmor %vm5388, %vm5389
    %v5391 = vsel %vm5390, %v5383, %v5387
    %v5392 = vand.u32 2147483647, %v5382
    %vm5393 = vcmp.eq.f32.partialorder %v5392, 8.507059e+37
    %v5394 = vand.u32 %v5382, 2147483648
    %v5395 = vor.u32 1.1754944e-38, %v5394
    %v5396 = vsel %vm5393, %v5395, %v5391
    %v5397 = vmul.f32 1.0, %v5396
    %5399 = vrot.lane.b32.xlu0 %v5376, 64
    %v5400 = vpop.permute.xlu0 %5399
    %v5402 = vmul.f32 %v5397, %v5400
    %5404 = vrot.lane.b32.xlu0 %v5402, 64
    %v5405 = vpop.permute.xlu0 %5404
    %v5407 = vadd.f32 %v5352, %v5405
    %v5408 = vtanh.pop %v5407
    %v5409 = vsub.f32 1.0, %v5397
    %5411 = vrot.lane.b32.xlu0 %v5408, 96
    %v5412 = vpop.permute.xlu0 %5411
    %v5414 = vmul.f32 %v5409, %v5412
    %v5415 = vmul.f32 %v5397, %v5348
    %v5416 = vadd.f32 %v5414, %v5415
    %v5418 = vrot.slane %v2598, 1
    %v5420 = vsel %vm4802, %v5418, %v4797
    %5422 = vrot.lane.b32.xlu0 %v5416, 96
    %v5423 = vpop.permute.xlu0 %5422
    %v5424 = vsel %vm160, %v5423, 0
    %5426 = vmatpush.msra.mxu0 0.0
    %5427 = vmatpush.msra.mxu0 0.0
    %5428 = vmatpush.msra.mxu0 0.0
    %5429 = vmatpush.msra.mxu0 0.0
    %5430 = vmatpush.msra.mxu0 0.0
    %5431 = vmatpush.msra.mxu0 0.0
    %5432 = vmatpush.msra.mxu0 0.0
    %5433 = vmatpush.msra.mxu0 0.0
    %5434 = vmatpush.msra.mxu0 0.0
    %5435 = vmatpush.msra.mxu0 0.0
    %5436 = vmatpush.msra.mxu0 0.0
    %5437 = vmatpush.msra.mxu0 0.0
    %5438 = vmatpush.msra.mxu0 %v52
    %5439 = vmatpush.msra.mxu0 %v51
    %5440 = vmatpush.msra.mxu0 %v50
    %5441 = vmatpush.msra.mxu0 %v49
    %5442 = vmatmul.f32.gmra.mxu0 %v5424
    %v5443 = vpop.f32.mrf.mxu0
    %v5444 = vadd.f32 %v4804, %v5443
    %5445 = vdwg.mxu0
    %v5446 = vadd.f32 %v5420, %v5444
    %v5447 = vsub.f32 0.0, %v5446
    %v5448 = vmul.f32 %v5447, 1.442695
    %v5449 = vpow.pop %v5448
    %v5450 = vadd.f32 %v5449, 1.0
    %v5451 = vrcp.pop %v5450
    %v5452 = vmul.f32 %v5450, %v5451
    %v5453 = vsub.f32 1.0, %v5452
    %v5454 = vmul.f32 %v5451, %v5453
    %v5455 = vadd.f32 %v5451, %v5454
    %vm5456 = vweird.f32 %v5450
    %vm5457 = vweird.f32 %v5451
    %vm5458 = vmor %vm5456, %vm5457
    %v5459 = vsel %vm5458, %v5451, %v5455
    %v5460 = vand.u32 2147483647, %v5450
    %vm5461 = vcmp.eq.f32.partialorder %v5460, 8.507059e+37
    %v5462 = vand.u32 %v5450, 2147483648
    %v5463 = vor.u32 1.1754944e-38, %v5462
    %v5464 = vsel %vm5461, %v5463, %v5459
    %v5465 = vmul.f32 1.0, %v5464
    %5467 = vrot.lane.b32.xlu0 %v5444, 64
    %v5468 = vpop.permute.xlu0 %5467
    %v5470 = vmul.f32 %v5465, %v5468
    %5472 = vrot.lane.b32.xlu0 %v5470, 64
    %v5473 = vpop.permute.xlu0 %5472
    %v5475 = vadd.f32 %v5420, %v5473
    %v5476 = vtanh.pop %v5475
    %v5477 = vsub.f32 1.0, %v5465
    %5479 = vrot.lane.b32.xlu0 %v5476, 96
    %v5480 = vpop.permute.xlu0 %5479
    %v5482 = vmul.f32 %v5477, %v5480
    %v5483 = vmul.f32 %v5465, %v5416
    %v5484 = vadd.f32 %v5482, %v5483
    %v5485 = vrot.slane %v2598, 2
    %v5487 = vrot.slane %v4797, 1
    %v5489 = vsel %vm4802, %v5485, %v5487
    %5491 = vrot.lane.b32.xlu0 %v5484, 96
    %v5492 = vpop.permute.xlu0 %5491
    %v5493 = vsel %vm160, %v5492, 0
    %5495 = vmatpush.msra.mxu0 0.0
    %5496 = vmatpush.msra.mxu0 0.0
    %5497 = vmatpush.msra.mxu0 0.0
    %5498 = vmatpush.msra.mxu0 0.0
    %5499 = vmatpush.msra.mxu0 0.0
    %5500 = vmatpush.msra.mxu0 0.0
    %5501 = vmatpush.msra.mxu0 0.0
    %5502 = vmatpush.msra.mxu0 0.0
    %5503 = vmatpush.msra.mxu0 0.0
    %5504 = vmatpush.msra.mxu0 0.0
    %5505 = vmatpush.msra.mxu0 0.0
    %5506 = vmatpush.msra.mxu0 0.0
    %5507 = vmatpush.msra.mxu0 %v52
    %5508 = vmatpush.msra.mxu0 %v51
    %5509 = vmatpush.msra.mxu0 %v50
    %5510 = vmatpush.msra.mxu0 %v49
    %5511 = vmatmul.f32.gmra.mxu0 %v5493
    %v5512 = vpop.f32.mrf.mxu0
    %v5513 = vadd.f32 %v4804, %v5512
    %5514 = vdwg.mxu0
    %v5515 = vadd.f32 %v5489, %v5513
    %v5516 = vsub.f32 0.0, %v5515
    %v5517 = vmul.f32 %v5516, 1.442695
    %v5518 = vpow.pop %v5517
    %v5519 = vadd.f32 %v5518, 1.0
    %v5520 = vrcp.pop %v5519
    %v5521 = vmul.f32 %v5519, %v5520
    %v5522 = vsub.f32 1.0, %v5521
    %v5523 = vmul.f32 %v5520, %v5522
    %v5524 = vadd.f32 %v5520, %v5523
    %vm5525 = vweird.f32 %v5519
    %vm5526 = vweird.f32 %v5520
    %vm5527 = vmor %vm5525, %vm5526
    %v5528 = vsel %vm5527, %v5520, %v5524
    %v5529 = vand.u32 2147483647, %v5519
    %vm5530 = vcmp.eq.f32.partialorder %v5529, 8.507059e+37
    %v5531 = vand.u32 %v5519, 2147483648
    %v5532 = vor.u32 1.1754944e-38, %v5531
    %v5533 = vsel %vm5530, %v5532, %v5528
    %v5534 = vmul.f32 1.0, %v5533
    %5536 = vrot.lane.b32.xlu0 %v5513, 64
    %v5537 = vpop.permute.xlu0 %5536
    %v5539 = vmul.f32 %v5534, %v5537
    %5541 = vrot.lane.b32.xlu0 %v5539, 64
    %v5542 = vpop.permute.xlu0 %5541
    %v5544 = vadd.f32 %v5489, %v5542
    %v5545 = vtanh.pop %v5544
    %v5546 = vsub.f32 1.0, %v5534
    %5548 = vrot.lane.b32.xlu0 %v5545, 96
    %v5549 = vpop.permute.xlu0 %5548
    %v5551 = vmul.f32 %v5546, %v5549
    %v5552 = vmul.f32 %v5534, %v5484
    %v5553 = vadd.f32 %v5551, %v5552
    %v5554 = vrot.slane %v2598, 3
    %v5556 = vrot.slane %v4797, 2
    %v5558 = vsel %vm4802, %v5554, %v5556
    %5560 = vrot.lane.b32.xlu0 %v5553, 96
    %v5561 = vpop.permute.xlu0 %5560
    %v5562 = vsel %vm160, %v5561, 0
    %5564 = vmatpush.msra.mxu0 0.0
    %5565 = vmatpush.msra.mxu0 0.0
    %5566 = vmatpush.msra.mxu0 0.0
    %5567 = vmatpush.msra.mxu0 0.0
    %5568 = vmatpush.msra.mxu0 0.0
    %5569 = vmatpush.msra.mxu0 0.0
    %5570 = vmatpush.msra.mxu0 0.0
    %5571 = vmatpush.msra.mxu0 0.0
    %5572 = vmatpush.msra.mxu0 0.0
    %5573 = vmatpush.msra.mxu0 0.0
    %5574 = vmatpush.msra.mxu0 0.0
    %5575 = vmatpush.msra.mxu0 0.0
    %5576 = vmatpush.msra.mxu0 %v52
    %5577 = vmatpush.msra.mxu0 %v51
    %5578 = vmatpush.msra.mxu0 %v50
    %5579 = vmatpush.msra.mxu0 %v49
    %5580 = vmatmul.f32.gmra.mxu0 %v5562
    %v5581 = vpop.f32.mrf.mxu0
    %v5582 = vadd.f32 %v4804, %v5581
    %5583 = vdwg.mxu0
    %v5584 = vadd.f32 %v5558, %v5582
    %v5585 = vsub.f32 0.0, %v5584
    %v5586 = vmul.f32 %v5585, 1.442695
    %v5587 = vpow.pop %v5586
    %v5588 = vadd.f32 %v5587, 1.0
    %v5589 = vrcp.pop %v5588
    %v5590 = vmul.f32 %v5588, %v5589
    %v5591 = vsub.f32 1.0, %v5590
    %v5592 = vmul.f32 %v5589, %v5591
    %v5593 = vadd.f32 %v5589, %v5592
    %vm5594 = vweird.f32 %v5588
    %vm5595 = vweird.f32 %v5589
    %vm5596 = vmor %vm5594, %vm5595
    %v5597 = vsel %vm5596, %v5589, %v5593
    %v5598 = vand.u32 2147483647, %v5588
    %vm5599 = vcmp.eq.f32.partialorder %v5598, 8.507059e+37
    %v5600 = vand.u32 %v5588, 2147483648
    %v5601 = vor.u32 1.1754944e-38, %v5600
    %v5602 = vsel %vm5599, %v5601, %v5597
    %v5603 = vmul.f32 1.0, %v5602
    %5605 = vrot.lane.b32.xlu0 %v5582, 64
    %v5606 = vpop.permute.xlu0 %5605
    %v5608 = vmul.f32 %v5603, %v5606
    %5610 = vrot.lane.b32.xlu0 %v5608, 64
    %v5611 = vpop.permute.xlu0 %5610
    %v5613 = vadd.f32 %v5558, %v5611
    %v5614 = vtanh.pop %v5613
    %v5615 = vsub.f32 1.0, %v5603
    %5617 = vrot.lane.b32.xlu0 %v5614, 96
    %v5618 = vpop.permute.xlu0 %5617
    %v5620 = vmul.f32 %v5615, %v5618
    %v5621 = vmul.f32 %v5603, %v5553
    %v5622 = vadd.f32 %v5620, %v5621
    %v5623 = vrot.slane %v2598, 4
    %v5625 = vrot.slane %v4797, 3
    %v5627 = vsel %vm4802, %v5623, %v5625
    %5629 = vrot.lane.b32.xlu0 %v5622, 96
    %v5630 = vpop.permute.xlu0 %5629
    %v5631 = vsel %vm160, %v5630, 0
    %5633 = vmatpush.msra.mxu0 0.0
    %5634 = vmatpush.msra.mxu0 0.0
    %5635 = vmatpush.msra.mxu0 0.0
    %5636 = vmatpush.msra.mxu0 0.0
    %5637 = vmatpush.msra.mxu0 0.0
    %5638 = vmatpush.msra.mxu0 0.0
    %5639 = vmatpush.msra.mxu0 0.0
    %5640 = vmatpush.msra.mxu0 0.0
    %5641 = vmatpush.msra.mxu0 0.0
    %5642 = vmatpush.msra.mxu0 0.0
    %5643 = vmatpush.msra.mxu0 0.0
    %5644 = vmatpush.msra.mxu0 0.0
    %5645 = vmatpush.msra.mxu0 %v52
    %5646 = vmatpush.msra.mxu0 %v51
    %5647 = vmatpush.msra.mxu0 %v50
    %5648 = vmatpush.msra.mxu0 %v49
    %5649 = vmatmul.f32.gmra.mxu0 %v5631
    %v5650 = vpop.f32.mrf.mxu0
    %v5651 = vadd.f32 %v4804, %v5650
    %5652 = vdwg.mxu0
    %v5653 = vadd.f32 %v5627, %v5651
    %v5654 = vsub.f32 0.0, %v5653
    %v5655 = vmul.f32 %v5654, 1.442695
    %v5656 = vpow.pop %v5655
    %v5657 = vadd.f32 %v5656, 1.0
    %v5658 = vrcp.pop %v5657
    %v5659 = vmul.f32 %v5657, %v5658
    %v5660 = vsub.f32 1.0, %v5659
    %v5661 = vmul.f32 %v5658, %v5660
    %v5662 = vadd.f32 %v5658, %v5661
    %vm5663 = vweird.f32 %v5657
    %vm5664 = vweird.f32 %v5658
    %vm5665 = vmor %vm5663, %vm5664
    %v5666 = vsel %vm5665, %v5658, %v5662
    %v5667 = vand.u32 2147483647, %v5657
    %vm5668 = vcmp.eq.f32.partialorder %v5667, 8.507059e+37
    %v5669 = vand.u32 %v5657, 2147483648
    %v5670 = vor.u32 1.1754944e-38, %v5669
    %v5671 = vsel %vm5668, %v5670, %v5666
    %v5672 = vmul.f32 1.0, %v5671
    %5674 = vrot.lane.b32.xlu0 %v5651, 64
    %v5675 = vpop.permute.xlu0 %5674
    %v5677 = vmul.f32 %v5672, %v5675
    %5679 = vrot.lane.b32.xlu0 %v5677, 64
    %v5680 = vpop.permute.xlu0 %5679
    %v5682 = vadd.f32 %v5627, %v5680
    %v5683 = vtanh.pop %v5682
    %v5684 = vsub.f32 1.0, %v5672
    %5686 = vrot.lane.b32.xlu0 %v5683, 96
    %v5687 = vpop.permute.xlu0 %5686
    %v5689 = vmul.f32 %v5684, %v5687
    %v5690 = vmul.f32 %v5672, %v5622
    %v5691 = vadd.f32 %v5689, %v5690
    %v5692 = vrot.slane %v2598, 5
    %v5694 = vrot.slane %v4797, 4
    %v5696 = vsel %vm4802, %v5692, %v5694
    %5698 = vrot.lane.b32.xlu0 %v5691, 96
    %v5699 = vpop.permute.xlu0 %5698
    %v5700 = vsel %vm160, %v5699, 0
    %5702 = vmatpush.msra.mxu0 0.0
    %5703 = vmatpush.msra.mxu0 0.0
    %5704 = vmatpush.msra.mxu0 0.0
    %5705 = vmatpush.msra.mxu0 0.0
    %5706 = vmatpush.msra.mxu0 0.0
    %5707 = vmatpush.msra.mxu0 0.0
    %5708 = vmatpush.msra.mxu0 0.0
    %5709 = vmatpush.msra.mxu0 0.0
    %5710 = vmatpush.msra.mxu0 0.0
    %5711 = vmatpush.msra.mxu0 0.0
    %5712 = vmatpush.msra.mxu0 0.0
    %5713 = vmatpush.msra.mxu0 0.0
    %5714 = vmatpush.msra.mxu0 %v52
    %5715 = vmatpush.msra.mxu0 %v51
    %5716 = vmatpush.msra.mxu0 %v50
    %5717 = vmatpush.msra.mxu0 %v49
    %5718 = vmatmul.f32.gmra.mxu0 %v5700
    %v5719 = vpop.f32.mrf.mxu0
    %v5720 = vadd.f32 %v4804, %v5719
    %5721 = vdwg.mxu0
    %v5722 = vadd.f32 %v5696, %v5720
    %v5723 = vsub.f32 0.0, %v5722
    %v5724 = vmul.f32 %v5723, 1.442695
    %v5725 = vpow.pop %v5724
    %v5726 = vadd.f32 %v5725, 1.0
    %v5727 = vrcp.pop %v5726
    %v5728 = vmul.f32 %v5726, %v5727
    %v5729 = vsub.f32 1.0, %v5728
    %v5730 = vmul.f32 %v5727, %v5729
    %v5731 = vadd.f32 %v5727, %v5730
    %vm5732 = vweird.f32 %v5726
    %vm5733 = vweird.f32 %v5727
    %vm5734 = vmor %vm5732, %vm5733
    %v5735 = vsel %vm5734, %v5727, %v5731
    %v5736 = vand.u32 2147483647, %v5726
    %vm5737 = vcmp.eq.f32.partialorder %v5736, 8.507059e+37
    %v5738 = vand.u32 %v5726, 2147483648
    %v5739 = vor.u32 1.1754944e-38, %v5738
    %v5740 = vsel %vm5737, %v5739, %v5735
    %v5741 = vmul.f32 1.0, %v5740
    %5743 = vrot.lane.b32.xlu0 %v5720, 64
    %v5744 = vpop.permute.xlu0 %5743
    %v5746 = vmul.f32 %v5741, %v5744
    %5748 = vrot.lane.b32.xlu0 %v5746, 64
    %v5749 = vpop.permute.xlu0 %5748
    %v5751 = vadd.f32 %v5696, %v5749
    %v5752 = vtanh.pop %v5751
    %v5753 = vsub.f32 1.0, %v5741
    %5755 = vrot.lane.b32.xlu0 %v5752, 96
    %v5756 = vpop.permute.xlu0 %5755
    %v5758 = vmul.f32 %v5753, %v5756
    %v5759 = vmul.f32 %v5741, %v5691
    %v5760 = vadd.f32 %v5758, %v5759
    %v5761 = vrot.slane %v2598, 6
    %v5763 = vrot.slane %v4797, 5
    %v5765 = vsel %vm4802, %v5761, %v5763
    %5767 = vrot.lane.b32.xlu0 %v5760, 96
    %v5768 = vpop.permute.xlu0 %5767
    %v5769 = vsel %vm160, %v5768, 0
    %5771 = vmatpush.msra.mxu0 0.0
    %5772 = vmatpush.msra.mxu0 0.0
    %5773 = vmatpush.msra.mxu0 0.0
    %5774 = vmatpush.msra.mxu0 0.0
    %5775 = vmatpush.msra.mxu0 0.0
    %5776 = vmatpush.msra.mxu0 0.0
    %5777 = vmatpush.msra.mxu0 0.0
    %5778 = vmatpush.msra.mxu0 0.0
    %5779 = vmatpush.msra.mxu0 0.0
    %5780 = vmatpush.msra.mxu0 0.0
    %5781 = vmatpush.msra.mxu0 0.0
    %5782 = vmatpush.msra.mxu0 0.0
    %5783 = vmatpush.msra.mxu0 %v52
    %5784 = vmatpush.msra.mxu0 %v51
    %5785 = vmatpush.msra.mxu0 %v50
    %5786 = vmatpush.msra.mxu0 %v49
    %5787 = vmatmul.f32.gmra.mxu0 %v5769
    %v5788 = vpop.f32.mrf.mxu0
    %v5789 = vadd.f32 %v4804, %v5788
    %5790 = vdwg.mxu0
    %v5791 = vadd.f32 %v5765, %v5789
    %v5792 = vsub.f32 0.0, %v5791
    %v5793 = vmul.f32 %v5792, 1.442695
    %v5794 = vpow.pop %v5793
    %v5795 = vadd.f32 %v5794, 1.0
    %v5796 = vrcp.pop %v5795
    %v5797 = vmul.f32 %v5795, %v5796
    %v5798 = vsub.f32 1.0, %v5797
    %v5799 = vmul.f32 %v5796, %v5798
    %v5800 = vadd.f32 %v5796, %v5799
    %vm5801 = vweird.f32 %v5795
    %vm5802 = vweird.f32 %v5796
    %vm5803 = vmor %vm5801, %vm5802
    %v5804 = vsel %vm5803, %v5796, %v5800
    %v5805 = vand.u32 2147483647, %v5795
    %vm5806 = vcmp.eq.f32.partialorder %v5805, 8.507059e+37
    %v5807 = vand.u32 %v5795, 2147483648
    %v5808 = vor.u32 1.1754944e-38, %v5807
    %v5809 = vsel %vm5806, %v5808, %v5804
    %v5810 = vmul.f32 1.0, %v5809
    %5812 = vrot.lane.b32.xlu0 %v5789, 64
    %v5813 = vpop.permute.xlu0 %5812
    %v5815 = vmul.f32 %v5810, %v5813
    %5817 = vrot.lane.b32.xlu0 %v5815, 64
    %v5818 = vpop.permute.xlu0 %5817
    %v5820 = vadd.f32 %v5765, %v5818
    %v5821 = vtanh.pop %v5820
    %v5822 = vsub.f32 1.0, %v5810
    %5824 = vrot.lane.b32.xlu0 %v5821, 96
    %v5825 = vpop.permute.xlu0 %5824
    %v5827 = vmul.f32 %v5822, %v5825
    %v5828 = vmul.f32 %v5810, %v5760
    %v5829 = vadd.f32 %v5827, %v5828
    %v5830 = vrot.slane %v2598, 7
    %v5832 = vrot.slane %v4797, 6
    %v5834 = vsel %vm4802, %v5830, %v5832
    %5836 = vrot.lane.b32.xlu0 %v5829, 96
    %v5837 = vpop.permute.xlu0 %5836
    %v5838 = vsel %vm160, %v5837, 0
    %5840 = vmatpush.msra.mxu0 0.0
    %5841 = vmatpush.msra.mxu0 0.0
    %5842 = vmatpush.msra.mxu0 0.0
    %5843 = vmatpush.msra.mxu0 0.0
    %5844 = vmatpush.msra.mxu0 0.0
    %5845 = vmatpush.msra.mxu0 0.0
    %5846 = vmatpush.msra.mxu0 0.0
    %5847 = vmatpush.msra.mxu0 0.0
    %5848 = vmatpush.msra.mxu0 0.0
    %5849 = vmatpush.msra.mxu0 0.0
    %5850 = vmatpush.msra.mxu0 0.0
    %5851 = vmatpush.msra.mxu0 0.0
    %5852 = vmatpush.msra.mxu0 %v52
    %5853 = vmatpush.msra.mxu0 %v51
    %5854 = vmatpush.msra.mxu0 %v50
    %5855 = vmatpush.msra.mxu0 %v49
    %5856 = vmatmul.f32.gmra.mxu0 %v5838
    %v5857 = vpop.f32.mrf.mxu0
    %v5858 = vadd.f32 %v4804, %v5857
    %5859 = vdwg.mxu0
    %v5860 = vadd.f32 %v5834, %v5858
    %v5861 = vsub.f32 0.0, %v5860
    %v5862 = vmul.f32 %v5861, 1.442695
    %v5863 = vpow.pop %v5862
    %v5864 = vadd.f32 %v5863, 1.0
    %v5865 = vrcp.pop %v5864
    %v5866 = vmul.f32 %v5864, %v5865
    %v5867 = vsub.f32 1.0, %v5866
    %v5868 = vmul.f32 %v5865, %v5867
    %v5869 = vadd.f32 %v5865, %v5868
    %vm5870 = vweird.f32 %v5864
    %vm5871 = vweird.f32 %v5865
    %vm5872 = vmor %vm5870, %vm5871
    %v5873 = vsel %vm5872, %v5865, %v5869
    %v5874 = vand.u32 2147483647, %v5864
    %vm5875 = vcmp.eq.f32.partialorder %v5874, 8.507059e+37
    %v5876 = vand.u32 %v5864, 2147483648
    %v5877 = vor.u32 1.1754944e-38, %v5876
    %v5878 = vsel %vm5875, %v5877, %v5873
    %v5879 = vmul.f32 1.0, %v5878
    %5881 = vrot.lane.b32.xlu0 %v5858, 64
    %v5882 = vpop.permute.xlu0 %5881
    %v5884 = vmul.f32 %v5879, %v5882
    %5886 = vrot.lane.b32.xlu0 %v5884, 64
    %v5887 = vpop.permute.xlu0 %5886
    %v5889 = vadd.f32 %v5834, %v5887
    %v5890 = vtanh.pop %v5889
    %v5891 = vsub.f32 1.0, %v5879
    %5893 = vrot.lane.b32.xlu0 %v5890, 96
    %v5894 = vpop.permute.xlu0 %5893
    %v5896 = vmul.f32 %v5891, %v5894
    %v5897 = vmul.f32 %v5879, %v5829
    %v5898 = vadd.f32 %v5896, %v5897
    %v5899 = vperm.slane %v59, 0
    %5901 = vrot.lane.b32.xlu0 %v5898, 96
    %v5902 = vpop.permute.xlu0 %5901
    %v5903 = vsel %vm160, %v5902, 0
    %5905 = vmatpush.msra.mxu0 0.0
    %5906 = vmatpush.msra.mxu0 0.0
    %5907 = vmatpush.msra.mxu0 0.0
    %5908 = vmatpush.msra.mxu0 0.0
    %5909 = vmatpush.msra.mxu0 0.0
    %5910 = vmatpush.msra.mxu0 0.0
    %5911 = vmatpush.msra.mxu0 0.0
    %5912 = vmatpush.msra.mxu0 0.0
    %5913 = vmatpush.msra.mxu0 0.0
    %5914 = vmatpush.msra.mxu0 0.0
    %5915 = vmatpush.msra.mxu0 0.0
    %5916 = vmatpush.msra.mxu0 0.0
    %5917 = vmatpush.msra.mxu0 %v58
    %5918 = vmatpush.msra.mxu0 %v57
    %5919 = vmatpush.msra.mxu0 %v56
    %5920 = vmatpush.msra.mxu0 %v55
    %5921 = vmatmul.f32.gmra.mxu0 %v5903
    %v5922 = vpop.f32.mrf.mxu0
    %v5923 = vadd.f32 %v5899, %v5922
    %5924 = vdwg.mxu0
    %v5925 = vmax.f32 %v5923, 0.0
    %v5926 = vperm.slane %v64, 0
    %v5928 = vsel %vm160, %v5925, 0
    %5930 = vmatpush.msra.mxu0 0.0
    %5931 = vmatpush.msra.mxu0 0.0
    %5932 = vmatpush.msra.mxu0 0.0
    %5933 = vmatpush.msra.mxu0 0.0
    %5934 = vmatpush.msra.mxu0 0.0
    %5935 = vmatpush.msra.mxu0 0.0
    %5936 = vmatpush.msra.mxu0 0.0
    %5937 = vmatpush.msra.mxu0 0.0
    %5938 = vmatpush.msra.mxu0 0.0
    %5939 = vmatpush.msra.mxu0 0.0
    %5940 = vmatpush.msra.mxu0 0.0
    %5941 = vmatpush.msra.mxu0 0.0
    %5942 = vmatpush.msra.mxu0 %v63
    %5943 = vmatpush.msra.mxu0 %v62
    %5944 = vmatpush.msra.mxu0 %v61
    %5945 = vmatpush.msra.mxu0 %v60
    %5946 = vmatmul.f32.gmra.mxu0 %v5928
    %v5947 = vpop.f32.mrf.mxu0
    %v5948 = vadd.f32 %v5926, %v5947
    %5949 = vdwg.mxu0
    %vm5950 = vcmask 25600
    %5951 = vst.msk [vmem:[#allocation5] sm:$0x3] %vm5950, %v5948
    // Predicated region
    $region14: #{mtad_gat_forward.1} parent=1 // pred_check
      _
    $region15: #{mtad_gat_forward.1} parent=1 // pred_check_branch
      %5953 = sbr.rel (0) target = $region17
    $region16: #{mtad_gat_forward.1} parent=1 // pred_region
      %5955 = vsyncadd [#allocation4], 0
      %s5957 = sshll.u32 [#allocation5], 4
      %s5958 = int_to_ptr.vmem [resolvable:$true] %s5957
      %s5959 = sshll.u32 %s2, 4
      %s5960 = int_to_ptr.hbm [resolvable:$true] %s5959
      %5962 = dma.vmem_to_hbm [thread:$0]  %s5958, 32, %s5960, [#allocation4]
    $region17: #{mtad_gat_forward.1} parent=1 // pred_fallthru
      _
    // Predicated region
    $region18: #{mtad_gat_forward.1} parent=1 // pred_check
      _
    $region19: #{mtad_gat_forward.1} parent=1 // pred_check_branch
      %5964 = sbr.rel (0) target = $region21
    $region20: #{mtad_gat_forward.1} parent=1 // pred_region
      %5966 = dma.done [#allocation4], 32
    $region21: #{mtad_gat_forward.1} parent=1 // pred_fallthru
      _
    %5967 = vsyncpa [#allocation3], 1
    %5968 = vsyncpa [#allocation4], 1

</llo_original>
